<compile_context>
chip_gen: v5e
topology: v5e:2x2
jax: 0.10.0
libtpu: 0.0.40
codegen_flags: <defaults>
</compile_context>

<pallas_src>
import functools

import jax
import jax.numpy as jnp
from jax import lax
from jax.experimental import pallas as pl
from jax.experimental.pallas import tpu as pltpu


# ------------------------------- helpers ------------------------------------

def _erf_poly(z):
    """Abramowitz & Stegun 7.1.26 erf (|err| < 1.5e-7) — elementwise-only ops
    (abs / div / exp / select) that are guaranteed to lower in Mosaic."""
    a1, a2, a3, a4, a5 = (0.254829592, -0.284496736, 1.421413741,
                          -1.453152027, 1.061405429)
    p = 0.3275911
    sgn = jnp.where(z >= 0.0, 1.0, -1.0)
    az = jnp.abs(z)
    t = 1.0 / (1.0 + p * az)
    poly = ((((a5 * t + a4) * t + a3) * t + a2) * t + a1) * t
    return sgn * (1.0 - poly * jnp.exp(-az * az))


def _gelu_kernel(x):
    # PyTorch nn.GELU default (approximate='none'): 0.5*x*(1+erf(x/sqrt(2)))
    return 0.5 * x * (1.0 + _erf_poly(x * 0.7071067811865476))


def _gelu_exact_ref(x):
    return 0.5 * x * (1.0 + lax.erf(x * 0.7071067811865476))


def _eff_ws_shift(H, W, window_size, block_idx):
    ws = window_size
    shift = 0 if block_idx % 2 == 0 else window_size // 2
    if min(H, W) <= window_size:
        ws = min(H, W)
        shift = 0
    return ws, shift


def _pick_attn_tiles(B, nWh, nWw, N, C, budget=6 << 20, cap=64):
    """Windows per grid step = bb (batches) * kv (vertical windows), bounded by
    a VMEM-byte estimate.  kv | nWh and bb | B so mask indexing stays valid."""
    # x f32 dbuf (8) + out f32 dbuf (8) + qkv f32 (12) + head outs/concat (~6)
    per_window = N * C * 34 + 2 * N * N * 4
    max_w = max(1, min(cap, budget // per_window))
    kv = max(d for d in range(1, nWh + 1) if nWh % d == 0 and d <= max_w)
    bb = max(d for d in range(1, B + 1) if B % d == 0 and d * kv <= max_w)
    # Prefer >=2 grid steps (pipeline depth / v7x megacore) when it is free.
    if (B // bb) * (nWh // kv) * nWw < 2:
        if bb > 1:
            bb = max(d for d in range(1, bb) if B % d == 0)
        elif kv > 1:
            kv = max(d for d in range(1, kv) if nWh % d == 0)
    return bb, kv


def _pick_row_tile(M, C, Hd, budget=8 << 20):
    """Largest row tile (divisor of M) fitting a VMEM budget that accounts for
    the double-buffered I/O blocks, resident MLP weights and the live f32
    hidden intermediate; prefers >=2 grid steps when that keeps tile >= 128."""
    cands = [t for t in (4096, 2048, 1024, 512, 256, 128, 64, 32, 16, 8)
             if M % t == 0]
    if not cands:
        return M

    def fits(t):
        return t * C * 24 + t * Hd * 6 + 4 * C * Hd <= budget

    tile = next((t for t in cands if fits(t)), cands[-1])
    if M // tile < 2:
        for t in cands:
            if t < tile and M // t >= 2 and t >= 128:
                tile = t
                break
    return tile


# ----------------------------- Pallas kernels -------------------------------

def _window_attn_kernel(*refs, num_heads, nWh, has_mask):
    """Fused LayerNorm1 + window MHSA on a block of bb*kv windows.

    x block: (bb, kv*ws, ws, C) read directly from the (B, H, W, C) activation
    (window partition folded into the BlockSpec).  Full-width QKV matmul,
    per-head score / attn*V matmuls, lane-concat of heads, single output
    projection.  Output is written back to the same image coordinates.
    """
    if has_mask:
        (x_ref, g_ref, b_ref, wqkv_ref, bqkv_ref, relb_ref, wp_ref, bp_ref,
         mask_ref, o_ref) = refs
    else:
        (x_ref, g_ref, b_ref, wqkv_ref, bqkv_ref, relb_ref, wp_ref, bp_ref,
         o_ref) = refs
        mask_ref = None

    bb, kvws, ws, C = x_ref.shape
    kv = kvws // ws
    N = ws * ws
    Wn = bb * kv                      # windows in this block
    nh = num_heads
    hd = C // nh

    # ---- LayerNorm1 (f32) over channels; bf16 for the MXU ----
    # (bb, kv*ws, ws, C) -> (Wn*N, C) is a row-major-preserving collapse.
    x = x_ref[...].astype(jnp.float32).reshape(Wn * N, C)
    mu = jnp.mean(x, axis=-1, keepdims=True)
    var = jnp.mean((x - mu) ** 2, axis=-1, keepdims=True)
    xn = (x - mu) * lax.rsqrt(var + 1e-5) * g_ref[...] + b_ref[...]
    xf = xn.astype(jnp.bfloat16)

    # ---- full-width QKV projection: one (Wn*N, C) x (C, 3C) MXU pass ----
    # (qk scale is folded into the Q columns / bias in the wrapper).
    qkv = jnp.dot(xf, wqkv_ref[...], preferred_element_type=jnp.float32)
    qkv = qkv + bqkv_ref[...]

    if has_mask:
        hi = pl.program_id(1)
        wi = pl.program_id(2)
        # mask is stored column-major over windows, so the kv vertically
        # adjacent windows of this block are a contiguous slice.
        mstart = wi * nWh + hi * kv
        mask = mask_ref[pl.ds(mstart, kv)]            # (kv, N, N)

    # ---- per-head attention (unrolled; num_heads is small here) ----
    head_outs = []
    for h in range(nh):
        q = qkv[:, h * hd:(h + 1) * hd].reshape(Wn, N, hd).astype(jnp.bfloat16)
        k = qkv[:, C + h * hd:C + (h + 1) * hd].reshape(Wn, N, hd).astype(jnp.bfloat16)
        v = qkv[:, 2 * C + h * hd:2 * C + (h + 1) * hd].reshape(Wn, N, hd).astype(jnp.bfloat16)

        s = jnp.einsum("wqd,wkd->wqk", q, k,
                       preferred_element_type=jnp.float32)        # (Wn, N, N)
        s = s + relb_ref[h][None]
        if has_mask:
            s = (s.reshape(bb, kv, N, N) + mask[None]).reshape(Wn, N, N)

        # softmax in f32; divide replaced by EUP reciprocal.
        s = s - jnp.max(s, axis=-1, keepdims=True)
        p = jnp.exp(s)
        p = p * pl.reciprocal(jnp.sum(p, axis=-1, keepdims=True), approx=True)

        o = jnp.einsum("wqk,wkd->wqd", p.astype(jnp.bfloat16), v,
                       preferred_element_type=jnp.float32)        # (Wn, N, hd)
        head_outs.append(o.reshape(Wn * N, hd))

    # ---- lane-concat heads, single (Wn*N, C) x (C, C) output projection ----
    o_cat = jnp.concatenate(head_outs, axis=-1).astype(jnp.bfloat16)
    out = jnp.dot(o_cat, wp_ref[...], preferred_element_type=jnp.float32)
    out = out + bp_ref[...]
    o_ref[...] = out.reshape(o_ref.shape).astype(o_ref.dtype)


def _ln_mlp_res_kernel(s_ref, d_ref, g_ref, b_ref, w1_ref, b1_ref,
                       w2_ref, b2_ref, o_ref):
    """out = x + MLP(LN2(x)) with x = shortcut + attn_delta, fully fused."""
    x = s_ref[...].astype(jnp.float32) + d_ref[...].astype(jnp.float32)
    mu = jnp.mean(x, axis=-1, keepdims=True)
    var = jnp.mean((x - mu) ** 2, axis=-1, keepdims=True)
    xn = (x - mu) * lax.rsqrt(var + 1e-5) * g_ref[...] + b_ref[...]
    h = jnp.dot(xn.astype(jnp.bfloat16), w1_ref[...],
                preferred_element_type=jnp.float32) + b1_ref[...]
    h = _gelu_kernel(h)                                           # f32
    y = jnp.dot(h.astype(jnp.bfloat16), w2_ref[...],
                preferred_element_type=jnp.float32) + b2_ref[...]
    o_ref[...] = (x + y).astype(o_ref.dtype)


# ----------------------------- kernel wrappers -------------------------------

def window_attention(x4, g1, b1, wqkv, bqkv, rel_bias, wproj, bproj,
                     mask_cm, num_heads, ws):
    """x4: (B, H, W, C) (already rolled for SW-MSA); mask_cm: column-major
    (nW, N, N) shift mask or None; rel_bias: (nH, N, N).  Returns (B, H, W, C)
    attention output (window partition/reverse folded into the index_maps)."""
    B, H, W_, C = x4.shape
    N = ws * ws
    nWh, nWw = H // ws, W_ // ws
    has_mask = mask_cm is not None
    bb, kv = _pick_attn_tiles(B, nWh, nWw, N, C)
    grid = (B // bb, nWh // kv, nWw)

    kernel = functools.partial(_window_attn_kernel, num_heads=num_heads,
                               nWh=nWh, has_mask=has_mask)
    blk = (bb, kv * ws, ws, C)
    in_specs = [
        pl.BlockSpec(blk, lambda b, h, w: (b, h, w, 0)),
        pl.BlockSpec((1, C), lambda b, h, w: (0, 0)),
        pl.BlockSpec((1, C), lambda b, h, w: (0, 0)),
        pl.BlockSpec((C, 3 * C), lambda b, h, w: (0, 0)),        # resident
        pl.BlockSpec((1, 3 * C), lambda b, h, w: (0, 0)),
        pl.BlockSpec((num_heads, N, N), lambda b, h, w: (0, 0, 0)),  # resident
        pl.BlockSpec((C, C), lambda b, h, w: (0, 0)),            # resident
        pl.BlockSpec((1, C), lambda b, h, w: (0, 0)),
    ]
    args = [x4, g1.reshape(1, C), b1.reshape(1, C), wqkv,
            bqkv.reshape(1, 3 * C), rel_bias, wproj, bproj.reshape(1, C)]
    if has_mask:
        nW = nWh * nWw
        # constant index_map -> mask DMA'd once, sliced in-kernel with pl.ds.
        in_specs.append(pl.BlockSpec((nW, N, N), lambda b, h, w: (0, 0, 0)))
        args.append(mask_cm)

    # TODO(synk): for C >= 128 the output could be emitted in bf16 to halve
    # the inter-kernel HBM traffic; kept f32 here (C=32 -> sub-tile bf16 blocks).
    return pl.pallas_call(
        kernel,
        out_shape=jax.ShapeDtypeStruct((B, H, W_, C), x4.dtype),
        grid=grid,
        in_specs=in_specs,
        out_specs=pl.BlockSpec(blk, lambda b, h, w: (b, h, w, 0)),
        compiler_params=pltpu.CompilerParams(
            dimension_semantics=("parallel", "parallel", "parallel"),
            vmem_limit_bytes=32 << 20),
    )(*args)


def ln_mlp_residual(shortcut2d, delta2d, g, b, w1_bf16, b1, w2_bf16, b2):
    M, C = shortcut2d.shape
    Hd = w1_bf16.shape[1]
    tile = _pick_row_tile(M, C, Hd)
    return pl.pallas_call(
        _ln_mlp_res_kernel,
        out_shape=jax.ShapeDtypeStruct((M, C), shortcut2d.dtype),
        grid=(M // tile,),
        in_specs=[
            pl.BlockSpec((tile, C), lambda i: (i, 0)),
            pl.BlockSpec((tile, C), lambda i: (i, 0)),
            pl.BlockSpec((1, C), lambda i: (0, 0)),
            pl.BlockSpec((1, C), lambda i: (0, 0)),
            pl.BlockSpec((C, Hd), lambda i: (0, 0)),             # resident
            pl.BlockSpec((1, Hd), lambda i: (0, 0)),
            pl.BlockSpec((Hd, C), lambda i: (0, 0)),             # resident
            pl.BlockSpec((1, C), lambda i: (0, 0)),
        ],
        out_specs=pl.BlockSpec((tile, C), lambda i: (i, 0)),
        compiler_params=pltpu.CompilerParams(
            dimension_semantics=("parallel",),
            vmem_limit_bytes=32 << 20),
    )(shortcut2d, delta2d, g.reshape(1, C), b.reshape(1, C),
      w1_bf16, b1.reshape(1, Hd), w2_bf16, b2.reshape(1, C))


# -------------------------------- JAX glue -----------------------------------

def window_partition(x, ws):
    B, H, W, C = x.shape
    x = x.reshape(B, H // ws, ws, W // ws, ws, C)
    return x.transpose(0, 1, 3, 2, 4, 5).reshape(-1, ws, ws, C)


def window_reverse(windows, ws, H, W):
    B = windows.shape[0] // (H * W // ws // ws)
    x = windows.reshape(B, H // ws, W // ws, ws, ws, -1)
    return x.transpose(0, 1, 3, 2, 4, 5).reshape(B, H, W, -1)


def relative_position_index(ws):
    coords = jnp.stack(jnp.meshgrid(jnp.arange(ws), jnp.arange(ws),
                                    indexing="ij"))               # (2, ws, ws)
    cf = coords.reshape(2, -1)
    rel = cf[:, :, None] - cf[:, None, :]                         # (2, N, N)
    rel = rel.transpose(1, 2, 0)                                  # (N, N, 2)
    rel = rel + jnp.array([ws - 1, ws - 1])
    rel = rel.at[:, :, 0].multiply(2 * ws - 1)
    return rel.sum(-1)                                            # (N, N)


def make_shift_attn_mask(H, W, ws, shift):
    img_mask = jnp.zeros((1, H, W, 1), jnp.float32)
    slices = (slice(0, -ws), slice(-ws, -shift), slice(-shift, None))
    cnt = 0
    for hs in slices:
        for wsl in slices:
            img_mask = img_mask.at[:, hs, wsl, :].set(cnt)
            cnt += 1
    mw = window_partition(img_mask, ws).reshape(-1, ws * ws)
    am = mw[:, None, :] - mw[:, :, None]
    return jnp.where(am != 0, -100.0, 0.0)                        # (nW, N, N)


def init_block_params(key, dim, num_heads, window_size, hidden, H, W, shift):
    ks = jax.random.split(key, 8)
    p = {
        "g1": jnp.ones((dim,), jnp.float32),
        "b1": jnp.zeros((dim,), jnp.float32),
        "wqkv": 0.02 * jax.random.normal(ks[0], (dim, 3 * dim), jnp.float32),
        "bqkv": 0.02 * jax.random.normal(ks[1], (3 * dim,), jnp.float32),
        "wproj": 0.02 * jax.random.normal(ks[2], (dim, dim), jnp.float32),
        "bproj": 0.02 * jax.random.normal(ks[3], (dim,), jnp.float32),
        "rel_table": 0.02 * jax.random.normal(
            ks[4], ((2 * window_size - 1) ** 2, num_heads), jnp.float32),
        "g2": jnp.ones((dim,), jnp.float32),
        "b2": jnp.zeros((dim,), jnp.float32),
        "w1": 0.02 * jax.random.normal(ks[5], (dim, hidden), jnp.float32),
        "bb1": 0.02 * jax.random.normal(ks[6], (hidden,), jnp.float32),
        "w2": 0.02 * jax.random.normal(ks[7], (hidden, dim), jnp.float32),
        "bb2": jnp.zeros((dim,), jnp.float32),
    }
    p["rel_index"] = relative_position_index(window_size)
    if shift > 0:
        p["mask"] = make_shift_attn_mask(H, W, window_size, shift)
    return p


def swin_block_forward(x, p, H, W, window_size, shift, num_heads):
    B, L, C = x.shape
    ws = window_size
    N = ws * ws
    nh = num_heads
    hd = C // nh
    scale = hd ** -0.5

    # ---- weight packing: scale folded into the Q columns, bf16 for the MXU ----
    qscale = jnp.concatenate([jnp.full((C,), scale, jnp.float32),
                              jnp.ones((2 * C,), jnp.float32)])
    wqkv = (p["wqkv"] * qscale[None, :]).astype(jnp.bfloat16)      # (C, 3C)
    bqkv = p["bqkv"] * qscale                                      # (3C,)
    wproj = p["wproj"].astype(jnp.bfloat16)                        # (C, C)

    rel_bias = p["rel_table"][p["rel_index"].reshape(-1)]
    rel_bias = rel_bias.reshape(N, N, nh).transpose(2, 0, 1)       # (nH, N, N)

    # ---- attention path: LN1 fused in-kernel; partition/reverse folded into
    #      the BlockSpecs; only the cyclic roll stays in the wrapper ----
    x4 = x.reshape(B, H, W, C)
    if shift > 0:
        x4 = jnp.roll(x4, (-shift, -shift), axis=(1, 2))
        nWh, nWw = H // ws, W // ws
        # reorder mask windows column-major so a block of kv vertically
        # adjacent windows maps to a contiguous pl.ds slice in-kernel.
        mask_cm = (p["mask"].reshape(nWh, nWw, N, N)
                   .transpose(1, 0, 2, 3).reshape(nWh * nWw, N, N))
    else:
        mask_cm = None

    attn4 = window_attention(x4, p["g1"], p["b1"], wqkv, bqkv, rel_bias,
                             wproj, p["bproj"], mask_cm, nh, ws)
    if shift > 0:
        attn4 = jnp.roll(attn4, (shift, shift), axis=(1, 2))
    delta = attn4.reshape(B, L, C)

    # ---- fused: out = (shortcut + delta) + MLP(LN2(shortcut + delta)) ----
    out = ln_mlp_residual(x.reshape(B * L, C), delta.reshape(B * L, C),
                          p["g2"], p["b2"],
                          p["w1"].astype(jnp.bfloat16), p["bb1"],
                          p["w2"].astype(jnp.bfloat16), p["bb2"])
    return out.reshape(B, L, C)


def basic_layer_forward(x, params, H, W, window_size, num_heads):
    # BasicLayer: shift = 0 for even blocks, window_size//2 for odd blocks.
    for i, p in enumerate(params):
        ws, shift = _eff_ws_shift(H, W, window_size, i)
        x = swin_block_forward(x, p, H, W, ws, shift, num_heads)
    return x


# ----------------------- pure-JAX reference (sanity) -------------------------

def _ref_ln(x, g, b):
    m = x.mean(-1, keepdims=True)
    v = ((x - m) ** 2).mean(-1, keepdims=True)
    return (x - m) / jnp.sqrt(v + 1e-5) * g + b


def _ref_attn(xw, p, rel_bias, mask, num_heads, scale):
    B_, N, C = xw.shape
    hd = C // num_heads
    qkv = xw @ p["wqkv"] + p["bqkv"]
    qkv = qkv.reshape(B_, N, 3, num_heads, hd).transpose(2, 0, 3, 1, 4)
    q, k, v = qkv[0] * scale, qkv[1], qkv[2]
    attn = jnp.einsum("bhqd,bhkd->bhqk", q, k) + rel_bias[None]
    if mask is not None:
        nW = mask.shape[0]
        attn = attn.reshape(B_ // nW, nW, num_heads, N, N) + mask[None, :, None]
        attn = attn.reshape(B_, num_heads, N, N)
    attn = jax.nn.softmax(attn, axis=-1)
    out = jnp.einsum("bhqk,bhkd->bhqd", attn, v)
    out = out.transpose(0, 2, 1, 3).reshape(B_, N, C)
    return out @ p["wproj"] + p["bproj"]


def ref_block(x, p, H, W, window_size, shift, num_heads):
    B, L, C = x.shape
    N = window_size * window_size
    hd = C // num_heads
    shortcut = x
    xn = _ref_ln(x, p["g1"], p["b1"]).reshape(B, H, W, C)
    if shift > 0:
        xn = jnp.roll(xn, (-shift, -shift), axis=(1, 2))
    xw = window_partition(xn, window_size).reshape(-1, N, C)
    rel_bias = p["rel_table"][p["rel_index"].reshape(-1)]
    rel_bias = rel_bias.reshape(N, N, num_heads).transpose(2, 0, 1)
    attn_out = _ref_attn(xw, p, rel_bias, p.get("mask") if shift > 0 else None,
                         num_heads, hd ** -0.5)
    xr = window_reverse(attn_out.reshape(-1, window_size, window_size, C),
                        window_size, H, W)
    if shift > 0:
        xr = jnp.roll(xr, (shift, shift), axis=(1, 2))
    x = shortcut + xr.reshape(B, L, C)
    y = _ref_ln(x, p["g2"], p["b2"])
    y = _gelu_exact_ref(y @ p["w1"] + p["bb1"]) @ p["w2"] + p["bb2"]
    return x + y


def ref_layer(x, params, H, W, window_size, num_heads):
    for i, p in enumerate(params):
        ws, shift = _eff_ws_shift(H, W, window_size, i)
        x = ref_block(x, p, H, W, ws, shift, num_heads)
    return x


# ---------------------------------- main -------------------------------------

if __name__ == "__main__":
    B, H, W, C = 2, 16, 16, 32
    num_heads, window_size, depth = 4, 8, 2
    mlp_ratio = 4.0
    hidden = int(C * mlp_ratio)

    key = jax.random.PRNGKey(0)
    kx, kp = jax.random.split(key)
    x = jax.random.normal(kx, (B, H * W, C), jnp.float32)

    block_keys = jax.random.split(kp, depth)
    params = []
    for i in range(depth):
        ws, shift = _eff_ws_shift(H, W, window_size, i)
        params.append(init_block_params(block_keys[i], C, num_heads, ws,
                                        hidden, H, W, shift))

    out = basic_layer_forward(x, params, H, W, window_size, num_heads)
    out = jax.block_until_ready(out)

    ref = ref_layer(x, params, H, W, window_size, num_heads)
    assert out.shape == (B, H * W, C)
    err = float(jnp.max(jnp.abs(out - ref)))
    assert jnp.allclose(out, ref, atol=2e-2, rtol=2e-2), err

    print("KERNEL_OK")
</pallas_src>

<mosaic_0001>
module attributes {stable_mosaic.version = 11 : i64} {
  func.func @_window_attn_kernel(%arg0: i32, %arg1: i32, %arg2: i32, %arg3: memref<2x16x8x32xf32, #tpu.memory_space<vmem>>, %arg4: memref<1x32xf32, #tpu.memory_space<vmem>>, %arg5: memref<1x32xf32, #tpu.memory_space<vmem>>, %arg6: memref<32x96xbf16, #tpu.memory_space<vmem>>, %arg7: memref<1x96xf32, #tpu.memory_space<vmem>>, %arg8: memref<4x64x64xf32, #tpu.memory_space<vmem>>, %arg9: memref<32x32xbf16, #tpu.memory_space<vmem>>, %arg10: memref<1x32xf32, #tpu.memory_space<vmem>>, %arg11: memref<2x16x8x32xf32, #tpu.memory_space<vmem>>) attributes {dimension_semantics = [#tpu.dimension_semantics<parallel>, #tpu.dimension_semantics<parallel>, #tpu.dimension_semantics<parallel>], iteration_bounds = array<i64: 1, 1, 2>, scalar_prefetch = 0 : i64, scratch_operands = 0 : i64, tpu.core_type = #tpu.core_type<tc>, window_params = [{transform_indices = @transform_0, window_bounds = array<i64: 2, 16, 8, 32>}, {pipeline_mode = #tpu.pipeline_mode<synchronous>, transform_indices = @transform_1, window_bounds = array<i64: 1, 32>}, {pipeline_mode = #tpu.pipeline_mode<synchronous>, transform_indices = @transform_2, window_bounds = array<i64: 1, 32>}, {pipeline_mode = #tpu.pipeline_mode<synchronous>, transform_indices = @transform_3, window_bounds = array<i64: 32, 96>}, {pipeline_mode = #tpu.pipeline_mode<synchronous>, transform_indices = @transform_4, window_bounds = array<i64: 1, 96>}, {pipeline_mode = #tpu.pipeline_mode<synchronous>, transform_indices = @transform_5, window_bounds = array<i64: 4, 64, 64>}, {pipeline_mode = #tpu.pipeline_mode<synchronous>, transform_indices = @transform_6, window_bounds = array<i64: 32, 32>}, {pipeline_mode = #tpu.pipeline_mode<synchronous>, transform_indices = @transform_7, window_bounds = array<i64: 1, 32>}, {transform_indices = @transform_8, window_bounds = array<i64: 2, 16, 8, 32>}]} {
    %c0 = arith.constant 0 : index
    %c0_0 = arith.constant 0 : index
    %c0_1 = arith.constant 0 : index
    %c0_2 = arith.constant 0 : index
    %0 = vector.load %arg3[%c0, %c0_0, %c0_1, %c0_2] : memref<2x16x8x32xf32, #tpu.memory_space<vmem>>, vector<2x16x8x32xf32>
    %1 = vector.shape_cast %0 : vector<2x16x8x32xf32> to vector<256x32xf32>
    %cst = arith.constant dense<0.000000e+00> : vector<256xf32>
    %2 = vector.multi_reduction <add>, %1, %cst [1] : vector<256x32xf32> to vector<256xf32>
    %3 = vector.shape_cast %2 : vector<256xf32> to vector<256x1xf32>
    %cst_3 = arith.constant 3.200000e+01 : f32
    %4 = vector.broadcast %cst_3 : f32 to vector<256x1xf32>
    %5 = arith.divf %3, %4 : vector<256x1xf32>
    %6 = vector.broadcast %5 : vector<256x1xf32> to vector<256x32xf32>
    %7 = arith.subf %1, %6 : vector<256x32xf32>
    %8 = arith.mulf %7, %7 : vector<256x32xf32>
    %cst_4 = arith.constant dense<0.000000e+00> : vector<256xf32>
    %9 = vector.multi_reduction <add>, %8, %cst_4 [1] : vector<256x32xf32> to vector<256xf32>
    %10 = vector.shape_cast %9 : vector<256xf32> to vector<256x1xf32>
    %cst_5 = arith.constant 3.200000e+01 : f32
    %11 = vector.broadcast %cst_5 : f32 to vector<256x1xf32>
    %12 = arith.divf %10, %11 : vector<256x1xf32>
    %13 = vector.broadcast %5 : vector<256x1xf32> to vector<256x32xf32>
    %14 = arith.subf %1, %13 : vector<256x32xf32>
    %cst_6 = arith.constant 9.99999974E-6 : f32
    %15 = vector.broadcast %cst_6 : f32 to vector<256x1xf32>
    %16 = arith.addf %12, %15 : vector<256x1xf32>
    %17 = math.rsqrt %16 : vector<256x1xf32>
    %18 = vector.broadcast %17 : vector<256x1xf32> to vector<256x32xf32>
    %19 = arith.mulf %14, %18 : vector<256x32xf32>
    %c0_7 = arith.constant 0 : index
    %c0_8 = arith.constant 0 : index
    %20 = vector.load %arg4[%c0_7, %c0_8] : memref<1x32xf32, #tpu.memory_space<vmem>>, vector<1x32xf32>
    %21 = vector.broadcast %20 : vector<1x32xf32> to vector<256x32xf32>
    %22 = arith.mulf %19, %21 : vector<256x32xf32>
    %c0_9 = arith.constant 0 : index
    %c0_10 = arith.constant 0 : index
    %23 = vector.load %arg5[%c0_9, %c0_10] : memref<1x32xf32, #tpu.memory_space<vmem>>, vector<1x32xf32>
    %24 = vector.broadcast %23 : vector<1x32xf32> to vector<256x32xf32>
    %25 = arith.addf %22, %24 : vector<256x32xf32>
    %26 = arith.truncf %25 : vector<256x32xf32> to vector<256x32xbf16>
    %c0_11 = arith.constant 0 : index
    %c0_12 = arith.constant 0 : index
    %27 = vector.load %arg6[%c0_11, %c0_12] : memref<32x96xbf16, #tpu.memory_space<vmem>>, vector<32x96xbf16>
    %cst_13 = arith.constant dense<0.000000e+00> : vector<256x96xf32>
    %28 = tpu.matmul %26, %27, %cst_13 {dimension_numbers = #tpu.dot_dimension_numbers<[1], [0], [0], [1], [0, 0, 1, 1], [], []>} : vector<256x32xbf16>, vector<32x96xbf16>, vector<256x96xf32> -> vector<256x96xf32>
    %c0_14 = arith.constant 0 : index
    %c0_15 = arith.constant 0 : index
    %29 = vector.load %arg7[%c0_14, %c0_15] : memref<1x96xf32, #tpu.memory_space<vmem>>, vector<1x96xf32>
    %30 = vector.broadcast %29 : vector<1x96xf32> to vector<256x96xf32>
    %31 = arith.addf %28, %30 : vector<256x96xf32>
    %32 = vector.extract_strided_slice %31 {offsets = [0, 0], sizes = [256, 8], strides = [1, 1]} : vector<256x96xf32> to vector<256x8xf32>
    %33 = vector.shape_cast %32 : vector<256x8xf32> to vector<4x64x8xf32>
    %34 = arith.truncf %33 : vector<4x64x8xf32> to vector<4x64x8xbf16>
    %35 = vector.extract_strided_slice %31 {offsets = [0, 32], sizes = [256, 8], strides = [1, 1]} : vector<256x96xf32> to vector<256x8xf32>
    %36 = vector.shape_cast %35 : vector<256x8xf32> to vector<4x64x8xf32>
    %37 = arith.truncf %36 : vector<4x64x8xf32> to vector<4x64x8xbf16>
    %38 = vector.extract_strided_slice %31 {offsets = [0, 64], sizes = [256, 8], strides = [1, 1]} : vector<256x96xf32> to vector<256x8xf32>
    %39 = vector.shape_cast %38 : vector<256x8xf32> to vector<4x64x8xf32>
    %40 = arith.truncf %39 : vector<4x64x8xf32> to vector<4x64x8xbf16>
    "tpu.trace_start"() <{level = 10 : i32, message = "wqd,wkd->wqk"}> : () -> ()
    %cst_16 = arith.constant dense<0.000000e+00> : vector<4x64x64xf32>
    %41 = tpu.matmul %34, %37, %cst_16 {dimension_numbers = #tpu.dot_dimension_numbers<[2], [2], [1], [1], [0, 0, 0, 1, 1, 1], [0], [0]>} : vector<4x64x8xbf16>, vector<4x64x8xbf16>, vector<4x64x64xf32> -> vector<4x64x64xf32>
    "tpu.trace_stop"() : () -> ()
    %c0_17 = arith.constant 0 : index
    %c0_18 = arith.constant 0 : index
    %c0_19 = arith.constant 0 : index
    %42 = vector.load %arg8[%c0_17, %c0_18, %c0_19] : memref<4x64x64xf32, #tpu.memory_space<vmem>>, vector<1x64x64xf32>
    %43 = vector.shape_cast %42 : vector<1x64x64xf32> to vector<64x64xf32>
    %44 = vector.shape_cast %43 : vector<64x64xf32> to vector<1x64x64xf32>
    %45 = vector.broadcast %44 : vector<1x64x64xf32> to vector<4x64x64xf32>
    %46 = arith.addf %41, %45 : vector<4x64x64xf32>
    %cst_20 = arith.constant dense<0xFF800000> : vector<4x64xf32>
    %47 = vector.multi_reduction <maximumf>, %46, %cst_20 [2] : vector<4x64x64xf32> to vector<4x64xf32>
    %48 = vector.shape_cast %47 : vector<4x64xf32> to vector<4x64x1xf32>
    %49 = vector.broadcast %48 : vector<4x64x1xf32> to vector<4x64x64xf32>
    %50 = arith.subf %46, %49 : vector<4x64x64xf32>
    %51 = math.exp %50 : vector<4x64x64xf32>
    %cst_21 = arith.constant dense<0.000000e+00> : vector<4x64xf32>
    %52 = vector.multi_reduction <add>, %51, %cst_21 [2] : vector<4x64x64xf32> to vector<4x64xf32>
    %53 = vector.shape_cast %52 : vector<4x64xf32> to vector<4x64x1xf32>
    %54 = tpu.reciprocal %53 {approx = true} : vector<4x64x1xf32> -> vector<4x64x1xf32>
    %55 = vector.broadcast %54 : vector<4x64x1xf32> to vector<4x64x64xf32>
    %56 = arith.mulf %51, %55 : vector<4x64x64xf32>
    %57 = arith.truncf %56 : vector<4x64x64xf32> to vector<4x64x64xbf16>
    "tpu.trace_start"() <{level = 10 : i32, message = "wqk,wkd->wqd"}> : () -> ()
    %cst_22 = arith.constant dense<0.000000e+00> : vector<4x64x8xf32>
    %58 = tpu.matmul %57, %40, %cst_22 {dimension_numbers = #tpu.dot_dimension_numbers<[2], [1], [1], [2], [0, 0, 0, 1, 1, 2], [0], [0]>} : vector<4x64x64xbf16>, vector<4x64x8xbf16>, vector<4x64x8xf32> -> vector<4x64x8xf32>
    "tpu.trace_stop"() : () -> ()
    %59 = vector.shape_cast %58 : vector<4x64x8xf32> to vector<256x8xf32>
    %60 = vector.extract_strided_slice %31 {offsets = [0, 8], sizes = [256, 8], strides = [1, 1]} : vector<256x96xf32> to vector<256x8xf32>
    %61 = vector.shape_cast %60 : vector<256x8xf32> to vector<4x64x8xf32>
    %62 = arith.truncf %61 : vector<4x64x8xf32> to vector<4x64x8xbf16>
    %63 = vector.extract_strided_slice %31 {offsets = [0, 40], sizes = [256, 8], strides = [1, 1]} : vector<256x96xf32> to vector<256x8xf32>
    %64 = vector.shape_cast %63 : vector<256x8xf32> to vector<4x64x8xf32>
    %65 = arith.truncf %64 : vector<4x64x8xf32> to vector<4x64x8xbf16>
    %66 = vector.extract_strided_slice %31 {offsets = [0, 72], sizes = [256, 8], strides = [1, 1]} : vector<256x96xf32> to vector<256x8xf32>
    %67 = vector.shape_cast %66 : vector<256x8xf32> to vector<4x64x8xf32>
    %68 = arith.truncf %67 : vector<4x64x8xf32> to vector<4x64x8xbf16>
    "tpu.trace_start"() <{level = 10 : i32, message = "wqd,wkd->wqk"}> : () -> ()
    %cst_23 = arith.constant dense<0.000000e+00> : vector<4x64x64xf32>
    %69 = tpu.matmul %62, %65, %cst_23 {dimension_numbers = #tpu.dot_dimension_numbers<[2], [2], [1], [1], [0, 0, 0, 1, 1, 1], [0], [0]>} : vector<4x64x8xbf16>, vector<4x64x8xbf16>, vector<4x64x64xf32> -> vector<4x64x64xf32>
    "tpu.trace_stop"() : () -> ()
    %c1 = arith.constant 1 : index
    %c0_24 = arith.constant 0 : index
    %c0_25 = arith.constant 0 : index
    %70 = vector.load %arg8[%c1, %c0_24, %c0_25] : memref<4x64x64xf32, #tpu.memory_space<vmem>>, vector<1x64x64xf32>
    %71 = vector.shape_cast %70 : vector<1x64x64xf32> to vector<64x64xf32>
    %72 = vector.shape_cast %71 : vector<64x64xf32> to vector<1x64x64xf32>
    %73 = vector.broadcast %72 : vector<1x64x64xf32> to vector<4x64x64xf32>
    %74 = arith.addf %69, %73 : vector<4x64x64xf32>
    %cst_26 = arith.constant dense<0xFF800000> : vector<4x64xf32>
    %75 = vector.multi_reduction <maximumf>, %74, %cst_26 [2] : vector<4x64x64xf32> to vector<4x64xf32>
    %76 = vector.shape_cast %75 : vector<4x64xf32> to vector<4x64x1xf32>
    %77 = vector.broadcast %76 : vector<4x64x1xf32> to vector<4x64x64xf32>
    %78 = arith.subf %74, %77 : vector<4x64x64xf32>
    %79 = math.exp %78 : vector<4x64x64xf32>
    %cst_27 = arith.constant dense<0.000000e+00> : vector<4x64xf32>
    %80 = vector.multi_reduction <add>, %79, %cst_27 [2] : vector<4x64x64xf32> to vector<4x64xf32>
    %81 = vector.shape_cast %80 : vector<4x64xf32> to vector<4x64x1xf32>
    %82 = tpu.reciprocal %81 {approx = true} : vector<4x64x1xf32> -> vector<4x64x1xf32>
    %83 = vector.broadcast %82 : vector<4x64x1xf32> to vector<4x64x64xf32>
    %84 = arith.mulf %79, %83 : vector<4x64x64xf32>
    %85 = arith.truncf %84 : vector<4x64x64xf32> to vector<4x64x64xbf16>
    "tpu.trace_start"() <{level = 10 : i32, message = "wqk,wkd->wqd"}> : () -> ()
    %cst_28 = arith.constant dense<0.000000e+00> : vector<4x64x8xf32>
    %86 = tpu.matmul %85, %68, %cst_28 {dimension_numbers = #tpu.dot_dimension_numbers<[2], [1], [1], [2], [0, 0, 0, 1, 1, 2], [0], [0]>} : vector<4x64x64xbf16>, vector<4x64x8xbf16>, vector<4x64x8xf32> -> vector<4x64x8xf32>
    "tpu.trace_stop"() : () -> ()
    %87 = vector.shape_cast %86 : vector<4x64x8xf32> to vector<256x8xf32>
    %88 = vector.extract_strided_slice %31 {offsets = [0, 16], sizes = [256, 8], strides = [1, 1]} : vector<256x96xf32> to vector<256x8xf32>
    %89 = vector.shape_cast %88 : vector<256x8xf32> to vector<4x64x8xf32>
    %90 = arith.truncf %89 : vector<4x64x8xf32> to vector<4x64x8xbf16>
    %91 = vector.extract_strided_slice %31 {offsets = [0, 48], sizes = [256, 8], strides = [1, 1]} : vector<256x96xf32> to vector<256x8xf32>
    %92 = vector.shape_cast %91 : vector<256x8xf32> to vector<4x64x8xf32>
    %93 = arith.truncf %92 : vector<4x64x8xf32> to vector<4x64x8xbf16>
    %94 = vector.extract_strided_slice %31 {offsets = [0, 80], sizes = [256, 8], strides = [1, 1]} : vector<256x96xf32> to vector<256x8xf32>
    %95 = vector.shape_cast %94 : vector<256x8xf32> to vector<4x64x8xf32>
    %96 = arith.truncf %95 : vector<4x64x8xf32> to vector<4x64x8xbf16>
    "tpu.trace_start"() <{level = 10 : i32, message = "wqd,wkd->wqk"}> : () -> ()
    %cst_29 = arith.constant dense<0.000000e+00> : vector<4x64x64xf32>
    %97 = tpu.matmul %90, %93, %cst_29 {dimension_numbers = #tpu.dot_dimension_numbers<[2], [2], [1], [1], [0, 0, 0, 1, 1, 1], [0], [0]>} : vector<4x64x8xbf16>, vector<4x64x8xbf16>, vector<4x64x64xf32> -> vector<4x64x64xf32>
    "tpu.trace_stop"() : () -> ()
    %c2 = arith.constant 2 : index
    %c0_30 = arith.constant 0 : index
    %c0_31 = arith.constant 0 : index
    %98 = vector.load %arg8[%c2, %c0_30, %c0_31] : memref<4x64x64xf32, #tpu.memory_space<vmem>>, vector<1x64x64xf32>
    %99 = vector.shape_cast %98 : vector<1x64x64xf32> to vector<64x64xf32>
    %100 = vector.shape_cast %99 : vector<64x64xf32> to vector<1x64x64xf32>
    %101 = vector.broadcast %100 : vector<1x64x64xf32> to vector<4x64x64xf32>
    %102 = arith.addf %97, %101 : vector<4x64x64xf32>
    %cst_32 = arith.constant dense<0xFF800000> : vector<4x64xf32>
    %103 = vector.multi_reduction <maximumf>, %102, %cst_32 [2] : vector<4x64x64xf32> to vector<4x64xf32>
    %104 = vector.shape_cast %103 : vector<4x64xf32> to vector<4x64x1xf32>
    %105 = vector.broadcast %104 : vector<4x64x1xf32> to vector<4x64x64xf32>
    %106 = arith.subf %102, %105 : vector<4x64x64xf32>
    %107 = math.exp %106 : vector<4x64x64xf32>
    %cst_33 = arith.constant dense<0.000000e+00> : vector<4x64xf32>
    %108 = vector.multi_reduction <add>, %107, %cst_33 [2] : vector<4x64x64xf32> to vector<4x64xf32>
    %109 = vector.shape_cast %108 : vector<4x64xf32> to vector<4x64x1xf32>
    %110 = tpu.reciprocal %109 {approx = true} : vector<4x64x1xf32> -> vector<4x64x1xf32>
    %111 = vector.broadcast %110 : vector<4x64x1xf32> to vector<4x64x64xf32>
    %112 = arith.mulf %107, %111 : vector<4x64x64xf32>
    %113 = arith.truncf %112 : vector<4x64x64xf32> to vector<4x64x64xbf16>
    "tpu.trace_start"() <{level = 10 : i32, message = "wqk,wkd->wqd"}> : () -> ()
    %cst_34 = arith.constant dense<0.000000e+00> : vector<4x64x8xf32>
    %114 = tpu.matmul %113, %96, %cst_34 {dimension_numbers = #tpu.dot_dimension_numbers<[2], [1], [1], [2], [0, 0, 0, 1, 1, 2], [0], [0]>} : vector<4x64x64xbf16>, vector<4x64x8xbf16>, vector<4x64x8xf32> -> vector<4x64x8xf32>
    "tpu.trace_stop"() : () -> ()
    %115 = vector.shape_cast %114 : vector<4x64x8xf32> to vector<256x8xf32>
    %116 = vector.extract_strided_slice %31 {offsets = [0, 24], sizes = [256, 8], strides = [1, 1]} : vector<256x96xf32> to vector<256x8xf32>
    %117 = vector.shape_cast %116 : vector<256x8xf32> to vector<4x64x8xf32>
    %118 = arith.truncf %117 : vector<4x64x8xf32> to vector<4x64x8xbf16>
    %119 = vector.extract_strided_slice %31 {offsets = [0, 56], sizes = [256, 8], strides = [1, 1]} : vector<256x96xf32> to vector<256x8xf32>
    %120 = vector.shape_cast %119 : vector<256x8xf32> to vector<4x64x8xf32>
    %121 = arith.truncf %120 : vector<4x64x8xf32> to vector<4x64x8xbf16>
    %122 = vector.extract_strided_slice %31 {offsets = [0, 88], sizes = [256, 8], strides = [1, 1]} : vector<256x96xf32> to vector<256x8xf32>
    %123 = vector.shape_cast %122 : vector<256x8xf32> to vector<4x64x8xf32>
    %124 = arith.truncf %123 : vector<4x64x8xf32> to vector<4x64x8xbf16>
    "tpu.trace_start"() <{level = 10 : i32, message = "wqd,wkd->wqk"}> : () -> ()
    %cst_35 = arith.constant dense<0.000000e+00> : vector<4x64x64xf32>
    %125 = tpu.matmul %118, %121, %cst_35 {dimension_numbers = #tpu.dot_dimension_numbers<[2], [2], [1], [1], [0, 0, 0, 1, 1, 1], [0], [0]>} : vector<4x64x8xbf16>, vector<4x64x8xbf16>, vector<4x64x64xf32> -> vector<4x64x64xf32>
    "tpu.trace_stop"() : () -> ()
    %c3 = arith.constant 3 : index
    %c0_36 = arith.constant 0 : index
    %c0_37 = arith.constant 0 : index
    %126 = vector.load %arg8[%c3, %c0_36, %c0_37] : memref<4x64x64xf32, #tpu.memory_space<vmem>>, vector<1x64x64xf32>
    %127 = vector.shape_cast %126 : vector<1x64x64xf32> to vector<64x64xf32>
    %128 = vector.shape_cast %127 : vector<64x64xf32> to vector<1x64x64xf32>
    %129 = vector.broadcast %128 : vector<1x64x64xf32> to vector<4x64x64xf32>
    %130 = arith.addf %125, %129 : vector<4x64x64xf32>
    %cst_38 = arith.constant dense<0xFF800000> : vector<4x64xf32>
    %131 = vector.multi_reduction <maximumf>, %130, %cst_38 [2] : vector<4x64x64xf32> to vector<4x64xf32>
    %132 = vector.shape_cast %131 : vector<4x64xf32> to vector<4x64x1xf32>
    %133 = vector.broadcast %132 : vector<4x64x1xf32> to vector<4x64x64xf32>
    %134 = arith.subf %130, %133 : vector<4x64x64xf32>
    %135 = math.exp %134 : vector<4x64x64xf32>
    %cst_39 = arith.constant dense<0.000000e+00> : vector<4x64xf32>
    %136 = vector.multi_reduction <add>, %135, %cst_39 [2] : vector<4x64x64xf32> to vector<4x64xf32>
    %137 = vector.shape_cast %136 : vector<4x64xf32> to vector<4x64x1xf32>
    %138 = tpu.reciprocal %137 {approx = true} : vector<4x64x1xf32> -> vector<4x64x1xf32>
    %139 = vector.broadcast %138 : vector<4x64x1xf32> to vector<4x64x64xf32>
    %140 = arith.mulf %135, %139 : vector<4x64x64xf32>
    %141 = arith.truncf %140 : vector<4x64x64xf32> to vector<4x64x64xbf16>
    "tpu.trace_start"() <{level = 10 : i32, message = "wqk,wkd->wqd"}> : () -> ()
    %cst_40 = arith.constant dense<0.000000e+00> : vector<4x64x8xf32>
    %142 = tpu.matmul %141, %124, %cst_40 {dimension_numbers = #tpu.dot_dimension_numbers<[2], [1], [1], [2], [0, 0, 0, 1, 1, 2], [0], [0]>} : vector<4x64x64xbf16>, vector<4x64x8xbf16>, vector<4x64x8xf32> -> vector<4x64x8xf32>
    "tpu.trace_stop"() : () -> ()
    %143 = vector.shape_cast %142 : vector<4x64x8xf32> to vector<256x8xf32>
    %144 = tpu.concatenate %59, %87, %115, %143 in 1 : vector<256x8xf32>, vector<256x8xf32>, vector<256x8xf32>, vector<256x8xf32> -> vector<256x32xf32>
    %145 = arith.truncf %144 : vector<256x32xf32> to vector<256x32xbf16>
    %c0_41 = arith.constant 0 : index
    %c0_42 = arith.constant 0 : index
    %146 = vector.load %arg9[%c0_41, %c0_42] : memref<32x32xbf16, #tpu.memory_space<vmem>>, vector<32x32xbf16>
    %cst_43 = arith.constant dense<0.000000e+00> : vector<256x32xf32>
    %147 = tpu.matmul %145, %146, %cst_43 {dimension_numbers = #tpu.dot_dimension_numbers<[1], [0], [0], [1], [0, 0, 1, 1], [], []>} : vector<256x32xbf16>, vector<32x32xbf16>, vector<256x32xf32> -> vector<256x32xf32>
    %c0_44 = arith.constant 0 : index
    %c0_45 = arith.constant 0 : index
    %148 = vector.load %arg10[%c0_44, %c0_45] : memref<1x32xf32, #tpu.memory_space<vmem>>, vector<1x32xf32>
    %149 = vector.broadcast %148 : vector<1x32xf32> to vector<256x32xf32>
    %150 = arith.addf %147, %149 : vector<256x32xf32>
    %151 = vector.shape_cast %150 : vector<256x32xf32> to vector<2x16x8x32xf32>
    %c0_46 = arith.constant 0 : index
    %c0_47 = arith.constant 0 : index
    %c0_48 = arith.constant 0 : index
    %c0_49 = arith.constant 0 : index
    %152 = vector.load %arg11[%c0_46, %c0_47, %c0_48, %c0_49] : memref<2x16x8x32xf32, #tpu.memory_space<vmem>>, vector<2x16x8x32xf32>
    tpu.vector_store %arg11[%c0_46, %c0_47, %c0_48, %c0_49], %151 {strides = array<i32>} : memref<2x16x8x32xf32, #tpu.memory_space<vmem>>, vector<2x16x8x32xf32>,
    return
  }
  func.func @transform_0(%arg0: i32, %arg1: i32, %arg2: i32) -> (i32, i32, i32, i32) {
    %c0_i32 = arith.constant 0 : i32
    %c0_i32_0 = arith.constant 0 : i32
    return %arg0, %arg1, %arg2, %c0_i32 : i32, i32, i32, i32
  }
  func.func @transform_1(%arg0: i32, %arg1: i32, %arg2: i32) -> (i32, i32) {
    %c0_i32 = arith.constant 0 : i32
    %c0_i32_0 = arith.constant 0 : i32
    %c0_i32_1 = arith.constant 0 : i32
    return %c0_i32, %c0_i32_0 : i32, i32
  }
  func.func @transform_2(%arg0: i32, %arg1: i32, %arg2: i32) -> (i32, i32) {
    %c0_i32 = arith.constant 0 : i32
    %c0_i32_0 = arith.constant 0 : i32
    %c0_i32_1 = arith.constant 0 : i32
    return %c0_i32, %c0_i32_0 : i32, i32
  }
  func.func @transform_3(%arg0: i32, %arg1: i32, %arg2: i32) -> (i32, i32) {
    %c0_i32 = arith.constant 0 : i32
    %c0_i32_0 = arith.constant 0 : i32
    %c0_i32_1 = arith.constant 0 : i32
    return %c0_i32, %c0_i32_0 : i32, i32
  }
  func.func @transform_4(%arg0: i32, %arg1: i32, %arg2: i32) -> (i32, i32) {
    %c0_i32 = arith.constant 0 : i32
    %c0_i32_0 = arith.constant 0 : i32
    %c0_i32_1 = arith.constant 0 : i32
    return %c0_i32, %c0_i32_0 : i32, i32
  }
  func.func @transform_5(%arg0: i32, %arg1: i32, %arg2: i32) -> (i32, i32, i32) {
    %c0_i32 = arith.constant 0 : i32
    %c0_i32_0 = arith.constant 0 : i32
    %c0_i32_1 = arith.constant 0 : i32
    %c0_i32_2 = arith.constant 0 : i32
    return %c0_i32, %c0_i32_0, %c0_i32_1 : i32, i32, i32
  }
  func.func @transform_6(%arg0: i32, %arg1: i32, %arg2: i32) -> (i32, i32) {
    %c0_i32 = arith.constant 0 : i32
    %c0_i32_0 = arith.constant 0 : i32
    %c0_i32_1 = arith.constant 0 : i32
    return %c0_i32, %c0_i32_0 : i32, i32
  }
  func.func @transform_7(%arg0: i32, %arg1: i32, %arg2: i32) -> (i32, i32) {
    %c0_i32 = arith.constant 0 : i32
    %c0_i32_0 = arith.constant 0 : i32
    %c0_i32_1 = arith.constant 0 : i32
    return %c0_i32, %c0_i32_0 : i32, i32
  }
  func.func @transform_8(%arg0: i32, %arg1: i32, %arg2: i32) -> (i32, i32, i32, i32) {
    %c0_i32 = arith.constant 0 : i32
    %c0_i32_0 = arith.constant 0 : i32
    return %arg0, %arg1, %arg2, %c0_i32 : i32, i32, i32, i32
  }
}

</mosaic_0001>

<llo_original>
// kernel: tpu_custom_call.1
$region0: #{tpu_custom_call.1}
  #allocation0 [shape = 'u32[]', space=smem, size = 0x4, offset = 0x4, fixed_abs, tag = 'smem constant byte address 0x4 - core index']
  #allocation1 [shape = 'u32[72,128]{1,0:T(1,128)}', space=vmem, size = 0x9000, scoped, tag = 'internal scratch']
  %s0 = inlined_call_operand.hbm [shape: f32[2,16,16,32], index: 0, kind: input, shape index: {}]
  %s1 = inlined_call_operand.hbm [shape: f32[1,32], index: 1, kind: input, shape index: {}]
  %s2 = inlined_call_operand.vmem [shape: f32[1,32], index: 2, kind: input, shape index: {}]
  %s3 = inlined_call_operand.hbm [shape: bf16[32,96], index: 3, kind: input, shape index: {}]
  %s4 = inlined_call_operand.vmem [shape: f32[1,96], index: 4, kind: input, shape index: {}]
  %s5 = inlined_call_operand.hbm [shape: f32[4,64,64], index: 5, kind: input, shape index: {}]
  %s6 = inlined_call_operand.hbm [shape: bf16[32,32], index: 6, kind: input, shape index: {}]
  %s7 = inlined_call_operand.vmem [shape: f32[1,32], index: 7, kind: input, shape index: {}]
  %s8 = inlined_call_operand.hbm [shape: f32[2,16,16,32], index: 8, kind: output, shape index: {}]
  %s9 = sld [smem:[#allocation0]]
  $region85: #{tpu_custom_call.1} parent=0
    _
  %s11 = ssub.s32 1, %s9
  %s12 = scalar_select 0, %s11, %s9
  $region1: #{tpu_custom_call.1} parent=0
    #allocation2 [shape = 'u8[262144]{0}', space=vmem, size = 0x40000, scoped, tag = 'input window, operand 0']
    #allocation3 [shape = 's32[2]{0}', space=sflag, size = 0x8, scoped, tag = 'scoped memory for tpu_custom_call.1']
    #allocation4 [shape = 's32[2]{0}', space=sflag, size = 0x8, scoped, tag = 'scoped memory for tpu_custom_call.1']
    #allocation5 [shape = 'u8[512]{0}', space=vmem, size = 0x400, scoped, tag = 'input window, operand 1, single buffered']
    #allocation6 [shape = 's32[1]{0}', space=sflag, size = 0x4, scoped, tag = 'scoped memory for tpu_custom_call.1']
    #allocation7 [shape = 'u8[8192]{0}', space=vmem, size = 0x2000, scoped, tag = 'input window, operand 3, single buffered']
    #allocation8 [shape = 'u8[131072]{0}', space=vmem, size = 0x20000, scoped, tag = 'input window, operand 5, single buffered']
    #allocation9 [shape = 's32[1]{0}', space=sflag, size = 0x4, scoped, tag = 'scoped memory for tpu_custom_call.1']
    #allocation10 [shape = 'u8[8192]{0}', space=vmem, size = 0x2000, scoped, tag = 'input window, operand 6, single buffered']
    #allocation11 [shape = 'u8[262144]{0}', space=vmem, size = 0x40000, scoped, tag = 'output window, operand 0']
    %13 = vsyncpa [#allocation3], 0
    %s14 = scalar_lea.sflag [#allocation3], 1
    %15 = vsyncpa %s14, 0
    %16 = vsyncpa [#allocation6], 0
    %17 = vsyncpa [#allocation9], 0
    %18 = vsyncpa [#allocation4], 0
    %s19 = scalar_lea.sflag [#allocation4], 1
    %20 = vsyncpa %s19, 0
    loop: start=0, step=1, limit=4
    $region2: #{tpu_custom_call.1} parent=1 // loop_pre_header
      _
    $region3: #{tpu_custom_call.1} parent=1 // loop_header
      %s22 = sphi 0, %s26
      %p23 = scmp.ge.s32.totalorder %s22, 4
      %s29 = sphi 0, %s48
      %s30 = sphi 0, %s44
      %s31 = sphi 0, %s40
      %s32 = sphi 0, %s29
      %s33 = sphi 0, %s30
      %s34 = sphi 0, %s31
      %s35 = sphi 0, %s32
      %s36 = sphi 0, %s33
      %s37 = sphi 0, %s34
      %s55 = sphi 0, %s57
      %s58 = sphi 0, %s55
      %s59 = sphi 0, %s58
      %s75 = sphi 0, %s59
      %s79 = sphi 0, %s79
      %s81 = sphi 0, %s79
      %s82 = sphi 0, %s81
      %s96 = sphi 0, %s82
      %s100 = sphi 0, %s100
      %s102 = sphi 0, %s100
      %s103 = sphi 0, %s102
      %s117 = sphi 0, %s103
      %s121 = sphi 0, %s121
      %s123 = sphi 0, %s121
      %s124 = sphi 0, %s123
      %s138 = sphi 0, %s124
      %s142 = sphi 0, %s142
      %s144 = sphi 0, %s142
      %s145 = sphi 0, %s144
      %s159 = sphi 0, %s145
      %s163 = sphi 0, %s163
      %s165 = sphi 0, %s163
      %s166 = sphi 0, %s165
      %s180 = sphi 0, %s166
      %s184 = sphi 0, %s184
      %s186 = sphi 0, %s184
      %s187 = sphi 0, %s186
      %s201 = sphi 0, %s187
      %s205 = sphi 0, %s205
      %s207 = sphi 0, %s205
      %s208 = sphi 0, %s207
      %s222 = sphi 0, %s208
      %s232 = sphi 0, %s234
      %s235 = sphi 0, %s232
      %s236 = sphi 0, %s235
      %s252 = sphi 0, %s236
    $region4: #{tpu_custom_call.1} parent=1 // loop_header_branch
      %25 = sbr.rel (%p23) target = $region8
    $region5: #{tpu_custom_call.1} parent=1 // loop_body
      %s27 = ssub.s32 %s22, 1
      %s28 = ssub.s32 %s22, 2
      %s38 = sadd.s32 1, %s31
      %p39 = scmp.ge.s32.totalorder %s38, 2
      %s40 = scalar_select %p39, 0, %s38
      %s41 = sadd.s32 1, %s30
      %s42 = scalar_select %p39, %s41, %s30
      %p43 = scmp.ge.s32.totalorder %s42, 1
      %s44 = scalar_select %p43, 0, %s42
      %s45 = sadd.s32 1, %s29
      %s46 = scalar_select %p43, %s45, %s29
      %p47 = scmp.ge.s32.totalorder %s46, 1
      %s48 = scalar_select %p47, 0, %s46
      %s49 = ssub.s32 %s29, %s48
      %s50 = ssub.s32 %s30, %s44
      %s51 = sor.u32 %s49, %s50
      %s52 = ssub.s32 %s31, %s40
      %s53 = sor.u32 %s51, %s52
      %p54 = scmp.eq.s32.totalorder %s53, 0
      %s56 = sadd.s32 %s55, 1
      %s57 = scalar_select %p54, %s55, %s56
      %p60 = pneg %p54
      %p61 = scmp.eq.s32.totalorder %s22, 1
      %p62 = por %p60, %p61
      %p63 = scmp.ne.s32.totalorder %s55, %s58
      %p64 = scmp.eq.s32.totalorder %s22, 0
      %p65 = por %p63, %p64
      %p66 = scmp.ne.s32.totalorder %s55, %s58
      %p67 = scmp.eq.s32.totalorder %s27, 1
      %p68 = por %p66, %p67
      %p69 = scmp.ne.s32.totalorder %s58, %s59
      %p70 = scmp.eq.s32.totalorder %s27, 0
      %p71 = por %p69, %p70
      %p72 = scmp.ne.s32.totalorder %s58, %s59
      %p73 = scmp.eq.s32.totalorder %s28, 1
      %p74 = por %p72, %p73
      %p76 = scmp.ne.s32.totalorder %s59, %s75
      %p77 = scmp.eq.s32.totalorder %s28, 0
      %p78 = por %p76, %p77
      %s80 = sadd.s32 %s79, 1
      %p83 = scmp.eq.s32.totalorder %s22, 1
      %p84 = scmp.ne.s32.totalorder %s79, %s81
      %p85 = scmp.eq.s32.totalorder %s22, 0
      %p86 = por %p84, %p85
      %p87 = scmp.ne.s32.totalorder %s79, %s81
      %p88 = scmp.eq.s32.totalorder %s27, 1
      %p89 = por %p87, %p88
      %p90 = scmp.ne.s32.totalorder %s81, %s82
      %p91 = scmp.eq.s32.totalorder %s27, 0
      %p92 = por %p90, %p91
      %p93 = scmp.ne.s32.totalorder %s81, %s82
      %p94 = scmp.eq.s32.totalorder %s28, 1
      %p95 = por %p93, %p94
      %p97 = scmp.ne.s32.totalorder %s82, %s96
      %p98 = scmp.eq.s32.totalorder %s28, 0
      %p99 = por %p97, %p98
      %s101 = sadd.s32 %s100, 1
      %p104 = scmp.eq.s32.totalorder %s22, 1
      %p105 = scmp.ne.s32.totalorder %s100, %s102
      %p106 = scmp.eq.s32.totalorder %s22, 0
      %p107 = por %p105, %p106
      %p108 = scmp.ne.s32.totalorder %s100, %s102
      %p109 = scmp.eq.s32.totalorder %s27, 1
      %p110 = por %p108, %p109
      %p111 = scmp.ne.s32.totalorder %s102, %s103
      %p112 = scmp.eq.s32.totalorder %s27, 0
      %p113 = por %p111, %p112
      %p114 = scmp.ne.s32.totalorder %s102, %s103
      %p115 = scmp.eq.s32.totalorder %s28, 1
      %p116 = por %p114, %p115
      %p118 = scmp.ne.s32.totalorder %s103, %s117
      %p119 = scmp.eq.s32.totalorder %s28, 0
      %p120 = por %p118, %p119
      %s122 = sadd.s32 %s121, 1
      %p125 = scmp.eq.s32.totalorder %s22, 1
      %p126 = scmp.ne.s32.totalorder %s121, %s123
      %p127 = scmp.eq.s32.totalorder %s22, 0
      %p128 = por %p126, %p127
      %p129 = scmp.ne.s32.totalorder %s121, %s123
      %p130 = scmp.eq.s32.totalorder %s27, 1
      %p131 = por %p129, %p130
      %p132 = scmp.ne.s32.totalorder %s123, %s124
      %p133 = scmp.eq.s32.totalorder %s27, 0
      %p134 = por %p132, %p133
      %p135 = scmp.ne.s32.totalorder %s123, %s124
      %p136 = scmp.eq.s32.totalorder %s28, 1
      %p137 = por %p135, %p136
      %p139 = scmp.ne.s32.totalorder %s124, %s138
      %p140 = scmp.eq.s32.totalorder %s28, 0
      %p141 = por %p139, %p140
      %s143 = sadd.s32 %s142, 1
      %p146 = scmp.eq.s32.totalorder %s22, 1
      %p147 = scmp.ne.s32.totalorder %s142, %s144
      %p148 = scmp.eq.s32.totalorder %s22, 0
      %p149 = por %p147, %p148
      %p150 = scmp.ne.s32.totalorder %s142, %s144
      %p151 = scmp.eq.s32.totalorder %s27, 1
      %p152 = por %p150, %p151
      %p153 = scmp.ne.s32.totalorder %s144, %s145
      %p154 = scmp.eq.s32.totalorder %s27, 0
      %p155 = por %p153, %p154
      %p156 = scmp.ne.s32.totalorder %s144, %s145
      %p157 = scmp.eq.s32.totalorder %s28, 1
      %p158 = por %p156, %p157
      %p160 = scmp.ne.s32.totalorder %s145, %s159
      %p161 = scmp.eq.s32.totalorder %s28, 0
      %p162 = por %p160, %p161
      %s164 = sadd.s32 %s163, 1
      %p167 = scmp.eq.s32.totalorder %s22, 1
      %p168 = scmp.ne.s32.totalorder %s163, %s165
      %p169 = scmp.eq.s32.totalorder %s22, 0
      %p170 = por %p168, %p169
      %p171 = scmp.ne.s32.totalorder %s163, %s165
      %p172 = scmp.eq.s32.totalorder %s27, 1
      %p173 = por %p171, %p172
      %p174 = scmp.ne.s32.totalorder %s165, %s166
      %p175 = scmp.eq.s32.totalorder %s27, 0
      %p176 = por %p174, %p175
      %p177 = scmp.ne.s32.totalorder %s165, %s166
      %p178 = scmp.eq.s32.totalorder %s28, 1
      %p179 = por %p177, %p178
      %p181 = scmp.ne.s32.totalorder %s166, %s180
      %p182 = scmp.eq.s32.totalorder %s28, 0
      %p183 = por %p181, %p182
      %s185 = sadd.s32 %s184, 1
      %p188 = scmp.eq.s32.totalorder %s22, 1
      %p189 = scmp.ne.s32.totalorder %s184, %s186
      %p190 = scmp.eq.s32.totalorder %s22, 0
      %p191 = por %p189, %p190
      %p192 = scmp.ne.s32.totalorder %s184, %s186
      %p193 = scmp.eq.s32.totalorder %s27, 1
      %p194 = por %p192, %p193
      %p195 = scmp.ne.s32.totalorder %s186, %s187
      %p196 = scmp.eq.s32.totalorder %s27, 0
      %p197 = por %p195, %p196
      %p198 = scmp.ne.s32.totalorder %s186, %s187
      %p199 = scmp.eq.s32.totalorder %s28, 1
      %p200 = por %p198, %p199
      %p202 = scmp.ne.s32.totalorder %s187, %s201
      %p203 = scmp.eq.s32.totalorder %s28, 0
      %p204 = por %p202, %p203
      %s206 = sadd.s32 %s205, 1
      %p209 = scmp.eq.s32.totalorder %s22, 1
      %p210 = scmp.ne.s32.totalorder %s205, %s207
      %p211 = scmp.eq.s32.totalorder %s22, 0
      %p212 = por %p210, %p211
      %p213 = scmp.ne.s32.totalorder %s205, %s207
      %p214 = scmp.eq.s32.totalorder %s27, 1
      %p215 = por %p213, %p214
      %p216 = scmp.ne.s32.totalorder %s207, %s208
      %p217 = scmp.eq.s32.totalorder %s27, 0
      %p218 = por %p216, %p217
      %p219 = scmp.ne.s32.totalorder %s207, %s208
      %p220 = scmp.eq.s32.totalorder %s28, 1
      %p221 = por %p219, %p220
      %p223 = scmp.ne.s32.totalorder %s208, %s222
      %p224 = scmp.eq.s32.totalorder %s28, 0
      %p225 = por %p223, %p224
      %s226 = ssub.s32 %s29, %s48
      %s227 = ssub.s32 %s30, %s44
      %s228 = sor.u32 %s226, %s227
      %s229 = ssub.s32 %s31, %s40
      %s230 = sor.u32 %s228, %s229
      %p231 = scmp.eq.s32.totalorder %s230, 0
      %s233 = sadd.s32 %s232, 1
      %s234 = scalar_select %p231, %s232, %s233
      %p237 = pneg %p231
      %p238 = scmp.eq.s32.totalorder %s22, 1
      %p239 = por %p237, %p238
      %p240 = scmp.ne.s32.totalorder %s232, %s235
      %p241 = scmp.eq.s32.totalorder %s22, 0
      %p242 = por %p240, %p241
      %p243 = scmp.ne.s32.totalorder %s232, %s235
      %p244 = scmp.eq.s32.totalorder %s27, 1
      %p245 = por %p243, %p244
      %p246 = scmp.ne.s32.totalorder %s235, %s236
      %p247 = scmp.eq.s32.totalorder %s27, 0
      %p248 = por %p246, %p247
      %p249 = scmp.ne.s32.totalorder %s235, %s236
      %p250 = scmp.eq.s32.totalorder %s28, 1
      %p251 = por %p249, %p250
      %p253 = scmp.ne.s32.totalorder %s236, %s252
      %p254 = scmp.eq.s32.totalorder %s28, 0
      %p255 = por %p253, %p254
      %p256 = scmp.le.s32.totalorder 1, %s22
      %p257 = scmp.lt.s32.totalorder %s22, 3
      %p258 = pnand %p256, %p257
      %p259 = pneg %p258
      // Predicated region
      $region9: #{tpu_custom_call.1} parent=5 // pred_check
        _
      $region10: #{tpu_custom_call.1} parent=5 // pred_check_branch
        %261 = sbr.rel (%p258) target = $region12
      $region11: #{tpu_custom_call.1} parent=5 // pred_region
        %s262 = ssub.s32 %s22, 1
        // Predicated region
        $region13: #{tpu_custom_call.1} parent=11 // pred_check
          %p263 = pneg %p92
        $region14: #{tpu_custom_call.1} parent=11 // pred_check_branch
          %265 = sbr.rel (%p263) target = $region16
        $region15: #{tpu_custom_call.1} parent=11 // pred_region
          %267 = vsyncadd [#allocation6], 0
          %s269 = sshll.u32 %s1, 4
          %s270 = int_to_ptr.hbm [resolvable:$true] %s269
          %s271 = sshll.u32 [#allocation5], 4
          %s272 = int_to_ptr.vmem [resolvable:$true] %s271
          %274 = dma.hbm_to_vmem [thread:$0]  %s270, 16, %s272, [#allocation6]
        $region16: #{tpu_custom_call.1} parent=11 // pred_fallthru
          _
        // Predicated region
        $region17: #{tpu_custom_call.1} parent=11 // pred_check
          %p275 = pneg %p113
        $region18: #{tpu_custom_call.1} parent=11 // pred_check_branch
          %277 = sbr.rel (%p275) target = $region20
        $region19: #{tpu_custom_call.1} parent=11 // pred_region
          _
        $region20: #{tpu_custom_call.1} parent=11 // pred_fallthru
          _
        // Predicated region
        $region21: #{tpu_custom_call.1} parent=11 // pred_check
          %p278 = pneg %p134
        $region22: #{tpu_custom_call.1} parent=11 // pred_check_branch
          %280 = sbr.rel (%p278) target = $region24
        $region23: #{tpu_custom_call.1} parent=11 // pred_region
          %282 = vsyncadd [#allocation6], 0
          %s283 = sshll.u32 %s3, 4
          %s284 = int_to_ptr.hbm [resolvable:$true] %s283
          %s285 = sshll.u32 [#allocation7], 4
          %s286 = int_to_ptr.vmem [resolvable:$true] %s285
          %291 = dma.hbm_to_vmem [thread:$0]  %s284, 256, %s286, [#allocation6], 64, 64, 4
        $region24: #{tpu_custom_call.1} parent=11 // pred_fallthru
          _
        // Predicated region
        $region25: #{tpu_custom_call.1} parent=11 // pred_check
          %p292 = pneg %p155
        $region26: #{tpu_custom_call.1} parent=11 // pred_check_branch
          %294 = sbr.rel (%p292) target = $region28
        $region27: #{tpu_custom_call.1} parent=11 // pred_region
          _
        $region28: #{tpu_custom_call.1} parent=11 // pred_fallthru
          _
        // Predicated region
        $region29: #{tpu_custom_call.1} parent=11 // pred_check
          %p295 = pneg %p176
        $region30: #{tpu_custom_call.1} parent=11 // pred_check_branch
          %297 = sbr.rel (%p295) target = $region32
        $region31: #{tpu_custom_call.1} parent=11 // pred_region
          %299 = vsyncadd [#allocation9], 0
          %s300 = sshll.u32 %s5, 4
          %s301 = int_to_ptr.hbm [resolvable:$true] %s300
          %s302 = sshll.u32 [#allocation8], 4
          %s303 = int_to_ptr.vmem [resolvable:$true] %s302
          %308 = dma.hbm_to_vmem [thread:$0]  %s301, 4096, %s303, [#allocation9], 128, 128, 8
        $region32: #{tpu_custom_call.1} parent=11 // pred_fallthru
          _
        // Predicated region
        $region33: #{tpu_custom_call.1} parent=11 // pred_check
          %p309 = pneg %p197
        $region34: #{tpu_custom_call.1} parent=11 // pred_check_branch
          %311 = sbr.rel (%p309) target = $region36
        $region35: #{tpu_custom_call.1} parent=11 // pred_region
          %313 = vsyncadd [#allocation9], 0
          %s314 = sshll.u32 %s6, 4
          %s315 = int_to_ptr.hbm [resolvable:$true] %s314
          %s316 = sshll.u32 [#allocation10], 4
          %s317 = int_to_ptr.vmem [resolvable:$true] %s316
          %322 = dma.hbm_to_vmem [thread:$0]  %s315, 256, %s317, [#allocation9], 64, 64, 4
        $region36: #{tpu_custom_call.1} parent=11 // pred_fallthru
          _
        // Predicated region
        $region37: #{tpu_custom_call.1} parent=11 // pred_check
          %p323 = pneg %p218
        $region38: #{tpu_custom_call.1} parent=11 // pred_check_branch
          %325 = sbr.rel (%p323) target = $region40
        $region39: #{tpu_custom_call.1} parent=11 // pred_region
          _
        $region40: #{tpu_custom_call.1} parent=11 // pred_fallthru
          _
      $region12: #{tpu_custom_call.1} parent=5 // pred_fallthru
        _
      %p326 = scmp.lt.s32.totalorder %s22, 2
      // Predicated region
      $region41: #{tpu_custom_call.1} parent=5 // pred_check
        %p327 = pneg %p326
      $region42: #{tpu_custom_call.1} parent=5 // pred_check_branch
        %329 = sbr.rel (%p327) target = $region44
      $region43: #{tpu_custom_call.1} parent=5 // pred_region
        // Predicated region
        $region45: #{tpu_custom_call.1} parent=43 // pred_check
          %p330 = pneg %p65
        $region46: #{tpu_custom_call.1} parent=43 // pred_check_branch
          %332 = sbr.rel (%p330) target = $region48
        $region47: #{tpu_custom_call.1} parent=43 // pred_region
          %s333 = sand.u32 %s55, 1
          %s334 = scalar_lea.sflag [#allocation3], %s333
          %s335 = sand.u32 %s55, 1
          %s336 = smul.addr %s335, 256
          %s337 = scalar_lea.vmem [#allocation2], %s336
          %s338 = smul.u32 2, %s29
          %s339 = smul.u32 16, %s30
          %341 = vsyncadd %s334, 0
          %s342 = smul.addr %s339, 2
          %s343 = sadd.s32 %s31, %s342
          %s344 = smul.addr %s338, 32
          %s345 = sadd.s32 %s343, %s344
          %s346 = smul.addr %s345, 8
          %s347 = scalar_lea.hbm %s0, %s346
          %s348 = sshll.u32 %s347, 4
          %s349 = int_to_ptr.hbm [resolvable:$true] %s348
          %s350 = sshll.u32 %s337, 4
          %s351 = int_to_ptr.vmem [resolvable:$true] %s350
          %356 = dma.hbm_to_vmem [thread:$0]  %s349, 4096, %s351, %s334, 256, 128, 8
        $region48: #{tpu_custom_call.1} parent=43 // pred_fallthru
          _
      $region44: #{tpu_custom_call.1} parent=5 // pred_fallthru
        _
      %p357 = scmp.le.s32.totalorder 1, %s22
      %p358 = scmp.lt.s32.totalorder %s22, 3
      %p359 = pnand %p357, %p358
      %p360 = pneg %p359
      // Predicated region
      $region49: #{tpu_custom_call.1} parent=5 // pred_check
        _
      $region50: #{tpu_custom_call.1} parent=5 // pred_check_branch
        %362 = sbr.rel (%p359) target = $region52
      $region51: #{tpu_custom_call.1} parent=5 // pred_region
        %s363 = ssub.s32 %s22, 1
        %s364 = sand.u32 %s58, 1
        %s365 = scalar_lea.sflag [#allocation3], %s364
        %s366 = sand.u32 %s58, 1
        %s367 = smul.addr %s366, 256
        %s368 = scalar_lea.vmem [#allocation2], %s367
        // Predicated region
        $region53: #{tpu_custom_call.1} parent=51 // pred_check
          %p369 = pneg %p71
        $region54: #{tpu_custom_call.1} parent=51 // pred_check_branch
          %371 = sbr.rel (%p369) target = $region56
        $region55: #{tpu_custom_call.1} parent=51 // pred_region
          %373 = dma.done %s365, 4096
        $region56: #{tpu_custom_call.1} parent=51 // pred_fallthru
          _
        // Predicated region
        $region57: #{tpu_custom_call.1} parent=51 // pred_check
          %p374 = pneg %p92
        $region58: #{tpu_custom_call.1} parent=51 // pred_check_branch
          %376 = sbr.rel (%p374) target = $region60
        $region59: #{tpu_custom_call.1} parent=51 // pred_region
          %378 = dma.done [#allocation6], 16
        $region60: #{tpu_custom_call.1} parent=51 // pred_fallthru
          _
        // Predicated region
        $region61: #{tpu_custom_call.1} parent=51 // pred_check
          %p379 = pneg %p134
        $region62: #{tpu_custom_call.1} parent=51 // pred_check_branch
          %381 = sbr.rel (%p379) target = $region64
        $region63: #{tpu_custom_call.1} parent=51 // pred_region
          %383 = dma.done [#allocation6], 256
        $region64: #{tpu_custom_call.1} parent=51 // pred_fallthru
          _
        // Predicated region
        $region65: #{tpu_custom_call.1} parent=51 // pred_check
          %p384 = pneg %p176
        $region66: #{tpu_custom_call.1} parent=51 // pred_check_branch
          %386 = sbr.rel (%p384) target = $region68
        $region67: #{tpu_custom_call.1} parent=51 // pred_region
          %388 = dma.done [#allocation9], 4096
        $region68: #{tpu_custom_call.1} parent=51 // pred_fallthru
          _
        // Predicated region
        $region69: #{tpu_custom_call.1} parent=51 // pred_check
          %p389 = pneg %p197
        $region70: #{tpu_custom_call.1} parent=51 // pred_check_branch
          %391 = sbr.rel (%p389) target = $region72
        $region71: #{tpu_custom_call.1} parent=51 // pred_region
          %393 = dma.done [#allocation9], 256
        $region72: #{tpu_custom_call.1} parent=51 // pred_fallthru
          _
        %s394 = sand.u32 %s58, 1
        %s395 = scalar_lea.sflag [#allocation3], %s394
        %s396 = sand.u32 %s58, 1
        %s397 = smul.addr %s396, 256
        %s398 = scalar_lea.vmem [#allocation2], %s397
        %p399 = pneg %p71
        %p400 = pneg %p68
        %p401 = pneg %p92
        %p402 = pneg %p89
        %p403 = pneg %p113
        %p404 = pneg %p110
        %p405 = pneg %p134
        %p406 = pneg %p131
        %p407 = pneg %p155
        %p408 = pneg %p152
        %p409 = pneg %p176
        %p410 = pneg %p173
        %p411 = pneg %p197
        %p412 = pneg %p194
        %p413 = pneg %p218
        %p414 = pneg %p215
        %p415 = pneg %p248
        %p416 = pneg %p245
        %s417 = sand.u32 %s235, 1
        %s418 = scalar_lea.sflag [#allocation4], %s417
        %s419 = sand.u32 %s235, 1
        %s420 = smul.addr %s419, 256
        %s421 = scalar_lea.vmem [#allocation11], %s420
        %s422 = smul.u32 2, %s32
        %s423 = smul.u32 16, %s33
        %s424 = smul.u32 2, %s32
        %s425 = smul.u32 16, %s33
        %v427 = vld [vmem:[%s368] sm:$0xff]
        %v428 = vld [vmem:[%s368 + $0x8] sm:$0xff]
        %v429 = vld [vmem:[%s368 + $0x10] sm:$0xff]
        %v430 = vld [vmem:[%s368 + $0x18] sm:$0xff]
        %v431 = vld [vmem:[%s368 + $0x20] sm:$0xff]
        %v432 = vld [vmem:[%s368 + $0x28] sm:$0xff]
        %v433 = vld [vmem:[%s368 + $0x30] sm:$0xff]
        %v434 = vld [vmem:[%s368 + $0x38] sm:$0xff]
        %v435 = vld [vmem:[%s368 + $0x40] sm:$0xff]
        %v436 = vld [vmem:[%s368 + $0x48] sm:$0xff]
        %v437 = vld [vmem:[%s368 + $0x50] sm:$0xff]
        %v438 = vld [vmem:[%s368 + $0x58] sm:$0xff]
        %v439 = vld [vmem:[%s368 + $0x60] sm:$0xff]
        %v440 = vld [vmem:[%s368 + $0x68] sm:$0xff]
        %v441 = vld [vmem:[%s368 + $0x70] sm:$0xff]
        %v442 = vld [vmem:[%s368 + $0x78] sm:$0xff]
        %v443 = vld [vmem:[%s368 + $0x80] sm:$0xff]
        %v444 = vld [vmem:[%s368 + $0x88] sm:$0xff]
        %v445 = vld [vmem:[%s368 + $0x90] sm:$0xff]
        %v446 = vld [vmem:[%s368 + $0x98] sm:$0xff]
        %v447 = vld [vmem:[%s368 + $0xa0] sm:$0xff]
        %v448 = vld [vmem:[%s368 + $0xa8] sm:$0xff]
        %v449 = vld [vmem:[%s368 + $0xb0] sm:$0xff]
        %v450 = vld [vmem:[%s368 + $0xb8] sm:$0xff]
        %v451 = vld [vmem:[%s368 + $0xc0] sm:$0xff]
        %v452 = vld [vmem:[%s368 + $0xc8] sm:$0xff]
        %v453 = vld [vmem:[%s368 + $0xd0] sm:$0xff]
        %v454 = vld [vmem:[%s368 + $0xd8] sm:$0xff]
        %v455 = vld [vmem:[%s368 + $0xe0] sm:$0xff]
        %v456 = vld [vmem:[%s368 + $0xe8] sm:$0xff]
        %v457 = vld [vmem:[%s368 + $0xf0] sm:$0xff]
        %v458 = vld [vmem:[%s368 + $0xf8] sm:$0xff]
        %vm459 = vcmask 261120
        %v460 = vsel %vm459, %v427, 0.0
        %461 = vadd.xlane.f32.xlu0 %v460
        %v462 = vpop.xlane.xlu0 %461
        %v463 = vsel %vm459, %v428, 0.0
        %464 = vadd.xlane.f32.xlu0 %v463
        %v465 = vpop.xlane.xlu0 %464
        %v466 = vsel %vm459, %v429, 0.0
        %467 = vadd.xlane.f32.xlu0 %v466
        %v468 = vpop.xlane.xlu0 %467
        %v469 = vsel %vm459, %v430, 0.0
        %470 = vadd.xlane.f32.xlu0 %v469
        %v471 = vpop.xlane.xlu0 %470
        %v472 = vsel %vm459, %v431, 0.0
        %473 = vadd.xlane.f32.xlu0 %v472
        %v474 = vpop.xlane.xlu0 %473
        %v475 = vsel %vm459, %v432, 0.0
        %476 = vadd.xlane.f32.xlu0 %v475
        %v477 = vpop.xlane.xlu0 %476
        %v478 = vsel %vm459, %v433, 0.0
        %479 = vadd.xlane.f32.xlu0 %v478
        %v480 = vpop.xlane.xlu0 %479
        %v481 = vsel %vm459, %v434, 0.0
        %482 = vadd.xlane.f32.xlu0 %v481
        %v483 = vpop.xlane.xlu0 %482
        %v484 = vsel %vm459, %v435, 0.0
        %485 = vadd.xlane.f32.xlu0 %v484
        %v486 = vpop.xlane.xlu0 %485
        %v487 = vsel %vm459, %v436, 0.0
        %488 = vadd.xlane.f32.xlu0 %v487
        %v489 = vpop.xlane.xlu0 %488
        %v490 = vsel %vm459, %v437, 0.0
        %491 = vadd.xlane.f32.xlu0 %v490
        %v492 = vpop.xlane.xlu0 %491
        %v493 = vsel %vm459, %v438, 0.0
        %494 = vadd.xlane.f32.xlu0 %v493
        %v495 = vpop.xlane.xlu0 %494
        %v496 = vsel %vm459, %v439, 0.0
        %497 = vadd.xlane.f32.xlu0 %v496
        %v498 = vpop.xlane.xlu0 %497
        %v499 = vsel %vm459, %v440, 0.0
        %500 = vadd.xlane.f32.xlu0 %v499
        %v501 = vpop.xlane.xlu0 %500
        %v502 = vsel %vm459, %v441, 0.0
        %503 = vadd.xlane.f32.xlu0 %v502
        %v504 = vpop.xlane.xlu0 %503
        %v505 = vsel %vm459, %v442, 0.0
        %506 = vadd.xlane.f32.xlu0 %v505
        %v507 = vpop.xlane.xlu0 %506
        %v508 = vsel %vm459, %v443, 0.0
        %509 = vadd.xlane.f32.xlu0 %v508
        %v510 = vpop.xlane.xlu0 %509
        %v511 = vsel %vm459, %v444, 0.0
        %512 = vadd.xlane.f32.xlu0 %v511
        %v513 = vpop.xlane.xlu0 %512
        %v514 = vsel %vm459, %v445, 0.0
        %515 = vadd.xlane.f32.xlu0 %v514
        %v516 = vpop.xlane.xlu0 %515
        %v517 = vsel %vm459, %v446, 0.0
        %518 = vadd.xlane.f32.xlu0 %v517
        %v519 = vpop.xlane.xlu0 %518
        %v520 = vsel %vm459, %v447, 0.0
        %521 = vadd.xlane.f32.xlu0 %v520
        %v522 = vpop.xlane.xlu0 %521
        %v523 = vsel %vm459, %v448, 0.0
        %524 = vadd.xlane.f32.xlu0 %v523
        %v525 = vpop.xlane.xlu0 %524
        %v526 = vsel %vm459, %v449, 0.0
        %527 = vadd.xlane.f32.xlu0 %v526
        %v528 = vpop.xlane.xlu0 %527
        %v529 = vsel %vm459, %v450, 0.0
        %530 = vadd.xlane.f32.xlu0 %v529
        %v531 = vpop.xlane.xlu0 %530
        %v532 = vsel %vm459, %v451, 0.0
        %533 = vadd.xlane.f32.xlu0 %v532
        %v534 = vpop.xlane.xlu0 %533
        %v535 = vsel %vm459, %v452, 0.0
        %536 = vadd.xlane.f32.xlu0 %v535
        %v537 = vpop.xlane.xlu0 %536
        %v538 = vsel %vm459, %v453, 0.0
        %539 = vadd.xlane.f32.xlu0 %v538
        %v540 = vpop.xlane.xlu0 %539
        %v541 = vsel %vm459, %v454, 0.0
        %542 = vadd.xlane.f32.xlu0 %v541
        %v543 = vpop.xlane.xlu0 %542
        %v544 = vsel %vm459, %v455, 0.0
        %545 = vadd.xlane.f32.xlu0 %v544
        %v546 = vpop.xlane.xlu0 %545
        %v547 = vsel %vm459, %v456, 0.0
        %548 = vadd.xlane.f32.xlu0 %v547
        %v549 = vpop.xlane.xlu0 %548
        %v550 = vsel %vm459, %v457, 0.0
        %551 = vadd.xlane.f32.xlu0 %v550
        %v552 = vpop.xlane.xlu0 %551
        %v553 = vsel %vm459, %v458, 0.0
        %554 = vadd.xlane.f32.xlu0 %v553
        %v555 = vpop.xlane.xlu0 %554
        %v556 = vrcp.pop 32.0
        %v557 = vmul.f32 32.0, %v556
        %v558 = vsub.f32 1.0, %v557
        %v559 = vmul.f32 %v556, %v558
        %v560 = vadd.f32 %v556, %v559
        %vm561 = vweird.f32 %v556
        %v562 = vsel %vm561, %v556, %v560
        %v563 = vmul.f32 %v462, %v562
        %v564 = vmul.f32 %v465, %v562
        %v565 = vmul.f32 %v468, %v562
        %v566 = vmul.f32 %v471, %v562
        %v567 = vmul.f32 %v474, %v562
        %v568 = vmul.f32 %v477, %v562
        %v569 = vmul.f32 %v480, %v562
        %v570 = vmul.f32 %v483, %v562
        %v571 = vmul.f32 %v486, %v562
        %v572 = vmul.f32 %v489, %v562
        %v573 = vmul.f32 %v492, %v562
        %v574 = vmul.f32 %v495, %v562
        %v575 = vmul.f32 %v498, %v562
        %v576 = vmul.f32 %v501, %v562
        %v577 = vmul.f32 %v504, %v562
        %v578 = vmul.f32 %v507, %v562
        %v579 = vmul.f32 %v510, %v562
        %v580 = vmul.f32 %v513, %v562
        %v581 = vmul.f32 %v516, %v562
        %v582 = vmul.f32 %v519, %v562
        %v583 = vmul.f32 %v522, %v562
        %v584 = vmul.f32 %v525, %v562
        %v585 = vmul.f32 %v528, %v562
        %v586 = vmul.f32 %v531, %v562
        %v587 = vmul.f32 %v534, %v562
        %v588 = vmul.f32 %v537, %v562
        %v589 = vmul.f32 %v540, %v562
        %v590 = vmul.f32 %v543, %v562
        %v591 = vmul.f32 %v546, %v562
        %v592 = vmul.f32 %v549, %v562
        %v593 = vmul.f32 %v552, %v562
        %v594 = vmul.f32 %v555, %v562
        %v595 = vsub.f32 %v427, %v563
        %v596 = vsub.f32 %v428, %v564
        %v597 = vsub.f32 %v429, %v565
        %v598 = vsub.f32 %v430, %v566
        %v599 = vsub.f32 %v431, %v567
        %v600 = vsub.f32 %v432, %v568
        %v601 = vsub.f32 %v433, %v569
        %v602 = vsub.f32 %v434, %v570
        %v603 = vsub.f32 %v435, %v571
        %v604 = vsub.f32 %v436, %v572
        %v605 = vsub.f32 %v437, %v573
        %v606 = vsub.f32 %v438, %v574
        %v607 = vsub.f32 %v439, %v575
        %v608 = vsub.f32 %v440, %v576
        %v609 = vsub.f32 %v441, %v577
        %v610 = vsub.f32 %v442, %v578
        %v611 = vsub.f32 %v443, %v579
        %v612 = vsub.f32 %v444, %v580
        %v613 = vsub.f32 %v445, %v581
        %v614 = vsub.f32 %v446, %v582
        %v615 = vsub.f32 %v447, %v583
        %v616 = vsub.f32 %v448, %v584
        %v617 = vsub.f32 %v449, %v585
        %v618 = vsub.f32 %v450, %v586
        %v619 = vsub.f32 %v451, %v587
        %v620 = vsub.f32 %v452, %v588
        %v621 = vsub.f32 %v453, %v589
        %v622 = vsub.f32 %v454, %v590
        %v623 = vsub.f32 %v455, %v591
        %v624 = vsub.f32 %v456, %v592
        %v625 = vsub.f32 %v457, %v593
        %v626 = vsub.f32 %v458, %v594
        %v627 = vmul.f32 %v595, %v595
        %v628 = vmul.f32 %v596, %v596
        %v629 = vmul.f32 %v597, %v597
        %v630 = vmul.f32 %v598, %v598
        %v631 = vmul.f32 %v599, %v599
        %v632 = vmul.f32 %v600, %v600
        %v633 = vmul.f32 %v601, %v601
        %v634 = vmul.f32 %v602, %v602
        %v635 = vmul.f32 %v603, %v603
        %v636 = vmul.f32 %v604, %v604
        %v637 = vmul.f32 %v605, %v605
        %v638 = vmul.f32 %v606, %v606
        %v639 = vmul.f32 %v607, %v607
        %v640 = vmul.f32 %v608, %v608
        %v641 = vmul.f32 %v609, %v609
        %v642 = vmul.f32 %v610, %v610
        %v643 = vmul.f32 %v611, %v611
        %v644 = vmul.f32 %v612, %v612
        %v645 = vmul.f32 %v613, %v613
        %v646 = vmul.f32 %v614, %v614
        %v647 = vmul.f32 %v615, %v615
        %v648 = vmul.f32 %v616, %v616
        %v649 = vmul.f32 %v617, %v617
        %v650 = vmul.f32 %v618, %v618
        %v651 = vmul.f32 %v619, %v619
        %v652 = vmul.f32 %v620, %v620
        %v653 = vmul.f32 %v621, %v621
        %v654 = vmul.f32 %v622, %v622
        %v655 = vmul.f32 %v623, %v623
        %v656 = vmul.f32 %v624, %v624
        %v657 = vmul.f32 %v625, %v625
        %v658 = vmul.f32 %v626, %v626
        %v659 = vsel %vm459, %v627, 0.0
        %660 = vadd.xlane.f32.xlu0 %v659
        %v661 = vpop.xlane.xlu0 %660
        %v662 = vsel %vm459, %v628, 0.0
        %663 = vadd.xlane.f32.xlu0 %v662
        %v664 = vpop.xlane.xlu0 %663
        %v665 = vsel %vm459, %v629, 0.0
        %666 = vadd.xlane.f32.xlu0 %v665
        %v667 = vpop.xlane.xlu0 %666
        %v668 = vsel %vm459, %v630, 0.0
        %669 = vadd.xlane.f32.xlu0 %v668
        %v670 = vpop.xlane.xlu0 %669
        %v671 = vsel %vm459, %v631, 0.0
        %672 = vadd.xlane.f32.xlu0 %v671
        %v673 = vpop.xlane.xlu0 %672
        %v674 = vsel %vm459, %v632, 0.0
        %675 = vadd.xlane.f32.xlu0 %v674
        %v676 = vpop.xlane.xlu0 %675
        %v677 = vsel %vm459, %v633, 0.0
        %678 = vadd.xlane.f32.xlu0 %v677
        %v679 = vpop.xlane.xlu0 %678
        %v680 = vsel %vm459, %v634, 0.0
        %681 = vadd.xlane.f32.xlu0 %v680
        %v682 = vpop.xlane.xlu0 %681
        %v683 = vsel %vm459, %v635, 0.0
        %684 = vadd.xlane.f32.xlu0 %v683
        %v685 = vpop.xlane.xlu0 %684
        %v686 = vsel %vm459, %v636, 0.0
        %687 = vadd.xlane.f32.xlu0 %v686
        %v688 = vpop.xlane.xlu0 %687
        %v689 = vsel %vm459, %v637, 0.0
        %690 = vadd.xlane.f32.xlu0 %v689
        %v691 = vpop.xlane.xlu0 %690
        %v692 = vsel %vm459, %v638, 0.0
        %693 = vadd.xlane.f32.xlu0 %v692
        %v694 = vpop.xlane.xlu0 %693
        %v695 = vsel %vm459, %v639, 0.0
        %696 = vadd.xlane.f32.xlu0 %v695
        %v697 = vpop.xlane.xlu0 %696
        %v698 = vsel %vm459, %v640, 0.0
        %699 = vadd.xlane.f32.xlu0 %v698
        %v700 = vpop.xlane.xlu0 %699
        %v701 = vsel %vm459, %v641, 0.0
        %702 = vadd.xlane.f32.xlu0 %v701
        %v703 = vpop.xlane.xlu0 %702
        %v704 = vsel %vm459, %v642, 0.0
        %705 = vadd.xlane.f32.xlu0 %v704
        %v706 = vpop.xlane.xlu0 %705
        %v707 = vsel %vm459, %v643, 0.0
        %708 = vadd.xlane.f32.xlu0 %v707
        %v709 = vpop.xlane.xlu0 %708
        %v710 = vsel %vm459, %v644, 0.0
        %711 = vadd.xlane.f32.xlu0 %v710
        %v712 = vpop.xlane.xlu0 %711
        %v713 = vsel %vm459, %v645, 0.0
        %714 = vadd.xlane.f32.xlu0 %v713
        %v715 = vpop.xlane.xlu0 %714
        %v716 = vsel %vm459, %v646, 0.0
        %717 = vadd.xlane.f32.xlu0 %v716
        %v718 = vpop.xlane.xlu0 %717
        %v719 = vsel %vm459, %v647, 0.0
        %720 = vadd.xlane.f32.xlu0 %v719
        %v721 = vpop.xlane.xlu0 %720
        %v722 = vsel %vm459, %v648, 0.0
        %723 = vadd.xlane.f32.xlu0 %v722
        %v724 = vpop.xlane.xlu0 %723
        %v725 = vsel %vm459, %v649, 0.0
        %726 = vadd.xlane.f32.xlu0 %v725
        %v727 = vpop.xlane.xlu0 %726
        %v728 = vsel %vm459, %v650, 0.0
        %729 = vadd.xlane.f32.xlu0 %v728
        %v730 = vpop.xlane.xlu0 %729
        %v731 = vsel %vm459, %v651, 0.0
        %732 = vadd.xlane.f32.xlu0 %v731
        %v733 = vpop.xlane.xlu0 %732
        %v734 = vsel %vm459, %v652, 0.0
        %735 = vadd.xlane.f32.xlu0 %v734
        %v736 = vpop.xlane.xlu0 %735
        %v737 = vsel %vm459, %v653, 0.0
        %738 = vadd.xlane.f32.xlu0 %v737
        %v739 = vpop.xlane.xlu0 %738
        %v740 = vsel %vm459, %v654, 0.0
        %741 = vadd.xlane.f32.xlu0 %v740
        %v742 = vpop.xlane.xlu0 %741
        %v743 = vsel %vm459, %v655, 0.0
        %744 = vadd.xlane.f32.xlu0 %v743
        %v745 = vpop.xlane.xlu0 %744
        %v746 = vsel %vm459, %v656, 0.0
        %747 = vadd.xlane.f32.xlu0 %v746
        %v748 = vpop.xlane.xlu0 %747
        %v749 = vsel %vm459, %v657, 0.0
        %750 = vadd.xlane.f32.xlu0 %v749
        %v751 = vpop.xlane.xlu0 %750
        %v752 = vsel %vm459, %v658, 0.0
        %753 = vadd.xlane.f32.xlu0 %v752
        %v754 = vpop.xlane.xlu0 %753
        %v755 = vmul.f32 %v661, %v562
        %v756 = vmul.f32 %v664, %v562
        %v757 = vmul.f32 %v667, %v562
        %v758 = vmul.f32 %v670, %v562
        %v759 = vmul.f32 %v673, %v562
        %v760 = vmul.f32 %v676, %v562
        %v761 = vmul.f32 %v679, %v562
        %v762 = vmul.f32 %v682, %v562
        %v763 = vmul.f32 %v685, %v562
        %v764 = vmul.f32 %v688, %v562
        %v765 = vmul.f32 %v691, %v562
        %v766 = vmul.f32 %v694, %v562
        %v767 = vmul.f32 %v697, %v562
        %v768 = vmul.f32 %v700, %v562
        %v769 = vmul.f32 %v703, %v562
        %v770 = vmul.f32 %v706, %v562
        %v771 = vmul.f32 %v709, %v562
        %v772 = vmul.f32 %v712, %v562
        %v773 = vmul.f32 %v715, %v562
        %v774 = vmul.f32 %v718, %v562
        %v775 = vmul.f32 %v721, %v562
        %v776 = vmul.f32 %v724, %v562
        %v777 = vmul.f32 %v727, %v562
        %v778 = vmul.f32 %v730, %v562
        %v779 = vmul.f32 %v733, %v562
        %v780 = vmul.f32 %v736, %v562
        %v781 = vmul.f32 %v739, %v562
        %v782 = vmul.f32 %v742, %v562
        %v783 = vmul.f32 %v745, %v562
        %v784 = vmul.f32 %v748, %v562
        %v785 = vmul.f32 %v751, %v562
        %v786 = vmul.f32 %v754, %v562
        %v787 = vadd.f32 %v755, 1e-05
        %v788 = vadd.f32 %v756, 1e-05
        %v789 = vadd.f32 %v757, 1e-05
        %v790 = vadd.f32 %v758, 1e-05
        %v791 = vadd.f32 %v759, 1e-05
        %v792 = vadd.f32 %v760, 1e-05
        %v793 = vadd.f32 %v761, 1e-05
        %v794 = vadd.f32 %v762, 1e-05
        %v795 = vadd.f32 %v763, 1e-05
        %v796 = vadd.f32 %v764, 1e-05
        %v797 = vadd.f32 %v765, 1e-05
        %v798 = vadd.f32 %v766, 1e-05
        %v799 = vadd.f32 %v767, 1e-05
        %v800 = vadd.f32 %v768, 1e-05
        %v801 = vadd.f32 %v769, 1e-05
        %v802 = vadd.f32 %v770, 1e-05
        %v803 = vadd.f32 %v771, 1e-05
        %v804 = vadd.f32 %v772, 1e-05
        %v805 = vadd.f32 %v773, 1e-05
        %v806 = vadd.f32 %v774, 1e-05
        %v807 = vadd.f32 %v775, 1e-05
        %v808 = vadd.f32 %v776, 1e-05
        %v809 = vadd.f32 %v777, 1e-05
        %v810 = vadd.f32 %v778, 1e-05
        %v811 = vadd.f32 %v779, 1e-05
        %v812 = vadd.f32 %v780, 1e-05
        %v813 = vadd.f32 %v781, 1e-05
        %v814 = vadd.f32 %v782, 1e-05
        %v815 = vadd.f32 %v783, 1e-05
        %v816 = vadd.f32 %v784, 1e-05
        %v817 = vadd.f32 %v785, 1e-05
        %v818 = vadd.f32 %v786, 1e-05
        %v819 = vrsqrt.pop %v787
        %v820 = vmul.f32 %v819, %v787
        %v821 = vmul.f32 %v820, %v819
        %v822 = vmul.f32 0.5, %v821
        %v823 = vsub.f32 1.5, %v822
        %v824 = vmul.f32 %v819, %v823
        %vm825 = vweird.f32 %v787
        %vm826 = vweird.f32 %v819
        %vm827 = vmor %vm825, %vm826
        %v828 = vsel %vm827, %v819, %v824
        %v829 = vrsqrt.pop %v788
        %v830 = vmul.f32 %v829, %v788
        %v831 = vmul.f32 %v830, %v829
        %v832 = vmul.f32 0.5, %v831
        %v833 = vsub.f32 1.5, %v832
        %v834 = vmul.f32 %v829, %v833
        %vm835 = vweird.f32 %v788
        %vm836 = vweird.f32 %v829
        %vm837 = vmor %vm835, %vm836
        %v838 = vsel %vm837, %v829, %v834
        %v839 = vrsqrt.pop %v789
        %v840 = vmul.f32 %v839, %v789
        %v841 = vmul.f32 %v840, %v839
        %v842 = vmul.f32 0.5, %v841
        %v843 = vsub.f32 1.5, %v842
        %v844 = vmul.f32 %v839, %v843
        %vm845 = vweird.f32 %v789
        %vm846 = vweird.f32 %v839
        %vm847 = vmor %vm845, %vm846
        %v848 = vsel %vm847, %v839, %v844
        %v849 = vrsqrt.pop %v790
        %v850 = vmul.f32 %v849, %v790
        %v851 = vmul.f32 %v850, %v849
        %v852 = vmul.f32 0.5, %v851
        %v853 = vsub.f32 1.5, %v852
        %v854 = vmul.f32 %v849, %v853
        %vm855 = vweird.f32 %v790
        %vm856 = vweird.f32 %v849
        %vm857 = vmor %vm855, %vm856
        %v858 = vsel %vm857, %v849, %v854
        %v859 = vrsqrt.pop %v791
        %v860 = vmul.f32 %v859, %v791
        %v861 = vmul.f32 %v860, %v859
        %v862 = vmul.f32 0.5, %v861
        %v863 = vsub.f32 1.5, %v862
        %v864 = vmul.f32 %v859, %v863
        %vm865 = vweird.f32 %v791
        %vm866 = vweird.f32 %v859
        %vm867 = vmor %vm865, %vm866
        %v868 = vsel %vm867, %v859, %v864
        %v869 = vrsqrt.pop %v792
        %v870 = vmul.f32 %v869, %v792
        %v871 = vmul.f32 %v870, %v869
        %v872 = vmul.f32 0.5, %v871
        %v873 = vsub.f32 1.5, %v872
        %v874 = vmul.f32 %v869, %v873
        %vm875 = vweird.f32 %v792
        %vm876 = vweird.f32 %v869
        %vm877 = vmor %vm875, %vm876
        %v878 = vsel %vm877, %v869, %v874
        %v879 = vrsqrt.pop %v793
        %v880 = vmul.f32 %v879, %v793
        %v881 = vmul.f32 %v880, %v879
        %v882 = vmul.f32 0.5, %v881
        %v883 = vsub.f32 1.5, %v882
        %v884 = vmul.f32 %v879, %v883
        %vm885 = vweird.f32 %v793
        %vm886 = vweird.f32 %v879
        %vm887 = vmor %vm885, %vm886
        %v888 = vsel %vm887, %v879, %v884
        %v889 = vrsqrt.pop %v794
        %v890 = vmul.f32 %v889, %v794
        %v891 = vmul.f32 %v890, %v889
        %v892 = vmul.f32 0.5, %v891
        %v893 = vsub.f32 1.5, %v892
        %v894 = vmul.f32 %v889, %v893
        %vm895 = vweird.f32 %v794
        %vm896 = vweird.f32 %v889
        %vm897 = vmor %vm895, %vm896
        %v898 = vsel %vm897, %v889, %v894
        %v899 = vrsqrt.pop %v795
        %v900 = vmul.f32 %v899, %v795
        %v901 = vmul.f32 %v900, %v899
        %v902 = vmul.f32 0.5, %v901
        %v903 = vsub.f32 1.5, %v902
        %v904 = vmul.f32 %v899, %v903
        %vm905 = vweird.f32 %v795
        %vm906 = vweird.f32 %v899
        %vm907 = vmor %vm905, %vm906
        %v908 = vsel %vm907, %v899, %v904
        %v909 = vrsqrt.pop %v796
        %v910 = vmul.f32 %v909, %v796
        %v911 = vmul.f32 %v910, %v909
        %v912 = vmul.f32 0.5, %v911
        %v913 = vsub.f32 1.5, %v912
        %v914 = vmul.f32 %v909, %v913
        %vm915 = vweird.f32 %v796
        %vm916 = vweird.f32 %v909
        %vm917 = vmor %vm915, %vm916
        %v918 = vsel %vm917, %v909, %v914
        %v919 = vrsqrt.pop %v797
        %v920 = vmul.f32 %v919, %v797
        %v921 = vmul.f32 %v920, %v919
        %v922 = vmul.f32 0.5, %v921
        %v923 = vsub.f32 1.5, %v922
        %v924 = vmul.f32 %v919, %v923
        %vm925 = vweird.f32 %v797
        %vm926 = vweird.f32 %v919
        %vm927 = vmor %vm925, %vm926
        %v928 = vsel %vm927, %v919, %v924
        %v929 = vrsqrt.pop %v798
        %v930 = vmul.f32 %v929, %v798
        %v931 = vmul.f32 %v930, %v929
        %v932 = vmul.f32 0.5, %v931
        %v933 = vsub.f32 1.5, %v932
        %v934 = vmul.f32 %v929, %v933
        %vm935 = vweird.f32 %v798
        %vm936 = vweird.f32 %v929
        %vm937 = vmor %vm935, %vm936
        %v938 = vsel %vm937, %v929, %v934
        %v939 = vrsqrt.pop %v799
        %v940 = vmul.f32 %v939, %v799
        %v941 = vmul.f32 %v940, %v939
        %v942 = vmul.f32 0.5, %v941
        %v943 = vsub.f32 1.5, %v942
        %v944 = vmul.f32 %v939, %v943
        %vm945 = vweird.f32 %v799
        %vm946 = vweird.f32 %v939
        %vm947 = vmor %vm945, %vm946
        %v948 = vsel %vm947, %v939, %v944
        %v949 = vrsqrt.pop %v800
        %v950 = vmul.f32 %v949, %v800
        %v951 = vmul.f32 %v950, %v949
        %v952 = vmul.f32 0.5, %v951
        %v953 = vsub.f32 1.5, %v952
        %v954 = vmul.f32 %v949, %v953
        %vm955 = vweird.f32 %v800
        %vm956 = vweird.f32 %v949
        %vm957 = vmor %vm955, %vm956
        %v958 = vsel %vm957, %v949, %v954
        %v959 = vrsqrt.pop %v801
        %v960 = vmul.f32 %v959, %v801
        %v961 = vmul.f32 %v960, %v959
        %v962 = vmul.f32 0.5, %v961
        %v963 = vsub.f32 1.5, %v962
        %v964 = vmul.f32 %v959, %v963
        %vm965 = vweird.f32 %v801
        %vm966 = vweird.f32 %v959
        %vm967 = vmor %vm965, %vm966
        %v968 = vsel %vm967, %v959, %v964
        %v969 = vrsqrt.pop %v802
        %v970 = vmul.f32 %v969, %v802
        %v971 = vmul.f32 %v970, %v969
        %v972 = vmul.f32 0.5, %v971
        %v973 = vsub.f32 1.5, %v972
        %v974 = vmul.f32 %v969, %v973
        %vm975 = vweird.f32 %v802
        %vm976 = vweird.f32 %v969
        %vm977 = vmor %vm975, %vm976
        %v978 = vsel %vm977, %v969, %v974
        %v979 = vrsqrt.pop %v803
        %v980 = vmul.f32 %v979, %v803
        %v981 = vmul.f32 %v980, %v979
        %v982 = vmul.f32 0.5, %v981
        %v983 = vsub.f32 1.5, %v982
        %v984 = vmul.f32 %v979, %v983
        %vm985 = vweird.f32 %v803
        %vm986 = vweird.f32 %v979
        %vm987 = vmor %vm985, %vm986
        %v988 = vsel %vm987, %v979, %v984
        %v989 = vrsqrt.pop %v804
        %v990 = vmul.f32 %v989, %v804
        %v991 = vmul.f32 %v990, %v989
        %v992 = vmul.f32 0.5, %v991
        %v993 = vsub.f32 1.5, %v992
        %v994 = vmul.f32 %v989, %v993
        %vm995 = vweird.f32 %v804
        %vm996 = vweird.f32 %v989
        %vm997 = vmor %vm995, %vm996
        %v998 = vsel %vm997, %v989, %v994
        %v999 = vrsqrt.pop %v805
        %v1000 = vmul.f32 %v999, %v805
        %v1001 = vmul.f32 %v1000, %v999
        %v1002 = vmul.f32 0.5, %v1001
        %v1003 = vsub.f32 1.5, %v1002
        %v1004 = vmul.f32 %v999, %v1003
        %vm1005 = vweird.f32 %v805
        %vm1006 = vweird.f32 %v999
        %vm1007 = vmor %vm1005, %vm1006
        %v1008 = vsel %vm1007, %v999, %v1004
        %v1009 = vrsqrt.pop %v806
        %v1010 = vmul.f32 %v1009, %v806
        %v1011 = vmul.f32 %v1010, %v1009
        %v1012 = vmul.f32 0.5, %v1011
        %v1013 = vsub.f32 1.5, %v1012
        %v1014 = vmul.f32 %v1009, %v1013
        %vm1015 = vweird.f32 %v806
        %vm1016 = vweird.f32 %v1009
        %vm1017 = vmor %vm1015, %vm1016
        %v1018 = vsel %vm1017, %v1009, %v1014
        %v1019 = vrsqrt.pop %v807
        %v1020 = vmul.f32 %v1019, %v807
        %v1021 = vmul.f32 %v1020, %v1019
        %v1022 = vmul.f32 0.5, %v1021
        %v1023 = vsub.f32 1.5, %v1022
        %v1024 = vmul.f32 %v1019, %v1023
        %vm1025 = vweird.f32 %v807
        %vm1026 = vweird.f32 %v1019
        %vm1027 = vmor %vm1025, %vm1026
        %v1028 = vsel %vm1027, %v1019, %v1024
        %v1029 = vrsqrt.pop %v808
        %v1030 = vmul.f32 %v1029, %v808
        %v1031 = vmul.f32 %v1030, %v1029
        %v1032 = vmul.f32 0.5, %v1031
        %v1033 = vsub.f32 1.5, %v1032
        %v1034 = vmul.f32 %v1029, %v1033
        %vm1035 = vweird.f32 %v808
        %vm1036 = vweird.f32 %v1029
        %vm1037 = vmor %vm1035, %vm1036
        %v1038 = vsel %vm1037, %v1029, %v1034
        %v1039 = vrsqrt.pop %v809
        %v1040 = vmul.f32 %v1039, %v809
        %v1041 = vmul.f32 %v1040, %v1039
        %v1042 = vmul.f32 0.5, %v1041
        %v1043 = vsub.f32 1.5, %v1042
        %v1044 = vmul.f32 %v1039, %v1043
        %vm1045 = vweird.f32 %v809
        %vm1046 = vweird.f32 %v1039
        %vm1047 = vmor %vm1045, %vm1046
        %v1048 = vsel %vm1047, %v1039, %v1044
        %v1049 = vrsqrt.pop %v810
        %v1050 = vmul.f32 %v1049, %v810
        %v1051 = vmul.f32 %v1050, %v1049
        %v1052 = vmul.f32 0.5, %v1051
        %v1053 = vsub.f32 1.5, %v1052
        %v1054 = vmul.f32 %v1049, %v1053
        %vm1055 = vweird.f32 %v810
        %vm1056 = vweird.f32 %v1049
        %vm1057 = vmor %vm1055, %vm1056
        %v1058 = vsel %vm1057, %v1049, %v1054
        %v1059 = vrsqrt.pop %v811
        %v1060 = vmul.f32 %v1059, %v811
        %v1061 = vmul.f32 %v1060, %v1059
        %v1062 = vmul.f32 0.5, %v1061
        %v1063 = vsub.f32 1.5, %v1062
        %v1064 = vmul.f32 %v1059, %v1063
        %vm1065 = vweird.f32 %v811
        %vm1066 = vweird.f32 %v1059
        %vm1067 = vmor %vm1065, %vm1066
        %v1068 = vsel %vm1067, %v1059, %v1064
        %v1069 = vrsqrt.pop %v812
        %v1070 = vmul.f32 %v1069, %v812
        %v1071 = vmul.f32 %v1070, %v1069
        %v1072 = vmul.f32 0.5, %v1071
        %v1073 = vsub.f32 1.5, %v1072
        %v1074 = vmul.f32 %v1069, %v1073
        %vm1075 = vweird.f32 %v812
        %vm1076 = vweird.f32 %v1069
        %vm1077 = vmor %vm1075, %vm1076
        %v1078 = vsel %vm1077, %v1069, %v1074
        %v1079 = vrsqrt.pop %v813
        %v1080 = vmul.f32 %v1079, %v813
        %v1081 = vmul.f32 %v1080, %v1079
        %v1082 = vmul.f32 0.5, %v1081
        %v1083 = vsub.f32 1.5, %v1082
        %v1084 = vmul.f32 %v1079, %v1083
        %vm1085 = vweird.f32 %v813
        %vm1086 = vweird.f32 %v1079
        %vm1087 = vmor %vm1085, %vm1086
        %v1088 = vsel %vm1087, %v1079, %v1084
        %v1089 = vrsqrt.pop %v814
        %v1090 = vmul.f32 %v1089, %v814
        %v1091 = vmul.f32 %v1090, %v1089
        %v1092 = vmul.f32 0.5, %v1091
        %v1093 = vsub.f32 1.5, %v1092
        %v1094 = vmul.f32 %v1089, %v1093
        %vm1095 = vweird.f32 %v814
        %vm1096 = vweird.f32 %v1089
        %vm1097 = vmor %vm1095, %vm1096
        %v1098 = vsel %vm1097, %v1089, %v1094
        %v1099 = vrsqrt.pop %v815
        %v1100 = vmul.f32 %v1099, %v815
        %v1101 = vmul.f32 %v1100, %v1099
        %v1102 = vmul.f32 0.5, %v1101
        %v1103 = vsub.f32 1.5, %v1102
        %v1104 = vmul.f32 %v1099, %v1103
        %vm1105 = vweird.f32 %v815
        %vm1106 = vweird.f32 %v1099
        %vm1107 = vmor %vm1105, %vm1106
        %v1108 = vsel %vm1107, %v1099, %v1104
        %v1109 = vrsqrt.pop %v816
        %v1110 = vmul.f32 %v1109, %v816
        %v1111 = vmul.f32 %v1110, %v1109
        %v1112 = vmul.f32 0.5, %v1111
        %v1113 = vsub.f32 1.5, %v1112
        %v1114 = vmul.f32 %v1109, %v1113
        %vm1115 = vweird.f32 %v816
        %vm1116 = vweird.f32 %v1109
        %vm1117 = vmor %vm1115, %vm1116
        %v1118 = vsel %vm1117, %v1109, %v1114
        %v1119 = vrsqrt.pop %v817
        %v1120 = vmul.f32 %v1119, %v817
        %v1121 = vmul.f32 %v1120, %v1119
        %v1122 = vmul.f32 0.5, %v1121
        %v1123 = vsub.f32 1.5, %v1122
        %v1124 = vmul.f32 %v1119, %v1123
        %vm1125 = vweird.f32 %v817
        %vm1126 = vweird.f32 %v1119
        %vm1127 = vmor %vm1125, %vm1126
        %v1128 = vsel %vm1127, %v1119, %v1124
        %v1129 = vrsqrt.pop %v818
        %v1130 = vmul.f32 %v1129, %v818
        %v1131 = vmul.f32 %v1130, %v1129
        %v1132 = vmul.f32 0.5, %v1131
        %v1133 = vsub.f32 1.5, %v1132
        %v1134 = vmul.f32 %v1129, %v1133
        %vm1135 = vweird.f32 %v818
        %vm1136 = vweird.f32 %v1129
        %vm1137 = vmor %vm1135, %vm1136
        %v1138 = vsel %vm1137, %v1129, %v1134
        %v1139 = vmul.f32 %v595, %v828
        %v1140 = vmul.f32 %v596, %v838
        %v1141 = vmul.f32 %v597, %v848
        %v1142 = vmul.f32 %v598, %v858
        %v1143 = vmul.f32 %v599, %v868
        %v1144 = vmul.f32 %v600, %v878
        %v1145 = vmul.f32 %v601, %v888
        %v1146 = vmul.f32 %v602, %v898
        %v1147 = vmul.f32 %v603, %v908
        %v1148 = vmul.f32 %v604, %v918
        %v1149 = vmul.f32 %v605, %v928
        %v1150 = vmul.f32 %v606, %v938
        %v1151 = vmul.f32 %v607, %v948
        %v1152 = vmul.f32 %v608, %v958
        %v1153 = vmul.f32 %v609, %v968
        %v1154 = vmul.f32 %v610, %v978
        %v1155 = vmul.f32 %v611, %v988
        %v1156 = vmul.f32 %v612, %v998
        %v1157 = vmul.f32 %v613, %v1008
        %v1158 = vmul.f32 %v614, %v1018
        %v1159 = vmul.f32 %v615, %v1028
        %v1160 = vmul.f32 %v616, %v1038
        %v1161 = vmul.f32 %v617, %v1048
        %v1162 = vmul.f32 %v618, %v1058
        %v1163 = vmul.f32 %v619, %v1068
        %v1164 = vmul.f32 %v620, %v1078
        %v1165 = vmul.f32 %v621, %v1088
        %v1166 = vmul.f32 %v622, %v1098
        %v1167 = vmul.f32 %v623, %v1108
        %v1168 = vmul.f32 %v624, %v1118
        %v1169 = vmul.f32 %v625, %v1128
        %v1170 = vmul.f32 %v626, %v1138
        %v1171 = vld [vmem:[#allocation5] sm:$0x1]
        %v1173 = vperm.slane %v1171, 0
        %v1175 = vmul.f32 %v1139, %v1173
        %v1176 = vmul.f32 %v1140, %v1173
        %v1177 = vmul.f32 %v1141, %v1173
        %v1178 = vmul.f32 %v1142, %v1173
        %v1179 = vmul.f32 %v1143, %v1173
        %v1180 = vmul.f32 %v1144, %v1173
        %v1181 = vmul.f32 %v1145, %v1173
        %v1182 = vmul.f32 %v1146, %v1173
        %v1183 = vmul.f32 %v1147, %v1173
        %v1184 = vmul.f32 %v1148, %v1173
        %v1185 = vmul.f32 %v1149, %v1173
        %v1186 = vmul.f32 %v1150, %v1173
        %v1187 = vmul.f32 %v1151, %v1173
        %v1188 = vmul.f32 %v1152, %v1173
        %v1189 = vmul.f32 %v1153, %v1173
        %v1190 = vmul.f32 %v1154, %v1173
        %v1191 = vmul.f32 %v1155, %v1173
        %v1192 = vmul.f32 %v1156, %v1173
        %v1193 = vmul.f32 %v1157, %v1173
        %v1194 = vmul.f32 %v1158, %v1173
        %v1195 = vmul.f32 %v1159, %v1173
        %v1196 = vmul.f32 %v1160, %v1173
        %v1197 = vmul.f32 %v1161, %v1173
        %v1198 = vmul.f32 %v1162, %v1173
        %v1199 = vmul.f32 %v1163, %v1173
        %v1200 = vmul.f32 %v1164, %v1173
        %v1201 = vmul.f32 %v1165, %v1173
        %v1202 = vmul.f32 %v1166, %v1173
        %v1203 = vmul.f32 %v1167, %v1173
        %v1204 = vmul.f32 %v1168, %v1173
        %v1205 = vmul.f32 %v1169, %v1173
        %v1206 = vmul.f32 %v1170, %v1173
        %v1207 = vld [vmem:[%s2] sm:$0x1]
        %v1209 = vperm.slane %v1207, 0
        %v1211 = vadd.f32 %v1175, %v1209
        %v1212 = vadd.f32 %v1176, %v1209
        %v1213 = vadd.f32 %v1177, %v1209
        %v1214 = vadd.f32 %v1178, %v1209
        %v1215 = vadd.f32 %v1179, %v1209
        %v1216 = vadd.f32 %v1180, %v1209
        %v1217 = vadd.f32 %v1181, %v1209
        %v1218 = vadd.f32 %v1182, %v1209
        %v1219 = vadd.f32 %v1183, %v1209
        %v1220 = vadd.f32 %v1184, %v1209
        %v1221 = vadd.f32 %v1185, %v1209
        %v1222 = vadd.f32 %v1186, %v1209
        %v1223 = vadd.f32 %v1187, %v1209
        %v1224 = vadd.f32 %v1188, %v1209
        %v1225 = vadd.f32 %v1189, %v1209
        %v1226 = vadd.f32 %v1190, %v1209
        %v1227 = vadd.f32 %v1191, %v1209
        %v1228 = vadd.f32 %v1192, %v1209
        %v1229 = vadd.f32 %v1193, %v1209
        %v1230 = vadd.f32 %v1194, %v1209
        %v1231 = vadd.f32 %v1195, %v1209
        %v1232 = vadd.f32 %v1196, %v1209
        %v1233 = vadd.f32 %v1197, %v1209
        %v1234 = vadd.f32 %v1198, %v1209
        %v1235 = vadd.f32 %v1199, %v1209
        %v1236 = vadd.f32 %v1200, %v1209
        %v1237 = vadd.f32 %v1201, %v1209
        %v1238 = vadd.f32 %v1202, %v1209
        %v1239 = vadd.f32 %v1203, %v1209
        %v1240 = vadd.f32 %v1204, %v1209
        %v1241 = vadd.f32 %v1205, %v1209
        %v1242 = vadd.f32 %v1206, %v1209
        %v1243 = vpack.c.bf16 %v1212, %v1211
        %v1244 = vpack.c.bf16 %v1214, %v1213
        %v1245 = vpack.c.bf16 %v1216, %v1215
        %v1246 = vpack.c.bf16 %v1218, %v1217
        %v1247 = vpack.c.bf16 %v1220, %v1219
        %v1248 = vpack.c.bf16 %v1222, %v1221
        %v1249 = vpack.c.bf16 %v1224, %v1223
        %v1250 = vpack.c.bf16 %v1226, %v1225
        %v1251 = vpack.c.bf16 %v1228, %v1227
        %v1252 = vpack.c.bf16 %v1230, %v1229
        %v1253 = vpack.c.bf16 %v1232, %v1231
        %v1254 = vpack.c.bf16 %v1234, %v1233
        %v1255 = vpack.c.bf16 %v1236, %v1235
        %v1256 = vpack.c.bf16 %v1238, %v1237
        %v1257 = vpack.c.bf16 %v1240, %v1239
        %v1258 = vpack.c.bf16 %v1242, %v1241
        %v1259 = vld [vmem:[#allocation7] sm:$0xf]
        %v1260 = vld [vmem:[#allocation7 + $0x4] sm:$0xf]
        %v1261 = vld [vmem:[#allocation7 + $0x8] sm:$0xf]
        %v1262 = vld [vmem:[#allocation7 + $0xc] sm:$0xf]
        %v1263 = vld [vmem:[%s4] sm:$0x1]
        %v1265 = vperm.slane %v1263, 0
        %v1271 = vunpack.c.l.b16 %v1259
        %v1272 = vunpack.c.l.b16 %v1260
        %v1273 = vunpack.c.l.b16 %v1261
        %v1274 = vunpack.c.l.b16 %v1262
        %v1275 = vpack.c.b16 %v1272, %v1271
        %v1276 = vpack.c.b16 %v1274, %v1273
        %v1280 = vsel %vm459, %v1243, 0
        %v1283 = vsel %vm459, %v1244, 0
        %v1286 = vsel %vm459, %v1245, 0
        %v1289 = vsel %vm459, %v1246, 0
        %v1292 = vsel %vm459, %v1247, 0
        %v1295 = vsel %vm459, %v1248, 0
        %v1298 = vsel %vm459, %v1249, 0
        %v1301 = vsel %vm459, %v1250, 0
        %v1304 = vsel %vm459, %v1251, 0
        %v1307 = vsel %vm459, %v1252, 0
        %v1310 = vsel %vm459, %v1253, 0
        %v1313 = vsel %vm459, %v1254, 0
        %v1316 = vsel %vm459, %v1255, 0
        %v1319 = vsel %vm459, %v1256, 0
        %v1322 = vsel %vm459, %v1257, 0
        %v1325 = vsel %vm459, %v1258, 0
        %1327 = vmatpush.bf16.msra.mxu0 0
        %1328 = vmatpush.bf16.msra.mxu0 0
        %1329 = vmatpush.bf16.msra.mxu0 0
        %1330 = vmatpush.bf16.msra.mxu0 0
        %1331 = vmatpush.bf16.msra.mxu0 0
        %1332 = vmatpush.bf16.msra.mxu0 0
        %1333 = vmatpush.bf16.msra.mxu0 %v1276
        %1334 = vmatpush.bf16.msra.mxu0 %v1275
        %1335 = vmatmul.bf16.gmra.mxu0 %v1280
        %v1336 = vpop.f32.mrf.mxu0
        %v1337 = vadd.f32 %v1265, %v1336
        %v1338 = vpop.f32.mrf.mxu0
        %v1339 = vadd.f32 %v1265, %v1338
        %1340 = vmatmul.bf16.gmra.mxu0 %v1283
        %v1341 = vpop.f32.mrf.mxu0
        %v1342 = vadd.f32 %v1265, %v1341
        %v1343 = vpop.f32.mrf.mxu0
        %v1344 = vadd.f32 %v1265, %v1343
        %1345 = vmatmul.bf16.gmra.mxu0 %v1286
        %v1346 = vpop.f32.mrf.mxu0
        %v1347 = vadd.f32 %v1265, %v1346
        %v1348 = vpop.f32.mrf.mxu0
        %v1349 = vadd.f32 %v1265, %v1348
        %1350 = vmatmul.bf16.gmra.mxu0 %v1289
        %v1351 = vpop.f32.mrf.mxu0
        %v1352 = vadd.f32 %v1265, %v1351
        %v1353 = vpop.f32.mrf.mxu0
        %v1354 = vadd.f32 %v1265, %v1353
        %1355 = vmatmul.bf16.gmra.mxu0 %v1292
        %v1356 = vpop.f32.mrf.mxu0
        %v1357 = vadd.f32 %v1265, %v1356
        %v1358 = vpop.f32.mrf.mxu0
        %v1359 = vadd.f32 %v1265, %v1358
        %1360 = vmatmul.bf16.gmra.mxu0 %v1295
        %v1361 = vpop.f32.mrf.mxu0
        %v1362 = vadd.f32 %v1265, %v1361
        %v1363 = vpop.f32.mrf.mxu0
        %v1364 = vadd.f32 %v1265, %v1363
        %1365 = vmatmul.bf16.gmra.mxu0 %v1298
        %v1366 = vpop.f32.mrf.mxu0
        %v1367 = vadd.f32 %v1265, %v1366
        %v1368 = vpop.f32.mrf.mxu0
        %v1369 = vadd.f32 %v1265, %v1368
        %1370 = vmatmul.bf16.gmra.mxu0 %v1301
        %v1371 = vpop.f32.mrf.mxu0
        %v1372 = vadd.f32 %v1265, %v1371
        %v1373 = vpop.f32.mrf.mxu0
        %v1374 = vadd.f32 %v1265, %v1373
        %1375 = vmatmul.bf16.gmra.mxu0 %v1304
        %v1376 = vpop.f32.mrf.mxu0
        %v1377 = vadd.f32 %v1265, %v1376
        %v1378 = vpop.f32.mrf.mxu0
        %v1379 = vadd.f32 %v1265, %v1378
        %1380 = vmatmul.bf16.gmra.mxu0 %v1307
        %v1381 = vpop.f32.mrf.mxu0
        %v1382 = vadd.f32 %v1265, %v1381
        %v1383 = vpop.f32.mrf.mxu0
        %v1384 = vadd.f32 %v1265, %v1383
        %1385 = vmatmul.bf16.gmra.mxu0 %v1310
        %v1386 = vpop.f32.mrf.mxu0
        %v1387 = vadd.f32 %v1265, %v1386
        %v1388 = vpop.f32.mrf.mxu0
        %v1389 = vadd.f32 %v1265, %v1388
        %1390 = vmatmul.bf16.gmra.mxu0 %v1313
        %v1391 = vpop.f32.mrf.mxu0
        %v1392 = vadd.f32 %v1265, %v1391
        %v1393 = vpop.f32.mrf.mxu0
        %v1394 = vadd.f32 %v1265, %v1393
        %1395 = vmatmul.bf16.gmra.mxu0 %v1316
        %v1396 = vpop.f32.mrf.mxu0
        %v1397 = vadd.f32 %v1265, %v1396
        %v1398 = vpop.f32.mrf.mxu0
        %v1399 = vadd.f32 %v1265, %v1398
        %1400 = vmatmul.bf16.gmra.mxu0 %v1319
        %v1401 = vpop.f32.mrf.mxu0
        %v1402 = vadd.f32 %v1265, %v1401
        %v1403 = vpop.f32.mrf.mxu0
        %v1404 = vadd.f32 %v1265, %v1403
        %1405 = vmatmul.bf16.gmra.mxu0 %v1322
        %v1406 = vpop.f32.mrf.mxu0
        %v1407 = vadd.f32 %v1265, %v1406
        %v1408 = vpop.f32.mrf.mxu0
        %v1409 = vadd.f32 %v1265, %v1408
        %1410 = vmatmul.bf16.gmra.mxu0 %v1325
        %v1411 = vpop.f32.mrf.mxu0
        %v1412 = vadd.f32 %v1265, %v1411
        %v1413 = vpop.f32.mrf.mxu0
        %v1414 = vadd.f32 %v1265, %v1413
        %1415 = vdwg.mxu0
        %v1416 = vpack.c.bf16 %v1337, %v1337
        %v1417 = vpack.c.bf16 %v1339, %v1339
        %v1418 = vpack.c.bf16 %v1342, %v1342
        %v1419 = vpack.c.bf16 %v1344, %v1344
        %v1420 = vpack.c.bf16 %v1347, %v1347
        %v1421 = vpack.c.bf16 %v1349, %v1349
        %v1422 = vpack.c.bf16 %v1352, %v1352
        %v1423 = vpack.c.bf16 %v1354, %v1354
        %v1424 = vpack.c.bf16 %v1357, %v1357
        %v1425 = vpack.c.bf16 %v1359, %v1359
        %v1426 = vpack.c.bf16 %v1362, %v1362
        %v1427 = vpack.c.bf16 %v1364, %v1364
        %v1428 = vpack.c.bf16 %v1367, %v1367
        %v1429 = vpack.c.bf16 %v1369, %v1369
        %v1430 = vpack.c.bf16 %v1372, %v1372
        %v1431 = vpack.c.bf16 %v1374, %v1374
        %v1432 = vpack.c.bf16 %v1377, %v1377
        %v1433 = vpack.c.bf16 %v1379, %v1379
        %v1434 = vpack.c.bf16 %v1382, %v1382
        %v1435 = vpack.c.bf16 %v1384, %v1384
        %v1436 = vpack.c.bf16 %v1387, %v1387
        %v1437 = vpack.c.bf16 %v1389, %v1389
        %v1438 = vpack.c.bf16 %v1392, %v1392
        %v1439 = vpack.c.bf16 %v1394, %v1394
        %v1440 = vpack.c.bf16 %v1397, %v1397
        %v1441 = vpack.c.bf16 %v1399, %v1399
        %v1442 = vpack.c.bf16 %v1402, %v1402
        %v1443 = vpack.c.bf16 %v1404, %v1404
        %v1444 = vpack.c.bf16 %v1407, %v1407
        %v1445 = vpack.c.bf16 %v1409, %v1409
        %v1446 = vpack.c.bf16 %v1412, %v1412
        %v1447 = vpack.c.bf16 %v1414, %v1414
        %v1448 = vld [vmem:[#allocation8] sm:$0xff]
        %v1449 = vld [vmem:[#allocation8 + $0x8] sm:$0xff]
        %v1450 = vld [vmem:[#allocation8 + $0x10] sm:$0xff]
        %v1451 = vld [vmem:[#allocation8 + $0x18] sm:$0xff]
        %v1452 = vld [vmem:[#allocation8 + $0x20] sm:$0xff]
        %v1453 = vld [vmem:[#allocation8 + $0x28] sm:$0xff]
        %v1454 = vld [vmem:[#allocation8 + $0x30] sm:$0xff]
        %v1455 = vld [vmem:[#allocation8 + $0x38] sm:$0xff]
        %v1464 = vunpack.c.l.b16 %v1416
        %v1465 = vunpack.c.l.b16 %v1417
        %v1466 = vunpack.c.l.b16 %v1418
        %v1467 = vunpack.c.l.b16 %v1419
        %v1468 = vunpack.c.l.b16 %v1420
        %v1469 = vunpack.c.l.b16 %v1421
        %v1470 = vunpack.c.l.b16 %v1422
        %v1471 = vunpack.c.l.b16 %v1423
        %v1472 = vpack.c.b16 %v1465, %v1464
        %v1473 = vpack.c.b16 %v1467, %v1466
        %v1474 = vpack.c.b16 %v1469, %v1468
        %v1475 = vpack.c.b16 %v1471, %v1470
        %1476 = vrot.lane.b32.xlu0 %v1472, 96
        %v1477 = vpop.permute.xlu0 %1476
        %1478 = vrot.lane.b32.xlu0 %v1473, 96
        %v1479 = vpop.permute.xlu0 %1478
        %1480 = vrot.lane.b32.xlu0 %v1474, 96
        %v1481 = vpop.permute.xlu0 %1480
        %1482 = vrot.lane.b32.xlu0 %v1475, 96
        %v1483 = vpop.permute.xlu0 %1482
        %vm1484 = vcmask 64512
        %v1486 = vsel %vm1484, %v1472, 0
        %v1489 = vsel %vm1484, %v1473, 0
        %v1492 = vsel %vm1484, %v1474, 0
        %v1495 = vsel %vm1484, %v1475, 0
        %v1498 = vsel %vm1484, %v1477, 0
        %v1501 = vsel %vm1484, %v1479, 0
        %v1504 = vsel %vm1484, %v1481, 0
        %v1507 = vsel %vm1484, %v1483, 0
        %1509 = vmatpush.bf16.xpose.msra.mxu0 0
        %1510 = vmatpush.bf16.xpose.msra.mxu0 0
        %1511 = vmatpush.bf16.xpose.msra.mxu0 0
        %1512 = vmatpush.bf16.xpose.msra.mxu0 0
        %1513 = vmatpush.bf16.xpose.msra.mxu0 %v1507
        %1514 = vmatpush.bf16.xpose.msra.mxu0 %v1504
        %1515 = vmatpush.bf16.xpose.msra.mxu0 %v1501
        %1516 = vmatpush.bf16.xpose.msra.mxu0 %v1498
        %1517 = vmatmul.bf16.gmra.mxu0 %v1486
        %v1518 = vpop.f32.mrf.mxu0
        %v1519 = vadd.f32 %v1448, %v1518
        %v1520 = vpop.f32.mrf.mxu0
        %v1521 = vadd.f32 %v1449, %v1520
        %1522 = vmatmul.bf16.gmra.mxu0 %v1489
        %v1523 = vpop.f32.mrf.mxu0
        %v1524 = vadd.f32 %v1450, %v1523
        %v1525 = vpop.f32.mrf.mxu0
        %v1526 = vadd.f32 %v1451, %v1525
        %1527 = vmatmul.bf16.gmra.mxu0 %v1492
        %v1528 = vpop.f32.mrf.mxu0
        %v1529 = vadd.f32 %v1452, %v1528
        %v1530 = vpop.f32.mrf.mxu0
        %v1531 = vadd.f32 %v1453, %v1530
        %1532 = vmatmul.bf16.gmra.mxu0 %v1495
        %v1533 = vpop.f32.mrf.mxu0
        %v1534 = vadd.f32 %v1454, %v1533
        %v1535 = vpop.f32.mrf.mxu0
        %v1536 = vadd.f32 %v1455, %v1535
        %1537 = vdwg.mxu0
        %v1546 = vunpack.c.l.b16 %v1424
        %v1547 = vunpack.c.l.b16 %v1425
        %v1548 = vunpack.c.l.b16 %v1426
        %v1549 = vunpack.c.l.b16 %v1427
        %v1550 = vunpack.c.l.b16 %v1428
        %v1551 = vunpack.c.l.b16 %v1429
        %v1552 = vunpack.c.l.b16 %v1430
        %v1553 = vunpack.c.l.b16 %v1431
        %v1554 = vpack.c.b16 %v1547, %v1546
        %v1555 = vpack.c.b16 %v1549, %v1548
        %v1556 = vpack.c.b16 %v1551, %v1550
        %v1557 = vpack.c.b16 %v1553, %v1552
        %1558 = vrot.lane.b32.xlu0 %v1554, 96
        %v1559 = vpop.permute.xlu0 %1558
        %1560 = vrot.lane.b32.xlu0 %v1555, 96
        %v1561 = vpop.permute.xlu0 %1560
        %1562 = vrot.lane.b32.xlu0 %v1556, 96
        %v1563 = vpop.permute.xlu0 %1562
        %1564 = vrot.lane.b32.xlu0 %v1557, 96
        %v1565 = vpop.permute.xlu0 %1564
        %v1567 = vsel %vm1484, %v1554, 0
        %v1570 = vsel %vm1484, %v1555, 0
        %v1573 = vsel %vm1484, %v1556, 0
        %v1576 = vsel %vm1484, %v1557, 0
        %v1579 = vsel %vm1484, %v1559, 0
        %v1582 = vsel %vm1484, %v1561, 0
        %v1585 = vsel %vm1484, %v1563, 0
        %v1588 = vsel %vm1484, %v1565, 0
        %1590 = vmatpush.bf16.xpose.msra.mxu0 0
        %1591 = vmatpush.bf16.xpose.msra.mxu0 0
        %1592 = vmatpush.bf16.xpose.msra.mxu0 0
        %1593 = vmatpush.bf16.xpose.msra.mxu0 0
        %1594 = vmatpush.bf16.xpose.msra.mxu0 %v1588
        %1595 = vmatpush.bf16.xpose.msra.mxu0 %v1585
        %1596 = vmatpush.bf16.xpose.msra.mxu0 %v1582
        %1597 = vmatpush.bf16.xpose.msra.mxu0 %v1579
        %1598 = vmatmul.bf16.gmra.mxu0 %v1567
        %v1599 = vpop.f32.mrf.mxu0
        %v1600 = vadd.f32 %v1448, %v1599
        %v1601 = vpop.f32.mrf.mxu0
        %v1602 = vadd.f32 %v1449, %v1601
        %1603 = vmatmul.bf16.gmra.mxu0 %v1570
        %v1604 = vpop.f32.mrf.mxu0
        %v1605 = vadd.f32 %v1450, %v1604
        %v1606 = vpop.f32.mrf.mxu0
        %v1607 = vadd.f32 %v1451, %v1606
        %1608 = vmatmul.bf16.gmra.mxu0 %v1573
        %v1609 = vpop.f32.mrf.mxu0
        %v1610 = vadd.f32 %v1452, %v1609
        %v1611 = vpop.f32.mrf.mxu0
        %v1612 = vadd.f32 %v1453, %v1611
        %1613 = vmatmul.bf16.gmra.mxu0 %v1576
        %v1614 = vpop.f32.mrf.mxu0
        %v1615 = vadd.f32 %v1454, %v1614
        %v1616 = vpop.f32.mrf.mxu0
        %v1617 = vadd.f32 %v1455, %v1616
        %1618 = vdwg.mxu0
        %v1627 = vunpack.c.l.b16 %v1432
        %v1628 = vunpack.c.l.b16 %v1433
        %v1629 = vunpack.c.l.b16 %v1434
        %v1630 = vunpack.c.l.b16 %v1435
        %v1631 = vunpack.c.l.b16 %v1436
        %v1632 = vunpack.c.l.b16 %v1437
        %v1633 = vunpack.c.l.b16 %v1438
        %v1634 = vunpack.c.l.b16 %v1439
        %v1635 = vpack.c.b16 %v1628, %v1627
        %v1636 = vpack.c.b16 %v1630, %v1629
        %v1637 = vpack.c.b16 %v1632, %v1631
        %v1638 = vpack.c.b16 %v1634, %v1633
        %1639 = vrot.lane.b32.xlu0 %v1635, 96
        %v1640 = vpop.permute.xlu0 %1639
        %1641 = vrot.lane.b32.xlu0 %v1636, 96
        %v1642 = vpop.permute.xlu0 %1641
        %1643 = vrot.lane.b32.xlu0 %v1637, 96
        %v1644 = vpop.permute.xlu0 %1643
        %1645 = vrot.lane.b32.xlu0 %v1638, 96
        %v1646 = vpop.permute.xlu0 %1645
        %v1648 = vsel %vm1484, %v1635, 0
        %v1651 = vsel %vm1484, %v1636, 0
        %v1654 = vsel %vm1484, %v1637, 0
        %v1657 = vsel %vm1484, %v1638, 0
        %v1660 = vsel %vm1484, %v1640, 0
        %v1663 = vsel %vm1484, %v1642, 0
        %v1666 = vsel %vm1484, %v1644, 0
        %v1669 = vsel %vm1484, %v1646, 0
        %1671 = vmatpush.bf16.xpose.msra.mxu0 0
        %1672 = vmatpush.bf16.xpose.msra.mxu0 0
        %1673 = vmatpush.bf16.xpose.msra.mxu0 0
        %1674 = vmatpush.bf16.xpose.msra.mxu0 0
        %1675 = vmatpush.bf16.xpose.msra.mxu0 %v1669
        %1676 = vmatpush.bf16.xpose.msra.mxu0 %v1666
        %1677 = vmatpush.bf16.xpose.msra.mxu0 %v1663
        %1678 = vmatpush.bf16.xpose.msra.mxu0 %v1660
        %1679 = vmatmul.bf16.gmra.mxu0 %v1648
        %v1680 = vpop.f32.mrf.mxu0
        %v1681 = vadd.f32 %v1448, %v1680
        %v1682 = vpop.f32.mrf.mxu0
        %v1683 = vadd.f32 %v1449, %v1682
        %1684 = vmatmul.bf16.gmra.mxu0 %v1651
        %v1685 = vpop.f32.mrf.mxu0
        %v1686 = vadd.f32 %v1450, %v1685
        %v1687 = vpop.f32.mrf.mxu0
        %v1688 = vadd.f32 %v1451, %v1687
        %1689 = vmatmul.bf16.gmra.mxu0 %v1654
        %v1690 = vpop.f32.mrf.mxu0
        %v1691 = vadd.f32 %v1452, %v1690
        %v1692 = vpop.f32.mrf.mxu0
        %v1693 = vadd.f32 %v1453, %v1692
        %1694 = vmatmul.bf16.gmra.mxu0 %v1657
        %v1695 = vpop.f32.mrf.mxu0
        %v1696 = vadd.f32 %v1454, %v1695
        %v1697 = vpop.f32.mrf.mxu0
        %v1698 = vadd.f32 %v1455, %v1697
        %1699 = vdwg.mxu0
        %v1708 = vunpack.c.l.b16 %v1440
        %v1709 = vunpack.c.l.b16 %v1441
        %v1710 = vunpack.c.l.b16 %v1442
        %v1711 = vunpack.c.l.b16 %v1443
        %v1712 = vunpack.c.l.b16 %v1444
        %v1713 = vunpack.c.l.b16 %v1445
        %v1714 = vunpack.c.l.b16 %v1446
        %v1715 = vunpack.c.l.b16 %v1447
        %v1716 = vpack.c.b16 %v1709, %v1708
        %v1717 = vpack.c.b16 %v1711, %v1710
        %v1718 = vpack.c.b16 %v1713, %v1712
        %v1719 = vpack.c.b16 %v1715, %v1714
        %1720 = vrot.lane.b32.xlu0 %v1716, 96
        %v1721 = vpop.permute.xlu0 %1720
        %1722 = vrot.lane.b32.xlu0 %v1717, 96
        %v1723 = vpop.permute.xlu0 %1722
        %1724 = vrot.lane.b32.xlu0 %v1718, 96
        %v1725 = vpop.permute.xlu0 %1724
        %1726 = vrot.lane.b32.xlu0 %v1719, 96
        %v1727 = vpop.permute.xlu0 %1726
        %v1729 = vsel %vm1484, %v1716, 0
        %v1732 = vsel %vm1484, %v1717, 0
        %v1735 = vsel %vm1484, %v1718, 0
        %v1738 = vsel %vm1484, %v1719, 0
        %v1741 = vsel %vm1484, %v1721, 0
        %v1744 = vsel %vm1484, %v1723, 0
        %v1747 = vsel %vm1484, %v1725, 0
        %v1750 = vsel %vm1484, %v1727, 0
        %1752 = vmatpush.bf16.xpose.msra.mxu0 0
        %1753 = vmatpush.bf16.xpose.msra.mxu0 0
        %1754 = vmatpush.bf16.xpose.msra.mxu0 0
        %1755 = vmatpush.bf16.xpose.msra.mxu0 0
        %1756 = vmatpush.bf16.xpose.msra.mxu0 %v1750
        %1757 = vmatpush.bf16.xpose.msra.mxu0 %v1747
        %1758 = vmatpush.bf16.xpose.msra.mxu0 %v1744
        %1759 = vmatpush.bf16.xpose.msra.mxu0 %v1741
        %1760 = vmatmul.bf16.gmra.mxu0 %v1729
        %v1761 = vpop.f32.mrf.mxu0
        %v1762 = vadd.f32 %v1448, %v1761
        %v1763 = vpop.f32.mrf.mxu0
        %v1764 = vadd.f32 %v1449, %v1763
        %1765 = vmatmul.bf16.gmra.mxu0 %v1732
        %v1766 = vpop.f32.mrf.mxu0
        %v1767 = vadd.f32 %v1450, %v1766
        %v1768 = vpop.f32.mrf.mxu0
        %v1769 = vadd.f32 %v1451, %v1768
        %1770 = vmatmul.bf16.gmra.mxu0 %v1735
        %v1771 = vpop.f32.mrf.mxu0
        %v1772 = vadd.f32 %v1452, %v1771
        %v1773 = vpop.f32.mrf.mxu0
        %v1774 = vadd.f32 %v1453, %v1773
        %1775 = vmatmul.bf16.gmra.mxu0 %v1738
        %v1776 = vpop.f32.mrf.mxu0
        %v1777 = vadd.f32 %v1454, %v1776
        %v1778 = vpop.f32.mrf.mxu0
        %v1779 = vadd.f32 %v1455, %v1778
        %1780 = vdwg.mxu0
        %vm1781 = vcmask 523264
        %v1782 = vsel %vm1781, %v1519, -inf
        %1783 = vmax.xlane.f32.xlu0 %v1782
        %v1784 = vpop.xlane.xlu0 %1783
        %v1785 = vsel %vm1781, %v1521, -inf
        %1786 = vmax.xlane.f32.xlu0 %v1785
        %v1787 = vpop.xlane.xlu0 %1786
        %v1788 = vsel %vm1781, %v1524, -inf
        %1789 = vmax.xlane.f32.xlu0 %v1788
        %v1790 = vpop.xlane.xlu0 %1789
        %v1791 = vsel %vm1781, %v1526, -inf
        %1792 = vmax.xlane.f32.xlu0 %v1791
        %v1793 = vpop.xlane.xlu0 %1792
        %v1794 = vsel %vm1781, %v1529, -inf
        %1795 = vmax.xlane.f32.xlu0 %v1794
        %v1796 = vpop.xlane.xlu0 %1795
        %v1797 = vsel %vm1781, %v1531, -inf
        %1798 = vmax.xlane.f32.xlu0 %v1797
        %v1799 = vpop.xlane.xlu0 %1798
        %v1800 = vsel %vm1781, %v1534, -inf
        %1801 = vmax.xlane.f32.xlu0 %v1800
        %v1802 = vpop.xlane.xlu0 %1801
        %v1803 = vsel %vm1781, %v1536, -inf
        %1804 = vmax.xlane.f32.xlu0 %v1803
        %v1805 = vpop.xlane.xlu0 %1804
        %v1806 = vsel %vm1781, %v1600, -inf
        %1807 = vmax.xlane.f32.xlu0 %v1806
        %v1808 = vpop.xlane.xlu0 %1807
        %v1809 = vsel %vm1781, %v1602, -inf
        %1810 = vmax.xlane.f32.xlu0 %v1809
        %v1811 = vpop.xlane.xlu0 %1810
        %v1812 = vsel %vm1781, %v1605, -inf
        %1813 = vmax.xlane.f32.xlu0 %v1812
        %v1814 = vpop.xlane.xlu0 %1813
        %v1815 = vsel %vm1781, %v1607, -inf
        %1816 = vmax.xlane.f32.xlu0 %v1815
        %v1817 = vpop.xlane.xlu0 %1816
        %v1818 = vsel %vm1781, %v1610, -inf
        %1819 = vmax.xlane.f32.xlu0 %v1818
        %v1820 = vpop.xlane.xlu0 %1819
        %v1821 = vsel %vm1781, %v1612, -inf
        %1822 = vmax.xlane.f32.xlu0 %v1821
        %v1823 = vpop.xlane.xlu0 %1822
        %v1824 = vsel %vm1781, %v1615, -inf
        %1825 = vmax.xlane.f32.xlu0 %v1824
        %v1826 = vpop.xlane.xlu0 %1825
        %v1827 = vsel %vm1781, %v1617, -inf
        %1828 = vmax.xlane.f32.xlu0 %v1827
        %v1829 = vpop.xlane.xlu0 %1828
        %v1830 = vsel %vm1781, %v1681, -inf
        %1831 = vmax.xlane.f32.xlu0 %v1830
        %v1832 = vpop.xlane.xlu0 %1831
        %v1833 = vsel %vm1781, %v1683, -inf
        %1834 = vmax.xlane.f32.xlu0 %v1833
        %v1835 = vpop.xlane.xlu0 %1834
        %v1836 = vsel %vm1781, %v1686, -inf
        %1837 = vmax.xlane.f32.xlu0 %v1836
        %v1838 = vpop.xlane.xlu0 %1837
        %v1839 = vsel %vm1781, %v1688, -inf
        %1840 = vmax.xlane.f32.xlu0 %v1839
        %v1841 = vpop.xlane.xlu0 %1840
        %v1842 = vsel %vm1781, %v1691, -inf
        %1843 = vmax.xlane.f32.xlu0 %v1842
        %v1844 = vpop.xlane.xlu0 %1843
        %v1845 = vsel %vm1781, %v1693, -inf
        %1846 = vmax.xlane.f32.xlu0 %v1845
        %v1847 = vpop.xlane.xlu0 %1846
        %v1848 = vsel %vm1781, %v1696, -inf
        %1849 = vmax.xlane.f32.xlu0 %v1848
        %v1850 = vpop.xlane.xlu0 %1849
        %v1851 = vsel %vm1781, %v1698, -inf
        %1852 = vmax.xlane.f32.xlu0 %v1851
        %v1853 = vpop.xlane.xlu0 %1852
        %v1854 = vsel %vm1781, %v1762, -inf
        %1855 = vmax.xlane.f32.xlu0 %v1854
        %v1856 = vpop.xlane.xlu0 %1855
        %v1857 = vsel %vm1781, %v1764, -inf
        %1858 = vmax.xlane.f32.xlu0 %v1857
        %v1859 = vpop.xlane.xlu0 %1858
        %v1860 = vsel %vm1781, %v1767, -inf
        %1861 = vmax.xlane.f32.xlu0 %v1860
        %v1862 = vpop.xlane.xlu0 %1861
        %v1863 = vsel %vm1781, %v1769, -inf
        %1864 = vmax.xlane.f32.xlu0 %v1863
        %v1865 = vpop.xlane.xlu0 %1864
        %v1866 = vsel %vm1781, %v1772, -inf
        %1867 = vmax.xlane.f32.xlu0 %v1866
        %v1868 = vpop.xlane.xlu0 %1867
        %v1869 = vsel %vm1781, %v1774, -inf
        %1870 = vmax.xlane.f32.xlu0 %v1869
        %v1871 = vpop.xlane.xlu0 %1870
        %v1872 = vsel %vm1781, %v1777, -inf
        %1873 = vmax.xlane.f32.xlu0 %v1872
        %v1874 = vpop.xlane.xlu0 %1873
        %v1875 = vsel %vm1781, %v1779, -inf
        %1876 = vmax.xlane.f32.xlu0 %v1875
        %v1877 = vpop.xlane.xlu0 %1876
        %v1878 = vsub.f32 %v1519, %v1784
        %v1879 = vsub.f32 %v1521, %v1787
        %v1880 = vsub.f32 %v1524, %v1790
        %v1881 = vsub.f32 %v1526, %v1793
        %v1882 = vsub.f32 %v1529, %v1796
        %v1883 = vsub.f32 %v1531, %v1799
        %v1884 = vsub.f32 %v1534, %v1802
        %v1885 = vsub.f32 %v1536, %v1805
        %v1886 = vsub.f32 %v1600, %v1808
        %v1887 = vsub.f32 %v1602, %v1811
        %v1888 = vsub.f32 %v1605, %v1814
        %v1889 = vsub.f32 %v1607, %v1817
        %v1890 = vsub.f32 %v1610, %v1820
        %v1891 = vsub.f32 %v1612, %v1823
        %v1892 = vsub.f32 %v1615, %v1826
        %v1893 = vsub.f32 %v1617, %v1829
        %v1894 = vsub.f32 %v1681, %v1832
        %v1895 = vsub.f32 %v1683, %v1835
        %v1896 = vsub.f32 %v1686, %v1838
        %v1897 = vsub.f32 %v1688, %v1841
        %v1898 = vsub.f32 %v1691, %v1844
        %v1899 = vsub.f32 %v1693, %v1847
        %v1900 = vsub.f32 %v1696, %v1850
        %v1901 = vsub.f32 %v1698, %v1853
        %v1902 = vsub.f32 %v1762, %v1856
        %v1903 = vsub.f32 %v1764, %v1859
        %v1904 = vsub.f32 %v1767, %v1862
        %v1905 = vsub.f32 %v1769, %v1865
        %v1906 = vsub.f32 %v1772, %v1868
        %v1907 = vsub.f32 %v1774, %v1871
        %v1908 = vsub.f32 %v1777, %v1874
        %v1909 = vsub.f32 %v1779, %v1877
        %v1910 = vmul.f32 %v1878, 1.442695
        %v1911 = vpow.pop %v1910
        %v1912 = vmul.f32 %v1879, 1.442695
        %v1913 = vpow.pop %v1912
        %v1914 = vmul.f32 %v1880, 1.442695
        %v1915 = vpow.pop %v1914
        %v1916 = vmul.f32 %v1881, 1.442695
        %v1917 = vpow.pop %v1916
        %v1918 = vmul.f32 %v1882, 1.442695
        %v1919 = vpow.pop %v1918
        %v1920 = vmul.f32 %v1883, 1.442695
        %v1921 = vpow.pop %v1920
        %v1922 = vmul.f32 %v1884, 1.442695
        %v1923 = vpow.pop %v1922
        %v1924 = vmul.f32 %v1885, 1.442695
        %v1925 = vpow.pop %v1924
        %v1926 = vmul.f32 %v1886, 1.442695
        %v1927 = vpow.pop %v1926
        %v1928 = vmul.f32 %v1887, 1.442695
        %v1929 = vpow.pop %v1928
        %v1930 = vmul.f32 %v1888, 1.442695
        %v1931 = vpow.pop %v1930
        %v1932 = vmul.f32 %v1889, 1.442695
        %v1933 = vpow.pop %v1932
        %v1934 = vmul.f32 %v1890, 1.442695
        %v1935 = vpow.pop %v1934
        %v1936 = vmul.f32 %v1891, 1.442695
        %v1937 = vpow.pop %v1936
        %v1938 = vmul.f32 %v1892, 1.442695
        %v1939 = vpow.pop %v1938
        %v1940 = vmul.f32 %v1893, 1.442695
        %v1941 = vpow.pop %v1940
        %v1942 = vmul.f32 %v1894, 1.442695
        %v1943 = vpow.pop %v1942
        %v1944 = vmul.f32 %v1895, 1.442695
        %v1945 = vpow.pop %v1944
        %v1946 = vmul.f32 %v1896, 1.442695
        %v1947 = vpow.pop %v1946
        %v1948 = vmul.f32 %v1897, 1.442695
        %v1949 = vpow.pop %v1948
        %v1950 = vmul.f32 %v1898, 1.442695
        %v1951 = vpow.pop %v1950
        %v1952 = vmul.f32 %v1899, 1.442695
        %v1953 = vpow.pop %v1952
        %v1954 = vmul.f32 %v1900, 1.442695
        %v1955 = vpow.pop %v1954
        %v1956 = vmul.f32 %v1901, 1.442695
        %v1957 = vpow.pop %v1956
        %v1958 = vmul.f32 %v1902, 1.442695
        %v1959 = vpow.pop %v1958
        %v1960 = vmul.f32 %v1903, 1.442695
        %v1961 = vpow.pop %v1960
        %v1962 = vmul.f32 %v1904, 1.442695
        %v1963 = vpow.pop %v1962
        %v1964 = vmul.f32 %v1905, 1.442695
        %v1965 = vpow.pop %v1964
        %v1966 = vmul.f32 %v1906, 1.442695
        %v1967 = vpow.pop %v1966
        %v1968 = vmul.f32 %v1907, 1.442695
        %v1969 = vpow.pop %v1968
        %v1970 = vmul.f32 %v1908, 1.442695
        %v1971 = vpow.pop %v1970
        %v1972 = vmul.f32 %v1909, 1.442695
        %v1973 = vpow.pop %v1972
        %v1974 = vsel %vm1781, %v1911, 0.0
        %1975 = vadd.xlane.f32.xlu0 %v1974
        %v1976 = vpop.xlane.xlu0 %1975
        %v1977 = vsel %vm1781, %v1913, 0.0
        %1978 = vadd.xlane.f32.xlu0 %v1977
        %v1979 = vpop.xlane.xlu0 %1978
        %v1980 = vsel %vm1781, %v1915, 0.0
        %1981 = vadd.xlane.f32.xlu0 %v1980
        %v1982 = vpop.xlane.xlu0 %1981
        %v1983 = vsel %vm1781, %v1917, 0.0
        %1984 = vadd.xlane.f32.xlu0 %v1983
        %v1985 = vpop.xlane.xlu0 %1984
        %v1986 = vsel %vm1781, %v1919, 0.0
        %1987 = vadd.xlane.f32.xlu0 %v1986
        %v1988 = vpop.xlane.xlu0 %1987
        %v1989 = vsel %vm1781, %v1921, 0.0
        %1990 = vadd.xlane.f32.xlu0 %v1989
        %v1991 = vpop.xlane.xlu0 %1990
        %v1992 = vsel %vm1781, %v1923, 0.0
        %1993 = vadd.xlane.f32.xlu0 %v1992
        %v1994 = vpop.xlane.xlu0 %1993
        %v1995 = vsel %vm1781, %v1925, 0.0
        %1996 = vadd.xlane.f32.xlu0 %v1995
        %v1997 = vpop.xlane.xlu0 %1996
        %v1998 = vsel %vm1781, %v1927, 0.0
        %1999 = vadd.xlane.f32.xlu0 %v1998
        %v2000 = vpop.xlane.xlu0 %1999
        %v2001 = vsel %vm1781, %v1929, 0.0
        %2002 = vadd.xlane.f32.xlu0 %v2001
        %v2003 = vpop.xlane.xlu0 %2002
        %v2004 = vsel %vm1781, %v1931, 0.0
        %2005 = vadd.xlane.f32.xlu0 %v2004
        %v2006 = vpop.xlane.xlu0 %2005
        %v2007 = vsel %vm1781, %v1933, 0.0
        %2008 = vadd.xlane.f32.xlu0 %v2007
        %v2009 = vpop.xlane.xlu0 %2008
        %v2010 = vsel %vm1781, %v1935, 0.0
        %2011 = vadd.xlane.f32.xlu0 %v2010
        %v2012 = vpop.xlane.xlu0 %2011
        %v2013 = vsel %vm1781, %v1937, 0.0
        %2014 = vadd.xlane.f32.xlu0 %v2013
        %v2015 = vpop.xlane.xlu0 %2014
        %v2016 = vsel %vm1781, %v1939, 0.0
        %2017 = vadd.xlane.f32.xlu0 %v2016
        %v2018 = vpop.xlane.xlu0 %2017
        %v2019 = vsel %vm1781, %v1941, 0.0
        %2020 = vadd.xlane.f32.xlu0 %v2019
        %v2021 = vpop.xlane.xlu0 %2020
        %v2022 = vsel %vm1781, %v1943, 0.0
        %2023 = vadd.xlane.f32.xlu0 %v2022
        %v2024 = vpop.xlane.xlu0 %2023
        %v2025 = vsel %vm1781, %v1945, 0.0
        %2026 = vadd.xlane.f32.xlu0 %v2025
        %v2027 = vpop.xlane.xlu0 %2026
        %v2028 = vsel %vm1781, %v1947, 0.0
        %2029 = vadd.xlane.f32.xlu0 %v2028
        %v2030 = vpop.xlane.xlu0 %2029
        %v2031 = vsel %vm1781, %v1949, 0.0
        %2032 = vadd.xlane.f32.xlu0 %v2031
        %v2033 = vpop.xlane.xlu0 %2032
        %v2034 = vsel %vm1781, %v1951, 0.0
        %2035 = vadd.xlane.f32.xlu0 %v2034
        %v2036 = vpop.xlane.xlu0 %2035
        %v2037 = vsel %vm1781, %v1953, 0.0
        %2038 = vadd.xlane.f32.xlu0 %v2037
        %v2039 = vpop.xlane.xlu0 %2038
        %v2040 = vsel %vm1781, %v1955, 0.0
        %2041 = vadd.xlane.f32.xlu0 %v2040
        %v2042 = vpop.xlane.xlu0 %2041
        %v2043 = vsel %vm1781, %v1957, 0.0
        %2044 = vadd.xlane.f32.xlu0 %v2043
        %v2045 = vpop.xlane.xlu0 %2044
        %v2046 = vsel %vm1781, %v1959, 0.0
        %2047 = vadd.xlane.f32.xlu0 %v2046
        %v2048 = vpop.xlane.xlu0 %2047
        %v2049 = vsel %vm1781, %v1961, 0.0
        %2050 = vadd.xlane.f32.xlu0 %v2049
        %v2051 = vpop.xlane.xlu0 %2050
        %v2052 = vsel %vm1781, %v1963, 0.0
        %2053 = vadd.xlane.f32.xlu0 %v2052
        %v2054 = vpop.xlane.xlu0 %2053
        %v2055 = vsel %vm1781, %v1965, 0.0
        %2056 = vadd.xlane.f32.xlu0 %v2055
        %v2057 = vpop.xlane.xlu0 %2056
        %v2058 = vsel %vm1781, %v1967, 0.0
        %2059 = vadd.xlane.f32.xlu0 %v2058
        %v2060 = vpop.xlane.xlu0 %2059
        %v2061 = vsel %vm1781, %v1969, 0.0
        %2062 = vadd.xlane.f32.xlu0 %v2061
        %v2063 = vpop.xlane.xlu0 %2062
        %v2064 = vsel %vm1781, %v1971, 0.0
        %2065 = vadd.xlane.f32.xlu0 %v2064
        %v2066 = vpop.xlane.xlu0 %2065
        %v2067 = vsel %vm1781, %v1973, 0.0
        %2068 = vadd.xlane.f32.xlu0 %v2067
        %v2069 = vpop.xlane.xlu0 %2068
        %v2070 = vrcp.pop %v1976
        %v2071 = vrcp.pop %v1979
        %v2072 = vrcp.pop %v1982
        %v2073 = vrcp.pop %v1985
        %v2074 = vrcp.pop %v1988
        %v2075 = vrcp.pop %v1991
        %v2076 = vrcp.pop %v1994
        %v2077 = vrcp.pop %v1997
        %v2078 = vrcp.pop %v2000
        %v2079 = vrcp.pop %v2003
        %v2080 = vrcp.pop %v2006
        %v2081 = vrcp.pop %v2009
        %v2082 = vrcp.pop %v2012
        %v2083 = vrcp.pop %v2015
        %v2084 = vrcp.pop %v2018
        %v2085 = vrcp.pop %v2021
        %v2086 = vrcp.pop %v2024
        %v2087 = vrcp.pop %v2027
        %v2088 = vrcp.pop %v2030
        %v2089 = vrcp.pop %v2033
        %v2090 = vrcp.pop %v2036
        %v2091 = vrcp.pop %v2039
        %v2092 = vrcp.pop %v2042
        %v2093 = vrcp.pop %v2045
        %v2094 = vrcp.pop %v2048
        %v2095 = vrcp.pop %v2051
        %v2096 = vrcp.pop %v2054
        %v2097 = vrcp.pop %v2057
        %v2098 = vrcp.pop %v2060
        %v2099 = vrcp.pop %v2063
        %v2100 = vrcp.pop %v2066
        %v2101 = vrcp.pop %v2069
        %v2102 = vmul.f32 %v1911, %v2070
        %v2103 = vmul.f32 %v1913, %v2071
        %v2104 = vmul.f32 %v1915, %v2072
        %v2105 = vmul.f32 %v1917, %v2073
        %v2106 = vmul.f32 %v1919, %v2074
        %v2107 = vmul.f32 %v1921, %v2075
        %v2108 = vmul.f32 %v1923, %v2076
        %v2109 = vmul.f32 %v1925, %v2077
        %v2110 = vmul.f32 %v1927, %v2078
        %v2111 = vmul.f32 %v1929, %v2079
        %v2112 = vmul.f32 %v1931, %v2080
        %v2113 = vmul.f32 %v1933, %v2081
        %v2114 = vmul.f32 %v1935, %v2082
        %v2115 = vmul.f32 %v1937, %v2083
        %v2116 = vmul.f32 %v1939, %v2084
        %v2117 = vmul.f32 %v1941, %v2085
        %v2118 = vmul.f32 %v1943, %v2086
        %v2119 = vmul.f32 %v1945, %v2087
        %v2120 = vmul.f32 %v1947, %v2088
        %v2121 = vmul.f32 %v1949, %v2089
        %v2122 = vmul.f32 %v1951, %v2090
        %v2123 = vmul.f32 %v1953, %v2091
        %v2124 = vmul.f32 %v1955, %v2092
        %v2125 = vmul.f32 %v1957, %v2093
        %v2126 = vmul.f32 %v1959, %v2094
        %v2127 = vmul.f32 %v1961, %v2095
        %v2128 = vmul.f32 %v1963, %v2096
        %v2129 = vmul.f32 %v1965, %v2097
        %v2130 = vmul.f32 %v1967, %v2098
        %v2131 = vmul.f32 %v1969, %v2099
        %v2132 = vmul.f32 %v1971, %v2100
        %v2133 = vmul.f32 %v1973, %v2101
        %v2134 = vpack.c.bf16 %v2102, %v2102
        %v2135 = vpack.c.bf16 %v2103, %v2103
        %v2136 = vpack.c.bf16 %v2104, %v2104
        %v2137 = vpack.c.bf16 %v2105, %v2105
        %v2138 = vpack.c.bf16 %v2106, %v2106
        %v2139 = vpack.c.bf16 %v2107, %v2107
        %v2140 = vpack.c.bf16 %v2108, %v2108
        %v2141 = vpack.c.bf16 %v2109, %v2109
        %v2142 = vpack.c.bf16 %v2110, %v2110
        %v2143 = vpack.c.bf16 %v2111, %v2111
        %v2144 = vpack.c.bf16 %v2112, %v2112
        %v2145 = vpack.c.bf16 %v2113, %v2113
        %v2146 = vpack.c.bf16 %v2114, %v2114
        %v2147 = vpack.c.bf16 %v2115, %v2115
        %v2148 = vpack.c.bf16 %v2116, %v2116
        %v2149 = vpack.c.bf16 %v2117, %v2117
        %v2150 = vpack.c.bf16 %v2118, %v2118
        %v2151 = vpack.c.bf16 %v2119, %v2119
        %v2152 = vpack.c.bf16 %v2120, %v2120
        %v2153 = vpack.c.bf16 %v2121, %v2121
        %v2154 = vpack.c.bf16 %v2122, %v2122
        %v2155 = vpack.c.bf16 %v2123, %v2123
        %v2156 = vpack.c.bf16 %v2124, %v2124
        %v2157 = vpack.c.bf16 %v2125, %v2125
        %v2158 = vpack.c.bf16 %v2126, %v2126
        %v2159 = vpack.c.bf16 %v2127, %v2127
        %v2160 = vpack.c.bf16 %v2128, %v2128
        %v2161 = vpack.c.bf16 %v2129, %v2129
        %v2162 = vpack.c.bf16 %v2130, %v2130
        %v2163 = vpack.c.bf16 %v2131, %v2131
        %v2164 = vpack.c.bf16 %v2132, %v2132
        %v2165 = vpack.c.bf16 %v2133, %v2133
        %v2174 = vunpack.c.l.b16 %v2134
        %v2175 = vunpack.c.l.b16 %v2135
        %v2176 = vunpack.c.l.b16 %v2136
        %v2177 = vunpack.c.l.b16 %v2137
        %v2178 = vunpack.c.l.b16 %v2138
        %v2179 = vunpack.c.l.b16 %v2139
        %v2180 = vunpack.c.l.b16 %v2140
        %v2181 = vunpack.c.l.b16 %v2141
        %v2182 = vpack.c.b16 %v2175, %v2174
        %v2183 = vpack.c.b16 %v2177, %v2176
        %v2184 = vpack.c.b16 %v2179, %v2178
        %v2185 = vpack.c.b16 %v2181, %v2180
        %2186 = vrot.lane.b32.xlu0 %v1472, 64
        %v2187 = vpop.permute.xlu0 %2186
        %2188 = vrot.lane.b32.xlu0 %v1473, 64
        %v2189 = vpop.permute.xlu0 %2188
        %2190 = vrot.lane.b32.xlu0 %v1474, 64
        %v2191 = vpop.permute.xlu0 %2190
        %2192 = vrot.lane.b32.xlu0 %v1475, 64
        %v2193 = vpop.permute.xlu0 %2192
        %v2199 = vsel %vm1781, %v2182, 0
        %v2202 = vsel %vm1781, %v2183, 0
        %v2205 = vsel %vm1781, %v2184, 0
        %v2208 = vsel %vm1781, %v2185, 0
        %2210 = vmatpush.bf16.msra.mxu0 0
        %2211 = vmatpush.bf16.msra.mxu0 0
        %2212 = vmatpush.bf16.msra.mxu0 0
        %2213 = vmatpush.bf16.msra.mxu0 0
        %2214 = vmatpush.bf16.msra.mxu0 %v2193
        %2215 = vmatpush.bf16.msra.mxu0 %v2191
        %2216 = vmatpush.bf16.msra.mxu0 %v2189
        %2217 = vmatpush.bf16.msra.mxu0 %v2187
        %2218 = vmatmul.bf16.gmra.mxu0 %v2199
        %v2219 = vpop.f32.mrf.mxu0
        %v2220 = vadd.f32 0.0, %v2219
        %v2221 = vpop.f32.mrf.mxu0
        %v2222 = vadd.f32 0.0, %v2221
        %2223 = vmatmul.bf16.gmra.mxu0 %v2202
        %v2224 = vpop.f32.mrf.mxu0
        %v2225 = vadd.f32 0.0, %v2224
        %v2226 = vpop.f32.mrf.mxu0
        %v2227 = vadd.f32 0.0, %v2226
        %2228 = vmatmul.bf16.gmra.mxu0 %v2205
        %v2229 = vpop.f32.mrf.mxu0
        %v2230 = vadd.f32 0.0, %v2229
        %v2231 = vpop.f32.mrf.mxu0
        %v2232 = vadd.f32 0.0, %v2231
        %2233 = vmatmul.bf16.gmra.mxu0 %v2208
        %v2234 = vpop.f32.mrf.mxu0
        %v2235 = vadd.f32 0.0, %v2234
        %v2236 = vpop.f32.mrf.mxu0
        %v2237 = vadd.f32 0.0, %v2236
        %2238 = vdwg.mxu0
        %v2247 = vunpack.c.l.b16 %v2142
        %v2248 = vunpack.c.l.b16 %v2143
        %v2249 = vunpack.c.l.b16 %v2144
        %v2250 = vunpack.c.l.b16 %v2145
        %v2251 = vunpack.c.l.b16 %v2146
        %v2252 = vunpack.c.l.b16 %v2147
        %v2253 = vunpack.c.l.b16 %v2148
        %v2254 = vunpack.c.l.b16 %v2149
        %v2255 = vpack.c.b16 %v2248, %v2247
        %v2256 = vpack.c.b16 %v2250, %v2249
        %v2257 = vpack.c.b16 %v2252, %v2251
        %v2258 = vpack.c.b16 %v2254, %v2253
        %2259 = vrot.lane.b32.xlu0 %v1554, 64
        %v2260 = vpop.permute.xlu0 %2259
        %2261 = vrot.lane.b32.xlu0 %v1555, 64
        %v2262 = vpop.permute.xlu0 %2261
        %2263 = vrot.lane.b32.xlu0 %v1556, 64
        %v2264 = vpop.permute.xlu0 %2263
        %2265 = vrot.lane.b32.xlu0 %v1557, 64
        %v2266 = vpop.permute.xlu0 %2265
        %v2272 = vsel %vm1781, %v2255, 0
        %v2275 = vsel %vm1781, %v2256, 0
        %v2278 = vsel %vm1781, %v2257, 0
        %v2281 = vsel %vm1781, %v2258, 0
        %2283 = vmatpush.bf16.msra.mxu0 0
        %2284 = vmatpush.bf16.msra.mxu0 0
        %2285 = vmatpush.bf16.msra.mxu0 0
        %2286 = vmatpush.bf16.msra.mxu0 0
        %2287 = vmatpush.bf16.msra.mxu0 %v2266
        %2288 = vmatpush.bf16.msra.mxu0 %v2264
        %2289 = vmatpush.bf16.msra.mxu0 %v2262
        %2290 = vmatpush.bf16.msra.mxu0 %v2260
        %2291 = vmatmul.bf16.gmra.mxu0 %v2272
        %v2292 = vpop.f32.mrf.mxu0
        %v2293 = vadd.f32 0.0, %v2292
        %v2294 = vpop.f32.mrf.mxu0
        %v2295 = vadd.f32 0.0, %v2294
        %2296 = vmatmul.bf16.gmra.mxu0 %v2275
        %v2297 = vpop.f32.mrf.mxu0
        %v2298 = vadd.f32 0.0, %v2297
        %v2299 = vpop.f32.mrf.mxu0
        %v2300 = vadd.f32 0.0, %v2299
        %2301 = vmatmul.bf16.gmra.mxu0 %v2278
        %v2302 = vpop.f32.mrf.mxu0
        %v2303 = vadd.f32 0.0, %v2302
        %v2304 = vpop.f32.mrf.mxu0
        %v2305 = vadd.f32 0.0, %v2304
        %2306 = vmatmul.bf16.gmra.mxu0 %v2281
        %v2307 = vpop.f32.mrf.mxu0
        %v2308 = vadd.f32 0.0, %v2307
        %v2309 = vpop.f32.mrf.mxu0
        %v2310 = vadd.f32 0.0, %v2309
        %2311 = vdwg.mxu0
        %v2320 = vunpack.c.l.b16 %v2150
        %v2321 = vunpack.c.l.b16 %v2151
        %v2322 = vunpack.c.l.b16 %v2152
        %v2323 = vunpack.c.l.b16 %v2153
        %v2324 = vunpack.c.l.b16 %v2154
        %v2325 = vunpack.c.l.b16 %v2155
        %v2326 = vunpack.c.l.b16 %v2156
        %v2327 = vunpack.c.l.b16 %v2157
        %v2328 = vpack.c.b16 %v2321, %v2320
        %v2329 = vpack.c.b16 %v2323, %v2322
        %v2330 = vpack.c.b16 %v2325, %v2324
        %v2331 = vpack.c.b16 %v2327, %v2326
        %2332 = vrot.lane.b32.xlu0 %v1635, 64
        %v2333 = vpop.permute.xlu0 %2332
        %2334 = vrot.lane.b32.xlu0 %v1636, 64
        %v2335 = vpop.permute.xlu0 %2334
        %2336 = vrot.lane.b32.xlu0 %v1637, 64
        %v2337 = vpop.permute.xlu0 %2336
        %2338 = vrot.lane.b32.xlu0 %v1638, 64
        %v2339 = vpop.permute.xlu0 %2338
        %v2345 = vsel %vm1781, %v2328, 0
        %v2348 = vsel %vm1781, %v2329, 0
        %v2351 = vsel %vm1781, %v2330, 0
        %v2354 = vsel %vm1781, %v2331, 0
        %2356 = vmatpush.bf16.msra.mxu0 0
        %2357 = vmatpush.bf16.msra.mxu0 0
        %2358 = vmatpush.bf16.msra.mxu0 0
        %2359 = vmatpush.bf16.msra.mxu0 0
        %2360 = vmatpush.bf16.msra.mxu0 %v2339
        %2361 = vmatpush.bf16.msra.mxu0 %v2337
        %2362 = vmatpush.bf16.msra.mxu0 %v2335
        %2363 = vmatpush.bf16.msra.mxu0 %v2333
        %2364 = vmatmul.bf16.gmra.mxu0 %v2345
        %v2365 = vpop.f32.mrf.mxu0
        %v2366 = vadd.f32 0.0, %v2365
        %v2367 = vpop.f32.mrf.mxu0
        %v2368 = vadd.f32 0.0, %v2367
        %2369 = vmatmul.bf16.gmra.mxu0 %v2348
        %v2370 = vpop.f32.mrf.mxu0
        %v2371 = vadd.f32 0.0, %v2370
        %v2372 = vpop.f32.mrf.mxu0
        %v2373 = vadd.f32 0.0, %v2372
        %2374 = vmatmul.bf16.gmra.mxu0 %v2351
        %v2375 = vpop.f32.mrf.mxu0
        %v2376 = vadd.f32 0.0, %v2375
        %v2377 = vpop.f32.mrf.mxu0
        %v2378 = vadd.f32 0.0, %v2377
        %2379 = vmatmul.bf16.gmra.mxu0 %v2354
        %v2380 = vpop.f32.mrf.mxu0
        %v2381 = vadd.f32 0.0, %v2380
        %v2382 = vpop.f32.mrf.mxu0
        %v2383 = vadd.f32 0.0, %v2382
        %2384 = vdwg.mxu0
        %v2393 = vunpack.c.l.b16 %v2158
        %v2394 = vunpack.c.l.b16 %v2159
        %v2395 = vunpack.c.l.b16 %v2160
        %v2396 = vunpack.c.l.b16 %v2161
        %v2397 = vunpack.c.l.b16 %v2162
        %v2398 = vunpack.c.l.b16 %v2163
        %v2399 = vunpack.c.l.b16 %v2164
        %v2400 = vunpack.c.l.b16 %v2165
        %v2401 = vpack.c.b16 %v2394, %v2393
        %v2402 = vpack.c.b16 %v2396, %v2395
        %v2403 = vpack.c.b16 %v2398, %v2397
        %v2404 = vpack.c.b16 %v2400, %v2399
        %2405 = vrot.lane.b32.xlu0 %v1716, 64
        %v2406 = vpop.permute.xlu0 %2405
        %2407 = vrot.lane.b32.xlu0 %v1717, 64
        %v2408 = vpop.permute.xlu0 %2407
        %2409 = vrot.lane.b32.xlu0 %v1718, 64
        %v2410 = vpop.permute.xlu0 %2409
        %2411 = vrot.lane.b32.xlu0 %v1719, 64
        %v2412 = vpop.permute.xlu0 %2411
        %v2418 = vsel %vm1781, %v2401, 0
        %v2421 = vsel %vm1781, %v2402, 0
        %v2424 = vsel %vm1781, %v2403, 0
        %v2427 = vsel %vm1781, %v2404, 0
        %2429 = vmatpush.bf16.msra.mxu0 0
        %2430 = vmatpush.bf16.msra.mxu0 0
        %2431 = vmatpush.bf16.msra.mxu0 0
        %2432 = vmatpush.bf16.msra.mxu0 0
        %2433 = vmatpush.bf16.msra.mxu0 %v2412
        %2434 = vmatpush.bf16.msra.mxu0 %v2410
        %2435 = vmatpush.bf16.msra.mxu0 %v2408
        %2436 = vmatpush.bf16.msra.mxu0 %v2406
        %2437 = vmatmul.bf16.gmra.mxu0 %v2418
        %v2438 = vpop.f32.mrf.mxu0
        %v2439 = vadd.f32 0.0, %v2438
        %v2440 = vpop.f32.mrf.mxu0
        %v2441 = vadd.f32 0.0, %v2440
        %2442 = vmatmul.bf16.gmra.mxu0 %v2421
        %v2443 = vpop.f32.mrf.mxu0
        %v2444 = vadd.f32 0.0, %v2443
        %v2445 = vpop.f32.mrf.mxu0
        %v2446 = vadd.f32 0.0, %v2445
        %2447 = vmatmul.bf16.gmra.mxu0 %v2424
        %v2448 = vpop.f32.mrf.mxu0
        %v2449 = vadd.f32 0.0, %v2448
        %v2450 = vpop.f32.mrf.mxu0
        %v2451 = vadd.f32 0.0, %v2450
        %2452 = vmatmul.bf16.gmra.mxu0 %v2427
        %v2453 = vpop.f32.mrf.mxu0
        %v2454 = vadd.f32 0.0, %v2453
        %v2455 = vpop.f32.mrf.mxu0
        %v2456 = vadd.f32 0.0, %v2455
        %2457 = vdwg.mxu0
        %s2458 = scalar_lea.vmem [#allocation8], 64
        %v2459 = vld [vmem:[%s2458] sm:$0xff]
        %v2460 = vld [vmem:[%s2458 + $0x8] sm:$0xff]
        %v2461 = vld [vmem:[%s2458 + $0x10] sm:$0xff]
        %v2462 = vld [vmem:[%s2458 + $0x18] sm:$0xff]
        %v2463 = vld [vmem:[%s2458 + $0x20] sm:$0xff]
        %v2464 = vld [vmem:[%s2458 + $0x28] sm:$0xff]
        %v2465 = vld [vmem:[%s2458 + $0x30] sm:$0xff]
        %v2466 = vld [vmem:[%s2458 + $0x38] sm:$0xff]
        %2467 = vrot.lane.b32.xlu0 %v1472, 120
        %v2468 = vpop.permute.xlu0 %2467
        %2469 = vrot.lane.b32.xlu0 %v1473, 120
        %v2470 = vpop.permute.xlu0 %2469
        %2471 = vrot.lane.b32.xlu0 %v1474, 120
        %v2472 = vpop.permute.xlu0 %2471
        %2473 = vrot.lane.b32.xlu0 %v1475, 120
        %v2474 = vpop.permute.xlu0 %2473
        %2475 = vrot.lane.b32.xlu0 %v1472, 88
        %v2476 = vpop.permute.xlu0 %2475
        %2477 = vrot.lane.b32.xlu0 %v1473, 88
        %v2478 = vpop.permute.xlu0 %2477
        %2479 = vrot.lane.b32.xlu0 %v1474, 88
        %v2480 = vpop.permute.xlu0 %2479
        %2481 = vrot.lane.b32.xlu0 %v1475, 88
        %v2482 = vpop.permute.xlu0 %2481
        %v2484 = vsel %vm1484, %v2468, 0
        %v2487 = vsel %vm1484, %v2470, 0
        %v2490 = vsel %vm1484, %v2472, 0
        %v2493 = vsel %vm1484, %v2474, 0
        %v2496 = vsel %vm1484, %v2476, 0
        %v2499 = vsel %vm1484, %v2478, 0
        %v2502 = vsel %vm1484, %v2480, 0
        %v2505 = vsel %vm1484, %v2482, 0
        %2507 = vmatpush.bf16.xpose.msra.mxu0 0
        %2508 = vmatpush.bf16.xpose.msra.mxu0 0
        %2509 = vmatpush.bf16.xpose.msra.mxu0 0
        %2510 = vmatpush.bf16.xpose.msra.mxu0 0
        %2511 = vmatpush.bf16.xpose.msra.mxu0 %v2505
        %2512 = vmatpush.bf16.xpose.msra.mxu0 %v2502
        %2513 = vmatpush.bf16.xpose.msra.mxu0 %v2499
        %2514 = vmatpush.bf16.xpose.msra.mxu0 %v2496
        %2515 = vmatmul.bf16.gmra.mxu0 %v2484
        %v2516 = vpop.f32.mrf.mxu0
        %v2517 = vadd.f32 %v2459, %v2516
        %v2518 = vpop.f32.mrf.mxu0
        %v2519 = vadd.f32 %v2460, %v2518
        %2520 = vmatmul.bf16.gmra.mxu0 %v2487
        %v2521 = vpop.f32.mrf.mxu0
        %v2522 = vadd.f32 %v2461, %v2521
        %v2523 = vpop.f32.mrf.mxu0
        %v2524 = vadd.f32 %v2462, %v2523
        %2525 = vmatmul.bf16.gmra.mxu0 %v2490
        %v2526 = vpop.f32.mrf.mxu0
        %v2527 = vadd.f32 %v2463, %v2526
        %v2528 = vpop.f32.mrf.mxu0
        %v2529 = vadd.f32 %v2464, %v2528
        %2530 = vmatmul.bf16.gmra.mxu0 %v2493
        %v2531 = vpop.f32.mrf.mxu0
        %v2532 = vadd.f32 %v2465, %v2531
        %v2533 = vpop.f32.mrf.mxu0
        %v2534 = vadd.f32 %v2466, %v2533
        %2535 = vdwg.mxu0
        %2536 = vrot.lane.b32.xlu0 %v1554, 120
        %v2537 = vpop.permute.xlu0 %2536
        %2538 = vrot.lane.b32.xlu0 %v1555, 120
        %v2539 = vpop.permute.xlu0 %2538
        %2540 = vrot.lane.b32.xlu0 %v1556, 120
        %v2541 = vpop.permute.xlu0 %2540
        %2542 = vrot.lane.b32.xlu0 %v1557, 120
        %v2543 = vpop.permute.xlu0 %2542
        %2544 = vrot.lane.b32.xlu0 %v1554, 88
        %v2545 = vpop.permute.xlu0 %2544
        %2546 = vrot.lane.b32.xlu0 %v1555, 88
        %v2547 = vpop.permute.xlu0 %2546
        %2548 = vrot.lane.b32.xlu0 %v1556, 88
        %v2549 = vpop.permute.xlu0 %2548
        %2550 = vrot.lane.b32.xlu0 %v1557, 88
        %v2551 = vpop.permute.xlu0 %2550
        %v2553 = vsel %vm1484, %v2537, 0
        %v2556 = vsel %vm1484, %v2539, 0
        %v2559 = vsel %vm1484, %v2541, 0
        %v2562 = vsel %vm1484, %v2543, 0
        %v2565 = vsel %vm1484, %v2545, 0
        %v2568 = vsel %vm1484, %v2547, 0
        %v2571 = vsel %vm1484, %v2549, 0
        %v2574 = vsel %vm1484, %v2551, 0
        %2576 = vmatpush.bf16.xpose.msra.mxu0 0
        %2577 = vmatpush.bf16.xpose.msra.mxu0 0
        %2578 = vmatpush.bf16.xpose.msra.mxu0 0
        %2579 = vmatpush.bf16.xpose.msra.mxu0 0
        %2580 = vmatpush.bf16.xpose.msra.mxu0 %v2574
        %2581 = vmatpush.bf16.xpose.msra.mxu0 %v2571
        %2582 = vmatpush.bf16.xpose.msra.mxu0 %v2568
        %2583 = vmatpush.bf16.xpose.msra.mxu0 %v2565
        %2584 = vmatmul.bf16.gmra.mxu0 %v2553
        %v2585 = vpop.f32.mrf.mxu0
        %v2586 = vadd.f32 %v2459, %v2585
        %v2587 = vpop.f32.mrf.mxu0
        %v2588 = vadd.f32 %v2460, %v2587
        %2589 = vmatmul.bf16.gmra.mxu0 %v2556
        %v2590 = vpop.f32.mrf.mxu0
        %v2591 = vadd.f32 %v2461, %v2590
        %v2592 = vpop.f32.mrf.mxu0
        %v2593 = vadd.f32 %v2462, %v2592
        %2594 = vmatmul.bf16.gmra.mxu0 %v2559
        %v2595 = vpop.f32.mrf.mxu0
        %v2596 = vadd.f32 %v2463, %v2595
        %v2597 = vpop.f32.mrf.mxu0
        %v2598 = vadd.f32 %v2464, %v2597
        %2599 = vmatmul.bf16.gmra.mxu0 %v2562
        %v2600 = vpop.f32.mrf.mxu0
        %v2601 = vadd.f32 %v2465, %v2600
        %v2602 = vpop.f32.mrf.mxu0
        %v2603 = vadd.f32 %v2466, %v2602
        %2604 = vdwg.mxu0
        %2605 = vrot.lane.b32.xlu0 %v1635, 120
        %v2606 = vpop.permute.xlu0 %2605
        %2607 = vrot.lane.b32.xlu0 %v1636, 120
        %v2608 = vpop.permute.xlu0 %2607
        %2609 = vrot.lane.b32.xlu0 %v1637, 120
        %v2610 = vpop.permute.xlu0 %2609
        %2611 = vrot.lane.b32.xlu0 %v1638, 120
        %v2612 = vpop.permute.xlu0 %2611
        %2613 = vrot.lane.b32.xlu0 %v1635, 88
        %v2614 = vpop.permute.xlu0 %2613
        %2615 = vrot.lane.b32.xlu0 %v1636, 88
        %v2616 = vpop.permute.xlu0 %2615
        %2617 = vrot.lane.b32.xlu0 %v1637, 88
        %v2618 = vpop.permute.xlu0 %2617
        %2619 = vrot.lane.b32.xlu0 %v1638, 88
        %v2620 = vpop.permute.xlu0 %2619
        %v2622 = vsel %vm1484, %v2606, 0
        %v2625 = vsel %vm1484, %v2608, 0
        %v2628 = vsel %vm1484, %v2610, 0
        %v2631 = vsel %vm1484, %v2612, 0
        %v2634 = vsel %vm1484, %v2614, 0
        %v2637 = vsel %vm1484, %v2616, 0
        %v2640 = vsel %vm1484, %v2618, 0
        %v2643 = vsel %vm1484, %v2620, 0
        %2645 = vmatpush.bf16.xpose.msra.mxu0 0
        %2646 = vmatpush.bf16.xpose.msra.mxu0 0
        %2647 = vmatpush.bf16.xpose.msra.mxu0 0
        %2648 = vmatpush.bf16.xpose.msra.mxu0 0
        %2649 = vmatpush.bf16.xpose.msra.mxu0 %v2643
        %2650 = vmatpush.bf16.xpose.msra.mxu0 %v2640
        %2651 = vmatpush.bf16.xpose.msra.mxu0 %v2637
        %2652 = vmatpush.bf16.xpose.msra.mxu0 %v2634
        %2653 = vmatmul.bf16.gmra.mxu0 %v2622
        %v2654 = vpop.f32.mrf.mxu0
        %v2655 = vadd.f32 %v2459, %v2654
        %v2656 = vpop.f32.mrf.mxu0
        %v2657 = vadd.f32 %v2460, %v2656
        %2658 = vmatmul.bf16.gmra.mxu0 %v2625
        %v2659 = vpop.f32.mrf.mxu0
        %v2660 = vadd.f32 %v2461, %v2659
        %v2661 = vpop.f32.mrf.mxu0
        %v2662 = vadd.f32 %v2462, %v2661
        %2663 = vmatmul.bf16.gmra.mxu0 %v2628
        %v2664 = vpop.f32.mrf.mxu0
        %v2665 = vadd.f32 %v2463, %v2664
        %v2666 = vpop.f32.mrf.mxu0
        %v2667 = vadd.f32 %v2464, %v2666
        %2668 = vmatmul.bf16.gmra.mxu0 %v2631
        %v2669 = vpop.f32.mrf.mxu0
        %v2670 = vadd.f32 %v2465, %v2669
        %v2671 = vpop.f32.mrf.mxu0
        %v2672 = vadd.f32 %v2466, %v2671
        %2673 = vdwg.mxu0
        %2674 = vrot.lane.b32.xlu0 %v1716, 120
        %v2675 = vpop.permute.xlu0 %2674
        %2676 = vrot.lane.b32.xlu0 %v1717, 120
        %v2677 = vpop.permute.xlu0 %2676
        %2678 = vrot.lane.b32.xlu0 %v1718, 120
        %v2679 = vpop.permute.xlu0 %2678
        %2680 = vrot.lane.b32.xlu0 %v1719, 120
        %v2681 = vpop.permute.xlu0 %2680
        %2682 = vrot.lane.b32.xlu0 %v1716, 88
        %v2683 = vpop.permute.xlu0 %2682
        %2684 = vrot.lane.b32.xlu0 %v1717, 88
        %v2685 = vpop.permute.xlu0 %2684
        %2686 = vrot.lane.b32.xlu0 %v1718, 88
        %v2687 = vpop.permute.xlu0 %2686
        %2688 = vrot.lane.b32.xlu0 %v1719, 88
        %v2689 = vpop.permute.xlu0 %2688
        %v2691 = vsel %vm1484, %v2675, 0
        %v2694 = vsel %vm1484, %v2677, 0
        %v2697 = vsel %vm1484, %v2679, 0
        %v2700 = vsel %vm1484, %v2681, 0
        %v2703 = vsel %vm1484, %v2683, 0
        %v2706 = vsel %vm1484, %v2685, 0
        %v2709 = vsel %vm1484, %v2687, 0
        %v2712 = vsel %vm1484, %v2689, 0
        %2714 = vmatpush.bf16.xpose.msra.mxu0 0
        %2715 = vmatpush.bf16.xpose.msra.mxu0 0
        %2716 = vmatpush.bf16.xpose.msra.mxu0 0
        %2717 = vmatpush.bf16.xpose.msra.mxu0 0
        %2718 = vmatpush.bf16.xpose.msra.mxu0 %v2712
        %2719 = vmatpush.bf16.xpose.msra.mxu0 %v2709
        %2720 = vmatpush.bf16.xpose.msra.mxu0 %v2706
        %2721 = vmatpush.bf16.xpose.msra.mxu0 %v2703
        %2722 = vmatmul.bf16.gmra.mxu0 %v2691
        %v2723 = vpop.f32.mrf.mxu0
        %v2724 = vadd.f32 %v2459, %v2723
        %v2725 = vpop.f32.mrf.mxu0
        %v2726 = vadd.f32 %v2460, %v2725
        %2727 = vmatmul.bf16.gmra.mxu0 %v2694
        %v2728 = vpop.f32.mrf.mxu0
        %v2729 = vadd.f32 %v2461, %v2728
        %v2730 = vpop.f32.mrf.mxu0
        %v2731 = vadd.f32 %v2462, %v2730
        %2732 = vmatmul.bf16.gmra.mxu0 %v2697
        %v2733 = vpop.f32.mrf.mxu0
        %v2734 = vadd.f32 %v2463, %v2733
        %v2735 = vpop.f32.mrf.mxu0
        %v2736 = vadd.f32 %v2464, %v2735
        %2737 = vmatmul.bf16.gmra.mxu0 %v2700
        %v2738 = vpop.f32.mrf.mxu0
        %v2739 = vadd.f32 %v2465, %v2738
        %v2740 = vpop.f32.mrf.mxu0
        %v2741 = vadd.f32 %v2466, %v2740
        %2742 = vdwg.mxu0
        %v2743 = vsel %vm1781, %v2517, -inf
        %2744 = vmax.xlane.f32.xlu0 %v2743
        %v2745 = vpop.xlane.xlu0 %2744
        %v2746 = vsel %vm1781, %v2519, -inf
        %2747 = vmax.xlane.f32.xlu0 %v2746
        %v2748 = vpop.xlane.xlu0 %2747
        %v2749 = vsel %vm1781, %v2522, -inf
        %2750 = vmax.xlane.f32.xlu0 %v2749
        %v2751 = vpop.xlane.xlu0 %2750
        %v2752 = vsel %vm1781, %v2524, -inf
        %2753 = vmax.xlane.f32.xlu0 %v2752
        %v2754 = vpop.xlane.xlu0 %2753
        %v2755 = vsel %vm1781, %v2527, -inf
        %2756 = vmax.xlane.f32.xlu0 %v2755
        %v2757 = vpop.xlane.xlu0 %2756
        %v2758 = vsel %vm1781, %v2529, -inf
        %2759 = vmax.xlane.f32.xlu0 %v2758
        %v2760 = vpop.xlane.xlu0 %2759
        %v2761 = vsel %vm1781, %v2532, -inf
        %2762 = vmax.xlane.f32.xlu0 %v2761
        %v2763 = vpop.xlane.xlu0 %2762
        %v2764 = vsel %vm1781, %v2534, -inf
        %2765 = vmax.xlane.f32.xlu0 %v2764
        %v2766 = vpop.xlane.xlu0 %2765
        %v2767 = vsel %vm1781, %v2586, -inf
        %2768 = vmax.xlane.f32.xlu0 %v2767
        %v2769 = vpop.xlane.xlu0 %2768
        %v2770 = vsel %vm1781, %v2588, -inf
        %2771 = vmax.xlane.f32.xlu0 %v2770
        %v2772 = vpop.xlane.xlu0 %2771
        %v2773 = vsel %vm1781, %v2591, -inf
        %2774 = vmax.xlane.f32.xlu0 %v2773
        %v2775 = vpop.xlane.xlu0 %2774
        %v2776 = vsel %vm1781, %v2593, -inf
        %2777 = vmax.xlane.f32.xlu0 %v2776
        %v2778 = vpop.xlane.xlu0 %2777
        %v2779 = vsel %vm1781, %v2596, -inf
        %2780 = vmax.xlane.f32.xlu0 %v2779
        %v2781 = vpop.xlane.xlu0 %2780
        %v2782 = vsel %vm1781, %v2598, -inf
        %2783 = vmax.xlane.f32.xlu0 %v2782
        %v2784 = vpop.xlane.xlu0 %2783
        %v2785 = vsel %vm1781, %v2601, -inf
        %2786 = vmax.xlane.f32.xlu0 %v2785
        %v2787 = vpop.xlane.xlu0 %2786
        %v2788 = vsel %vm1781, %v2603, -inf
        %2789 = vmax.xlane.f32.xlu0 %v2788
        %v2790 = vpop.xlane.xlu0 %2789
        %v2791 = vsel %vm1781, %v2655, -inf
        %2792 = vmax.xlane.f32.xlu0 %v2791
        %v2793 = vpop.xlane.xlu0 %2792
        %v2794 = vsel %vm1781, %v2657, -inf
        %2795 = vmax.xlane.f32.xlu0 %v2794
        %v2796 = vpop.xlane.xlu0 %2795
        %v2797 = vsel %vm1781, %v2660, -inf
        %2798 = vmax.xlane.f32.xlu0 %v2797
        %v2799 = vpop.xlane.xlu0 %2798
        %v2800 = vsel %vm1781, %v2662, -inf
        %2801 = vmax.xlane.f32.xlu0 %v2800
        %v2802 = vpop.xlane.xlu0 %2801
        %v2803 = vsel %vm1781, %v2665, -inf
        %2804 = vmax.xlane.f32.xlu0 %v2803
        %v2805 = vpop.xlane.xlu0 %2804
        %v2806 = vsel %vm1781, %v2667, -inf
        %2807 = vmax.xlane.f32.xlu0 %v2806
        %v2808 = vpop.xlane.xlu0 %2807
        %v2809 = vsel %vm1781, %v2670, -inf
        %2810 = vmax.xlane.f32.xlu0 %v2809
        %v2811 = vpop.xlane.xlu0 %2810
        %v2812 = vsel %vm1781, %v2672, -inf
        %2813 = vmax.xlane.f32.xlu0 %v2812
        %v2814 = vpop.xlane.xlu0 %2813
        %v2815 = vsel %vm1781, %v2724, -inf
        %2816 = vmax.xlane.f32.xlu0 %v2815
        %v2817 = vpop.xlane.xlu0 %2816
        %v2818 = vsel %vm1781, %v2726, -inf
        %2819 = vmax.xlane.f32.xlu0 %v2818
        %v2820 = vpop.xlane.xlu0 %2819
        %v2821 = vsel %vm1781, %v2729, -inf
        %2822 = vmax.xlane.f32.xlu0 %v2821
        %v2823 = vpop.xlane.xlu0 %2822
        %v2824 = vsel %vm1781, %v2731, -inf
        %2825 = vmax.xlane.f32.xlu0 %v2824
        %v2826 = vpop.xlane.xlu0 %2825
        %v2827 = vsel %vm1781, %v2734, -inf
        %2828 = vmax.xlane.f32.xlu0 %v2827
        %v2829 = vpop.xlane.xlu0 %2828
        %v2830 = vsel %vm1781, %v2736, -inf
        %2831 = vmax.xlane.f32.xlu0 %v2830
        %v2832 = vpop.xlane.xlu0 %2831
        %v2833 = vsel %vm1781, %v2739, -inf
        %2834 = vmax.xlane.f32.xlu0 %v2833
        %v2835 = vpop.xlane.xlu0 %2834
        %v2836 = vsel %vm1781, %v2741, -inf
        %2837 = vmax.xlane.f32.xlu0 %v2836
        %v2838 = vpop.xlane.xlu0 %2837
        %v2839 = vsub.f32 %v2517, %v2745
        %v2840 = vsub.f32 %v2519, %v2748
        %v2841 = vsub.f32 %v2522, %v2751
        %v2842 = vsub.f32 %v2524, %v2754
        %v2843 = vsub.f32 %v2527, %v2757
        %v2844 = vsub.f32 %v2529, %v2760
        %v2845 = vsub.f32 %v2532, %v2763
        %v2846 = vsub.f32 %v2534, %v2766
        %v2847 = vsub.f32 %v2586, %v2769
        %v2848 = vsub.f32 %v2588, %v2772
        %v2849 = vsub.f32 %v2591, %v2775
        %v2850 = vsub.f32 %v2593, %v2778
        %v2851 = vsub.f32 %v2596, %v2781
        %v2852 = vsub.f32 %v2598, %v2784
        %v2853 = vsub.f32 %v2601, %v2787
        %v2854 = vsub.f32 %v2603, %v2790
        %v2855 = vsub.f32 %v2655, %v2793
        %v2856 = vsub.f32 %v2657, %v2796
        %v2857 = vsub.f32 %v2660, %v2799
        %v2858 = vsub.f32 %v2662, %v2802
        %v2859 = vsub.f32 %v2665, %v2805
        %v2860 = vsub.f32 %v2667, %v2808
        %v2861 = vsub.f32 %v2670, %v2811
        %v2862 = vsub.f32 %v2672, %v2814
        %v2863 = vsub.f32 %v2724, %v2817
        %v2864 = vsub.f32 %v2726, %v2820
        %v2865 = vsub.f32 %v2729, %v2823
        %v2866 = vsub.f32 %v2731, %v2826
        %v2867 = vsub.f32 %v2734, %v2829
        %v2868 = vsub.f32 %v2736, %v2832
        %v2869 = vsub.f32 %v2739, %v2835
        %v2870 = vsub.f32 %v2741, %v2838
        %v2871 = vmul.f32 %v2839, 1.442695
        %v2872 = vpow.pop %v2871
        %v2873 = vmul.f32 %v2840, 1.442695
        %v2874 = vpow.pop %v2873
        %v2875 = vmul.f32 %v2841, 1.442695
        %v2876 = vpow.pop %v2875
        %v2877 = vmul.f32 %v2842, 1.442695
        %v2878 = vpow.pop %v2877
        %v2879 = vmul.f32 %v2843, 1.442695
        %v2880 = vpow.pop %v2879
        %v2881 = vmul.f32 %v2844, 1.442695
        %v2882 = vpow.pop %v2881
        %v2883 = vmul.f32 %v2845, 1.442695
        %v2884 = vpow.pop %v2883
        %v2885 = vmul.f32 %v2846, 1.442695
        %v2886 = vpow.pop %v2885
        %v2887 = vmul.f32 %v2847, 1.442695
        %v2888 = vpow.pop %v2887
        %v2889 = vmul.f32 %v2848, 1.442695
        %v2890 = vpow.pop %v2889
        %v2891 = vmul.f32 %v2849, 1.442695
        %v2892 = vpow.pop %v2891
        %v2893 = vmul.f32 %v2850, 1.442695
        %v2894 = vpow.pop %v2893
        %v2895 = vmul.f32 %v2851, 1.442695
        %v2896 = vpow.pop %v2895
        %v2897 = vmul.f32 %v2852, 1.442695
        %v2898 = vpow.pop %v2897
        %v2899 = vmul.f32 %v2853, 1.442695
        %v2900 = vpow.pop %v2899
        %v2901 = vmul.f32 %v2854, 1.442695
        %v2902 = vpow.pop %v2901
        %v2903 = vmul.f32 %v2855, 1.442695
        %v2904 = vpow.pop %v2903
        %v2905 = vmul.f32 %v2856, 1.442695
        %v2906 = vpow.pop %v2905
        %v2907 = vmul.f32 %v2857, 1.442695
        %v2908 = vpow.pop %v2907
        %v2909 = vmul.f32 %v2858, 1.442695
        %v2910 = vpow.pop %v2909
        %v2911 = vmul.f32 %v2859, 1.442695
        %v2912 = vpow.pop %v2911
        %v2913 = vmul.f32 %v2860, 1.442695
        %v2914 = vpow.pop %v2913
        %v2915 = vmul.f32 %v2861, 1.442695
        %v2916 = vpow.pop %v2915
        %v2917 = vmul.f32 %v2862, 1.442695
        %v2918 = vpow.pop %v2917
        %v2919 = vmul.f32 %v2863, 1.442695
        %v2920 = vpow.pop %v2919
        %v2921 = vmul.f32 %v2864, 1.442695
        %v2922 = vpow.pop %v2921
        %v2923 = vmul.f32 %v2865, 1.442695
        %v2924 = vpow.pop %v2923
        %v2925 = vmul.f32 %v2866, 1.442695
        %v2926 = vpow.pop %v2925
        %v2927 = vmul.f32 %v2867, 1.442695
        %v2928 = vpow.pop %v2927
        %v2929 = vmul.f32 %v2868, 1.442695
        %v2930 = vpow.pop %v2929
        %v2931 = vmul.f32 %v2869, 1.442695
        %v2932 = vpow.pop %v2931
        %v2933 = vmul.f32 %v2870, 1.442695
        %v2934 = vpow.pop %v2933
        %v2935 = vsel %vm1781, %v2872, 0.0
        %2936 = vadd.xlane.f32.xlu0 %v2935
        %v2937 = vpop.xlane.xlu0 %2936
        %v2938 = vsel %vm1781, %v2874, 0.0
        %2939 = vadd.xlane.f32.xlu0 %v2938
        %v2940 = vpop.xlane.xlu0 %2939
        %v2941 = vsel %vm1781, %v2876, 0.0
        %2942 = vadd.xlane.f32.xlu0 %v2941
        %v2943 = vpop.xlane.xlu0 %2942
        %v2944 = vsel %vm1781, %v2878, 0.0
        %2945 = vadd.xlane.f32.xlu0 %v2944
        %v2946 = vpop.xlane.xlu0 %2945
        %v2947 = vsel %vm1781, %v2880, 0.0
        %2948 = vadd.xlane.f32.xlu0 %v2947
        %v2949 = vpop.xlane.xlu0 %2948
        %v2950 = vsel %vm1781, %v2882, 0.0
        %2951 = vadd.xlane.f32.xlu0 %v2950
        %v2952 = vpop.xlane.xlu0 %2951
        %v2953 = vsel %vm1781, %v2884, 0.0
        %2954 = vadd.xlane.f32.xlu0 %v2953
        %v2955 = vpop.xlane.xlu0 %2954
        %v2956 = vsel %vm1781, %v2886, 0.0
        %2957 = vadd.xlane.f32.xlu0 %v2956
        %v2958 = vpop.xlane.xlu0 %2957
        %v2959 = vsel %vm1781, %v2888, 0.0
        %2960 = vadd.xlane.f32.xlu0 %v2959
        %v2961 = vpop.xlane.xlu0 %2960
        %v2962 = vsel %vm1781, %v2890, 0.0
        %2963 = vadd.xlane.f32.xlu0 %v2962
        %v2964 = vpop.xlane.xlu0 %2963
        %v2965 = vsel %vm1781, %v2892, 0.0
        %2966 = vadd.xlane.f32.xlu0 %v2965
        %v2967 = vpop.xlane.xlu0 %2966
        %v2968 = vsel %vm1781, %v2894, 0.0
        %2969 = vadd.xlane.f32.xlu0 %v2968
        %v2970 = vpop.xlane.xlu0 %2969
        %v2971 = vsel %vm1781, %v2896, 0.0
        %2972 = vadd.xlane.f32.xlu0 %v2971
        %v2973 = vpop.xlane.xlu0 %2972
        %v2974 = vsel %vm1781, %v2898, 0.0
        %2975 = vadd.xlane.f32.xlu0 %v2974
        %v2976 = vpop.xlane.xlu0 %2975
        %v2977 = vsel %vm1781, %v2900, 0.0
        %2978 = vadd.xlane.f32.xlu0 %v2977
        %v2979 = vpop.xlane.xlu0 %2978
        %v2980 = vsel %vm1781, %v2902, 0.0
        %2981 = vadd.xlane.f32.xlu0 %v2980
        %v2982 = vpop.xlane.xlu0 %2981
        %v2983 = vsel %vm1781, %v2904, 0.0
        %2984 = vadd.xlane.f32.xlu0 %v2983
        %v2985 = vpop.xlane.xlu0 %2984
        %v2986 = vsel %vm1781, %v2906, 0.0
        %2987 = vadd.xlane.f32.xlu0 %v2986
        %v2988 = vpop.xlane.xlu0 %2987
        %v2989 = vsel %vm1781, %v2908, 0.0
        %2990 = vadd.xlane.f32.xlu0 %v2989
        %v2991 = vpop.xlane.xlu0 %2990
        %v2992 = vsel %vm1781, %v2910, 0.0
        %2993 = vadd.xlane.f32.xlu0 %v2992
        %v2994 = vpop.xlane.xlu0 %2993
        %v2995 = vsel %vm1781, %v2912, 0.0
        %2996 = vadd.xlane.f32.xlu0 %v2995
        %v2997 = vpop.xlane.xlu0 %2996
        %v2998 = vsel %vm1781, %v2914, 0.0
        %2999 = vadd.xlane.f32.xlu0 %v2998
        %v3000 = vpop.xlane.xlu0 %2999
        %v3001 = vsel %vm1781, %v2916, 0.0
        %3002 = vadd.xlane.f32.xlu0 %v3001
        %v3003 = vpop.xlane.xlu0 %3002
        %v3004 = vsel %vm1781, %v2918, 0.0
        %3005 = vadd.xlane.f32.xlu0 %v3004
        %v3006 = vpop.xlane.xlu0 %3005
        %v3007 = vsel %vm1781, %v2920, 0.0
        %3008 = vadd.xlane.f32.xlu0 %v3007
        %v3009 = vpop.xlane.xlu0 %3008
        %v3010 = vsel %vm1781, %v2922, 0.0
        %3011 = vadd.xlane.f32.xlu0 %v3010
        %v3012 = vpop.xlane.xlu0 %3011
        %v3013 = vsel %vm1781, %v2924, 0.0
        %3014 = vadd.xlane.f32.xlu0 %v3013
        %v3015 = vpop.xlane.xlu0 %3014
        %v3016 = vsel %vm1781, %v2926, 0.0
        %3017 = vadd.xlane.f32.xlu0 %v3016
        %v3018 = vpop.xlane.xlu0 %3017
        %v3019 = vsel %vm1781, %v2928, 0.0
        %3020 = vadd.xlane.f32.xlu0 %v3019
        %v3021 = vpop.xlane.xlu0 %3020
        %v3022 = vsel %vm1781, %v2930, 0.0
        %3023 = vadd.xlane.f32.xlu0 %v3022
        %v3024 = vpop.xlane.xlu0 %3023
        %v3025 = vsel %vm1781, %v2932, 0.0
        %3026 = vadd.xlane.f32.xlu0 %v3025
        %v3027 = vpop.xlane.xlu0 %3026
        %v3028 = vsel %vm1781, %v2934, 0.0
        %3029 = vadd.xlane.f32.xlu0 %v3028
        %v3030 = vpop.xlane.xlu0 %3029
        %v3031 = vrcp.pop %v2937
        %v3032 = vrcp.pop %v2940
        %v3033 = vrcp.pop %v2943
        %v3034 = vrcp.pop %v2946
        %v3035 = vrcp.pop %v2949
        %v3036 = vrcp.pop %v2952
        %v3037 = vrcp.pop %v2955
        %v3038 = vrcp.pop %v2958
        %v3039 = vrcp.pop %v2961
        %v3040 = vrcp.pop %v2964
        %v3041 = vrcp.pop %v2967
        %v3042 = vrcp.pop %v2970
        %v3043 = vrcp.pop %v2973
        %v3044 = vrcp.pop %v2976
        %v3045 = vrcp.pop %v2979
        %v3046 = vrcp.pop %v2982
        %v3047 = vrcp.pop %v2985
        %v3048 = vrcp.pop %v2988
        %v3049 = vrcp.pop %v2991
        %v3050 = vrcp.pop %v2994
        %v3051 = vrcp.pop %v2997
        %v3052 = vrcp.pop %v3000
        %v3053 = vrcp.pop %v3003
        %v3054 = vrcp.pop %v3006
        %v3055 = vrcp.pop %v3009
        %v3056 = vrcp.pop %v3012
        %v3057 = vrcp.pop %v3015
        %v3058 = vrcp.pop %v3018
        %v3059 = vrcp.pop %v3021
        %v3060 = vrcp.pop %v3024
        %v3061 = vrcp.pop %v3027
        %v3062 = vrcp.pop %v3030
        %v3063 = vmul.f32 %v2872, %v3031
        %v3064 = vmul.f32 %v2874, %v3032
        %v3065 = vmul.f32 %v2876, %v3033
        %v3066 = vmul.f32 %v2878, %v3034
        %v3067 = vmul.f32 %v2880, %v3035
        %v3068 = vmul.f32 %v2882, %v3036
        %v3069 = vmul.f32 %v2884, %v3037
        %v3070 = vmul.f32 %v2886, %v3038
        %v3071 = vmul.f32 %v2888, %v3039
        %v3072 = vmul.f32 %v2890, %v3040
        %v3073 = vmul.f32 %v2892, %v3041
        %v3074 = vmul.f32 %v2894, %v3042
        %v3075 = vmul.f32 %v2896, %v3043
        %v3076 = vmul.f32 %v2898, %v3044
        %v3077 = vmul.f32 %v2900, %v3045
        %v3078 = vmul.f32 %v2902, %v3046
        %v3079 = vmul.f32 %v2904, %v3047
        %v3080 = vmul.f32 %v2906, %v3048
        %v3081 = vmul.f32 %v2908, %v3049
        %v3082 = vmul.f32 %v2910, %v3050
        %v3083 = vmul.f32 %v2912, %v3051
        %v3084 = vmul.f32 %v2914, %v3052
        %v3085 = vmul.f32 %v2916, %v3053
        %v3086 = vmul.f32 %v2918, %v3054
        %v3087 = vmul.f32 %v2920, %v3055
        %v3088 = vmul.f32 %v2922, %v3056
        %v3089 = vmul.f32 %v2924, %v3057
        %v3090 = vmul.f32 %v2926, %v3058
        %v3091 = vmul.f32 %v2928, %v3059
        %v3092 = vmul.f32 %v2930, %v3060
        %v3093 = vmul.f32 %v2932, %v3061
        %v3094 = vmul.f32 %v2934, %v3062
        %v3095 = vpack.c.bf16 %v3063, %v3063
        %v3096 = vpack.c.bf16 %v3064, %v3064
        %v3097 = vpack.c.bf16 %v3065, %v3065
        %v3098 = vpack.c.bf16 %v3066, %v3066
        %v3099 = vpack.c.bf16 %v3067, %v3067
        %v3100 = vpack.c.bf16 %v3068, %v3068
        %v3101 = vpack.c.bf16 %v3069, %v3069
        %v3102 = vpack.c.bf16 %v3070, %v3070
        %v3103 = vpack.c.bf16 %v3071, %v3071
        %v3104 = vpack.c.bf16 %v3072, %v3072
        %v3105 = vpack.c.bf16 %v3073, %v3073
        %v3106 = vpack.c.bf16 %v3074, %v3074
        %v3107 = vpack.c.bf16 %v3075, %v3075
        %v3108 = vpack.c.bf16 %v3076, %v3076
        %v3109 = vpack.c.bf16 %v3077, %v3077
        %v3110 = vpack.c.bf16 %v3078, %v3078
        %v3111 = vpack.c.bf16 %v3079, %v3079
        %v3112 = vpack.c.bf16 %v3080, %v3080
        %v3113 = vpack.c.bf16 %v3081, %v3081
        %v3114 = vpack.c.bf16 %v3082, %v3082
        %v3115 = vpack.c.bf16 %v3083, %v3083
        %v3116 = vpack.c.bf16 %v3084, %v3084
        %v3117 = vpack.c.bf16 %v3085, %v3085
        %v3118 = vpack.c.bf16 %v3086, %v3086
        %v3119 = vpack.c.bf16 %v3087, %v3087
        %v3120 = vpack.c.bf16 %v3088, %v3088
        %v3121 = vpack.c.bf16 %v3089, %v3089
        %v3122 = vpack.c.bf16 %v3090, %v3090
        %v3123 = vpack.c.bf16 %v3091, %v3091
        %v3124 = vpack.c.bf16 %v3092, %v3092
        %v3125 = vpack.c.bf16 %v3093, %v3093
        %v3126 = vpack.c.bf16 %v3094, %v3094
        %v3135 = vunpack.c.l.b16 %v3095
        %v3136 = vunpack.c.l.b16 %v3096
        %v3137 = vunpack.c.l.b16 %v3097
        %v3138 = vunpack.c.l.b16 %v3098
        %v3139 = vunpack.c.l.b16 %v3099
        %v3140 = vunpack.c.l.b16 %v3100
        %v3141 = vunpack.c.l.b16 %v3101
        %v3142 = vunpack.c.l.b16 %v3102
        %v3143 = vpack.c.b16 %v3136, %v3135
        %v3144 = vpack.c.b16 %v3138, %v3137
        %v3145 = vpack.c.b16 %v3140, %v3139
        %v3146 = vpack.c.b16 %v3142, %v3141
        %3147 = vrot.lane.b32.xlu0 %v1472, 56
        %v3148 = vpop.permute.xlu0 %3147
        %3149 = vrot.lane.b32.xlu0 %v1473, 56
        %v3150 = vpop.permute.xlu0 %3149
        %3151 = vrot.lane.b32.xlu0 %v1474, 56
        %v3152 = vpop.permute.xlu0 %3151
        %3153 = vrot.lane.b32.xlu0 %v1475, 56
        %v3154 = vpop.permute.xlu0 %3153
        %v3160 = vsel %vm1781, %v3143, 0
        %v3163 = vsel %vm1781, %v3144, 0
        %v3166 = vsel %vm1781, %v3145, 0
        %v3169 = vsel %vm1781, %v3146, 0
        %3171 = vmatpush.bf16.msra.mxu0 0
        %3172 = vmatpush.bf16.msra.mxu0 0
        %3173 = vmatpush.bf16.msra.mxu0 0
        %3174 = vmatpush.bf16.msra.mxu0 0
        %3175 = vmatpush.bf16.msra.mxu0 %v3154
        %3176 = vmatpush.bf16.msra.mxu0 %v3152
        %3177 = vmatpush.bf16.msra.mxu0 %v3150
        %3178 = vmatpush.bf16.msra.mxu0 %v3148
        %3179 = vmatmul.bf16.gmra.mxu0 %v3160
        %v3180 = vpop.f32.mrf.mxu0
        %v3181 = vadd.f32 0.0, %v3180
        %v3182 = vpop.f32.mrf.mxu0
        %v3183 = vadd.f32 0.0, %v3182
        %3184 = vmatmul.bf16.gmra.mxu0 %v3163
        %v3185 = vpop.f32.mrf.mxu0
        %v3186 = vadd.f32 0.0, %v3185
        %v3187 = vpop.f32.mrf.mxu0
        %v3188 = vadd.f32 0.0, %v3187
        %3189 = vmatmul.bf16.gmra.mxu0 %v3166
        %v3190 = vpop.f32.mrf.mxu0
        %v3191 = vadd.f32 0.0, %v3190
        %v3192 = vpop.f32.mrf.mxu0
        %v3193 = vadd.f32 0.0, %v3192
        %3194 = vmatmul.bf16.gmra.mxu0 %v3169
        %v3195 = vpop.f32.mrf.mxu0
        %v3196 = vadd.f32 0.0, %v3195
        %v3197 = vpop.f32.mrf.mxu0
        %v3198 = vadd.f32 0.0, %v3197
        %3199 = vdwg.mxu0
        %v3208 = vunpack.c.l.b16 %v3103
        %v3209 = vunpack.c.l.b16 %v3104
        %v3210 = vunpack.c.l.b16 %v3105
        %v3211 = vunpack.c.l.b16 %v3106
        %v3212 = vunpack.c.l.b16 %v3107
        %v3213 = vunpack.c.l.b16 %v3108
        %v3214 = vunpack.c.l.b16 %v3109
        %v3215 = vunpack.c.l.b16 %v3110
        %v3216 = vpack.c.b16 %v3209, %v3208
        %v3217 = vpack.c.b16 %v3211, %v3210
        %v3218 = vpack.c.b16 %v3213, %v3212
        %v3219 = vpack.c.b16 %v3215, %v3214
        %3220 = vrot.lane.b32.xlu0 %v1554, 56
        %v3221 = vpop.permute.xlu0 %3220
        %3222 = vrot.lane.b32.xlu0 %v1555, 56
        %v3223 = vpop.permute.xlu0 %3222
        %3224 = vrot.lane.b32.xlu0 %v1556, 56
        %v3225 = vpop.permute.xlu0 %3224
        %3226 = vrot.lane.b32.xlu0 %v1557, 56
        %v3227 = vpop.permute.xlu0 %3226
        %v3233 = vsel %vm1781, %v3216, 0
        %v3236 = vsel %vm1781, %v3217, 0
        %v3239 = vsel %vm1781, %v3218, 0
        %v3242 = vsel %vm1781, %v3219, 0
        %3244 = vmatpush.bf16.msra.mxu0 0
        %3245 = vmatpush.bf16.msra.mxu0 0
        %3246 = vmatpush.bf16.msra.mxu0 0
        %3247 = vmatpush.bf16.msra.mxu0 0
        %3248 = vmatpush.bf16.msra.mxu0 %v3227
        %3249 = vmatpush.bf16.msra.mxu0 %v3225
        %3250 = vmatpush.bf16.msra.mxu0 %v3223
        %3251 = vmatpush.bf16.msra.mxu0 %v3221
        %3252 = vmatmul.bf16.gmra.mxu0 %v3233
        %v3253 = vpop.f32.mrf.mxu0
        %v3254 = vadd.f32 0.0, %v3253
        %v3255 = vpop.f32.mrf.mxu0
        %v3256 = vadd.f32 0.0, %v3255
        %3257 = vmatmul.bf16.gmra.mxu0 %v3236
        %v3258 = vpop.f32.mrf.mxu0
        %v3259 = vadd.f32 0.0, %v3258
        %v3260 = vpop.f32.mrf.mxu0
        %v3261 = vadd.f32 0.0, %v3260
        %3262 = vmatmul.bf16.gmra.mxu0 %v3239
        %v3263 = vpop.f32.mrf.mxu0
        %v3264 = vadd.f32 0.0, %v3263
        %v3265 = vpop.f32.mrf.mxu0
        %v3266 = vadd.f32 0.0, %v3265
        %3267 = vmatmul.bf16.gmra.mxu0 %v3242
        %v3268 = vpop.f32.mrf.mxu0
        %v3269 = vadd.f32 0.0, %v3268
        %v3270 = vpop.f32.mrf.mxu0
        %v3271 = vadd.f32 0.0, %v3270
        %3272 = vdwg.mxu0
        %v3281 = vunpack.c.l.b16 %v3111
        %v3282 = vunpack.c.l.b16 %v3112
        %v3283 = vunpack.c.l.b16 %v3113
        %v3284 = vunpack.c.l.b16 %v3114
        %v3285 = vunpack.c.l.b16 %v3115
        %v3286 = vunpack.c.l.b16 %v3116
        %v3287 = vunpack.c.l.b16 %v3117
        %v3288 = vunpack.c.l.b16 %v3118
        %v3289 = vpack.c.b16 %v3282, %v3281
        %v3290 = vpack.c.b16 %v3284, %v3283
        %v3291 = vpack.c.b16 %v3286, %v3285
        %v3292 = vpack.c.b16 %v3288, %v3287
        %3293 = vrot.lane.b32.xlu0 %v1635, 56
        %v3294 = vpop.permute.xlu0 %3293
        %3295 = vrot.lane.b32.xlu0 %v1636, 56
        %v3296 = vpop.permute.xlu0 %3295
        %3297 = vrot.lane.b32.xlu0 %v1637, 56
        %v3298 = vpop.permute.xlu0 %3297
        %3299 = vrot.lane.b32.xlu0 %v1638, 56
        %v3300 = vpop.permute.xlu0 %3299
        %v3306 = vsel %vm1781, %v3289, 0
        %v3309 = vsel %vm1781, %v3290, 0
        %v3312 = vsel %vm1781, %v3291, 0
        %v3315 = vsel %vm1781, %v3292, 0
        %3317 = vmatpush.bf16.msra.mxu0 0
        %3318 = vmatpush.bf16.msra.mxu0 0
        %3319 = vmatpush.bf16.msra.mxu0 0
        %3320 = vmatpush.bf16.msra.mxu0 0
        %3321 = vmatpush.bf16.msra.mxu0 %v3300
        %3322 = vmatpush.bf16.msra.mxu0 %v3298
        %3323 = vmatpush.bf16.msra.mxu0 %v3296
        %3324 = vmatpush.bf16.msra.mxu0 %v3294
        %3325 = vmatmul.bf16.gmra.mxu0 %v3306
        %v3326 = vpop.f32.mrf.mxu0
        %v3327 = vadd.f32 0.0, %v3326
        %v3328 = vpop.f32.mrf.mxu0
        %v3329 = vadd.f32 0.0, %v3328
        %3330 = vmatmul.bf16.gmra.mxu0 %v3309
        %v3331 = vpop.f32.mrf.mxu0
        %v3332 = vadd.f32 0.0, %v3331
        %v3333 = vpop.f32.mrf.mxu0
        %v3334 = vadd.f32 0.0, %v3333
        %3335 = vmatmul.bf16.gmra.mxu0 %v3312
        %v3336 = vpop.f32.mrf.mxu0
        %v3337 = vadd.f32 0.0, %v3336
        %v3338 = vpop.f32.mrf.mxu0
        %v3339 = vadd.f32 0.0, %v3338
        %3340 = vmatmul.bf16.gmra.mxu0 %v3315
        %v3341 = vpop.f32.mrf.mxu0
        %v3342 = vadd.f32 0.0, %v3341
        %v3343 = vpop.f32.mrf.mxu0
        %v3344 = vadd.f32 0.0, %v3343
        %3345 = vdwg.mxu0
        %v3354 = vunpack.c.l.b16 %v3119
        %v3355 = vunpack.c.l.b16 %v3120
        %v3356 = vunpack.c.l.b16 %v3121
        %v3357 = vunpack.c.l.b16 %v3122
        %v3358 = vunpack.c.l.b16 %v3123
        %v3359 = vunpack.c.l.b16 %v3124
        %v3360 = vunpack.c.l.b16 %v3125
        %v3361 = vunpack.c.l.b16 %v3126
        %v3362 = vpack.c.b16 %v3355, %v3354
        %v3363 = vpack.c.b16 %v3357, %v3356
        %v3364 = vpack.c.b16 %v3359, %v3358
        %v3365 = vpack.c.b16 %v3361, %v3360
        %3366 = vrot.lane.b32.xlu0 %v1716, 56
        %v3367 = vpop.permute.xlu0 %3366
        %3368 = vrot.lane.b32.xlu0 %v1717, 56
        %v3369 = vpop.permute.xlu0 %3368
        %3370 = vrot.lane.b32.xlu0 %v1718, 56
        %v3371 = vpop.permute.xlu0 %3370
        %3372 = vrot.lane.b32.xlu0 %v1719, 56
        %v3373 = vpop.permute.xlu0 %3372
        %v3379 = vsel %vm1781, %v3362, 0
        %v3382 = vsel %vm1781, %v3363, 0
        %v3385 = vsel %vm1781, %v3364, 0
        %v3388 = vsel %vm1781, %v3365, 0
        %3390 = vmatpush.bf16.msra.mxu0 0
        %3391 = vmatpush.bf16.msra.mxu0 0
        %3392 = vmatpush.bf16.msra.mxu0 0
        %3393 = vmatpush.bf16.msra.mxu0 0
        %3394 = vmatpush.bf16.msra.mxu0 %v3373
        %3395 = vmatpush.bf16.msra.mxu0 %v3371
        %3396 = vmatpush.bf16.msra.mxu0 %v3369
        %3397 = vmatpush.bf16.msra.mxu0 %v3367
        %3398 = vmatmul.bf16.gmra.mxu0 %v3379
        %v3399 = vpop.f32.mrf.mxu0
        %v3400 = vadd.f32 0.0, %v3399
        %v3401 = vpop.f32.mrf.mxu0
        %v3402 = vadd.f32 0.0, %v3401
        %3403 = vmatmul.bf16.gmra.mxu0 %v3382
        %v3404 = vpop.f32.mrf.mxu0
        %v3405 = vadd.f32 0.0, %v3404
        %v3406 = vpop.f32.mrf.mxu0
        %v3407 = vadd.f32 0.0, %v3406
        %3408 = vmatmul.bf16.gmra.mxu0 %v3385
        %v3409 = vpop.f32.mrf.mxu0
        %v3410 = vadd.f32 0.0, %v3409
        %v3411 = vpop.f32.mrf.mxu0
        %v3412 = vadd.f32 0.0, %v3411
        %3413 = vmatmul.bf16.gmra.mxu0 %v3388
        %v3414 = vpop.f32.mrf.mxu0
        %v3415 = vadd.f32 0.0, %v3414
        %v3416 = vpop.f32.mrf.mxu0
        %v3417 = vadd.f32 0.0, %v3416
        %3418 = vdwg.mxu0
        %s3419 = scalar_lea.vmem [#allocation8], 128
        %v3420 = vld [vmem:[%s3419] sm:$0xff]
        %v3421 = vld [vmem:[%s3419 + $0x8] sm:$0xff]
        %v3422 = vld [vmem:[%s3419 + $0x10] sm:$0xff]
        %v3423 = vld [vmem:[%s3419 + $0x18] sm:$0xff]
        %v3424 = vld [vmem:[%s3419 + $0x20] sm:$0xff]
        %v3425 = vld [vmem:[%s3419 + $0x28] sm:$0xff]
        %v3426 = vld [vmem:[%s3419 + $0x30] sm:$0xff]
        %v3427 = vld [vmem:[%s3419 + $0x38] sm:$0xff]
        %3428 = vrot.lane.b32.xlu0 %v1472, 112
        %v3429 = vpop.permute.xlu0 %3428
        %3430 = vrot.lane.b32.xlu0 %v1473, 112
        %v3431 = vpop.permute.xlu0 %3430
        %3432 = vrot.lane.b32.xlu0 %v1474, 112
        %v3433 = vpop.permute.xlu0 %3432
        %3434 = vrot.lane.b32.xlu0 %v1475, 112
        %v3435 = vpop.permute.xlu0 %3434
        %3436 = vrot.lane.b32.xlu0 %v1472, 80
        %v3437 = vpop.permute.xlu0 %3436
        %3438 = vrot.lane.b32.xlu0 %v1473, 80
        %v3439 = vpop.permute.xlu0 %3438
        %3440 = vrot.lane.b32.xlu0 %v1474, 80
        %v3441 = vpop.permute.xlu0 %3440
        %3442 = vrot.lane.b32.xlu0 %v1475, 80
        %v3443 = vpop.permute.xlu0 %3442
        %v3445 = vsel %vm1484, %v3429, 0
        %v3448 = vsel %vm1484, %v3431, 0
        %v3451 = vsel %vm1484, %v3433, 0
        %v3454 = vsel %vm1484, %v3435, 0
        %v3457 = vsel %vm1484, %v3437, 0
        %v3460 = vsel %vm1484, %v3439, 0
        %v3463 = vsel %vm1484, %v3441, 0
        %v3466 = vsel %vm1484, %v3443, 0
        %3468 = vmatpush.bf16.xpose.msra.mxu0 0
        %3469 = vmatpush.bf16.xpose.msra.mxu0 0
        %3470 = vmatpush.bf16.xpose.msra.mxu0 0
        %3471 = vmatpush.bf16.xpose.msra.mxu0 0
        %3472 = vmatpush.bf16.xpose.msra.mxu0 %v3466
        %3473 = vmatpush.bf16.xpose.msra.mxu0 %v3463
        %3474 = vmatpush.bf16.xpose.msra.mxu0 %v3460
        %3475 = vmatpush.bf16.xpose.msra.mxu0 %v3457
        %3476 = vmatmul.bf16.gmra.mxu0 %v3445
        %v3477 = vpop.f32.mrf.mxu0
        %v3478 = vadd.f32 %v3420, %v3477
        %v3479 = vpop.f32.mrf.mxu0
        %v3480 = vadd.f32 %v3421, %v3479
        %3481 = vmatmul.bf16.gmra.mxu0 %v3448
        %v3482 = vpop.f32.mrf.mxu0
        %v3483 = vadd.f32 %v3422, %v3482
        %v3484 = vpop.f32.mrf.mxu0
        %v3485 = vadd.f32 %v3423, %v3484
        %3486 = vmatmul.bf16.gmra.mxu0 %v3451
        %v3487 = vpop.f32.mrf.mxu0
        %v3488 = vadd.f32 %v3424, %v3487
        %v3489 = vpop.f32.mrf.mxu0
        %v3490 = vadd.f32 %v3425, %v3489
        %3491 = vmatmul.bf16.gmra.mxu0 %v3454
        %v3492 = vpop.f32.mrf.mxu0
        %v3493 = vadd.f32 %v3426, %v3492
        %v3494 = vpop.f32.mrf.mxu0
        %v3495 = vadd.f32 %v3427, %v3494
        %3496 = vdwg.mxu0
        %3497 = vrot.lane.b32.xlu0 %v1554, 112
        %v3498 = vpop.permute.xlu0 %3497
        %3499 = vrot.lane.b32.xlu0 %v1555, 112
        %v3500 = vpop.permute.xlu0 %3499
        %3501 = vrot.lane.b32.xlu0 %v1556, 112
        %v3502 = vpop.permute.xlu0 %3501
        %3503 = vrot.lane.b32.xlu0 %v1557, 112
        %v3504 = vpop.permute.xlu0 %3503
        %3505 = vrot.lane.b32.xlu0 %v1554, 80
        %v3506 = vpop.permute.xlu0 %3505
        %3507 = vrot.lane.b32.xlu0 %v1555, 80
        %v3508 = vpop.permute.xlu0 %3507
        %3509 = vrot.lane.b32.xlu0 %v1556, 80
        %v3510 = vpop.permute.xlu0 %3509
        %3511 = vrot.lane.b32.xlu0 %v1557, 80
        %v3512 = vpop.permute.xlu0 %3511
        %v3514 = vsel %vm1484, %v3498, 0
        %v3517 = vsel %vm1484, %v3500, 0
        %v3520 = vsel %vm1484, %v3502, 0
        %v3523 = vsel %vm1484, %v3504, 0
        %v3526 = vsel %vm1484, %v3506, 0
        %v3529 = vsel %vm1484, %v3508, 0
        %v3532 = vsel %vm1484, %v3510, 0
        %v3535 = vsel %vm1484, %v3512, 0
        %3537 = vmatpush.bf16.xpose.msra.mxu0 0
        %3538 = vmatpush.bf16.xpose.msra.mxu0 0
        %3539 = vmatpush.bf16.xpose.msra.mxu0 0
        %3540 = vmatpush.bf16.xpose.msra.mxu0 0
        %3541 = vmatpush.bf16.xpose.msra.mxu0 %v3535
        %3542 = vmatpush.bf16.xpose.msra.mxu0 %v3532
        %3543 = vmatpush.bf16.xpose.msra.mxu0 %v3529
        %3544 = vmatpush.bf16.xpose.msra.mxu0 %v3526
        %3545 = vmatmul.bf16.gmra.mxu0 %v3514
        %v3546 = vpop.f32.mrf.mxu0
        %v3547 = vadd.f32 %v3420, %v3546
        %v3548 = vpop.f32.mrf.mxu0
        %v3549 = vadd.f32 %v3421, %v3548
        %3550 = vmatmul.bf16.gmra.mxu0 %v3517
        %v3551 = vpop.f32.mrf.mxu0
        %v3552 = vadd.f32 %v3422, %v3551
        %v3553 = vpop.f32.mrf.mxu0
        %v3554 = vadd.f32 %v3423, %v3553
        %3555 = vmatmul.bf16.gmra.mxu0 %v3520
        %v3556 = vpop.f32.mrf.mxu0
        %v3557 = vadd.f32 %v3424, %v3556
        %v3558 = vpop.f32.mrf.mxu0
        %v3559 = vadd.f32 %v3425, %v3558
        %3560 = vmatmul.bf16.gmra.mxu0 %v3523
        %v3561 = vpop.f32.mrf.mxu0
        %v3562 = vadd.f32 %v3426, %v3561
        %v3563 = vpop.f32.mrf.mxu0
        %v3564 = vadd.f32 %v3427, %v3563
        %3565 = vdwg.mxu0
        %3566 = vrot.lane.b32.xlu0 %v1635, 112
        %v3567 = vpop.permute.xlu0 %3566
        %3568 = vrot.lane.b32.xlu0 %v1636, 112
        %v3569 = vpop.permute.xlu0 %3568
        %3570 = vrot.lane.b32.xlu0 %v1637, 112
        %v3571 = vpop.permute.xlu0 %3570
        %3572 = vrot.lane.b32.xlu0 %v1638, 112
        %v3573 = vpop.permute.xlu0 %3572
        %3574 = vrot.lane.b32.xlu0 %v1635, 80
        %v3575 = vpop.permute.xlu0 %3574
        %3576 = vrot.lane.b32.xlu0 %v1636, 80
        %v3577 = vpop.permute.xlu0 %3576
        %3578 = vrot.lane.b32.xlu0 %v1637, 80
        %v3579 = vpop.permute.xlu0 %3578
        %3580 = vrot.lane.b32.xlu0 %v1638, 80
        %v3581 = vpop.permute.xlu0 %3580
        %v3583 = vsel %vm1484, %v3567, 0
        %v3586 = vsel %vm1484, %v3569, 0
        %v3589 = vsel %vm1484, %v3571, 0
        %v3592 = vsel %vm1484, %v3573, 0
        %v3595 = vsel %vm1484, %v3575, 0
        %v3598 = vsel %vm1484, %v3577, 0
        %v3601 = vsel %vm1484, %v3579, 0
        %v3604 = vsel %vm1484, %v3581, 0
        %3606 = vmatpush.bf16.xpose.msra.mxu0 0
        %3607 = vmatpush.bf16.xpose.msra.mxu0 0
        %3608 = vmatpush.bf16.xpose.msra.mxu0 0
        %3609 = vmatpush.bf16.xpose.msra.mxu0 0
        %3610 = vmatpush.bf16.xpose.msra.mxu0 %v3604
        %3611 = vmatpush.bf16.xpose.msra.mxu0 %v3601
        %3612 = vmatpush.bf16.xpose.msra.mxu0 %v3598
        %3613 = vmatpush.bf16.xpose.msra.mxu0 %v3595
        %3614 = vmatmul.bf16.gmra.mxu0 %v3583
        %v3615 = vpop.f32.mrf.mxu0
        %v3616 = vadd.f32 %v3420, %v3615
        %v3617 = vpop.f32.mrf.mxu0
        %v3618 = vadd.f32 %v3421, %v3617
        %3619 = vmatmul.bf16.gmra.mxu0 %v3586
        %v3620 = vpop.f32.mrf.mxu0
        %v3621 = vadd.f32 %v3422, %v3620
        %v3622 = vpop.f32.mrf.mxu0
        %v3623 = vadd.f32 %v3423, %v3622
        %3624 = vmatmul.bf16.gmra.mxu0 %v3589
        %v3625 = vpop.f32.mrf.mxu0
        %v3626 = vadd.f32 %v3424, %v3625
        %v3627 = vpop.f32.mrf.mxu0
        %v3628 = vadd.f32 %v3425, %v3627
        %3629 = vmatmul.bf16.gmra.mxu0 %v3592
        %v3630 = vpop.f32.mrf.mxu0
        %v3631 = vadd.f32 %v3426, %v3630
        %v3632 = vpop.f32.mrf.mxu0
        %v3633 = vadd.f32 %v3427, %v3632
        %3634 = vdwg.mxu0
        %3635 = vrot.lane.b32.xlu0 %v1716, 112
        %v3636 = vpop.permute.xlu0 %3635
        %3637 = vrot.lane.b32.xlu0 %v1717, 112
        %v3638 = vpop.permute.xlu0 %3637
        %3639 = vrot.lane.b32.xlu0 %v1718, 112
        %v3640 = vpop.permute.xlu0 %3639
        %3641 = vrot.lane.b32.xlu0 %v1719, 112
        %v3642 = vpop.permute.xlu0 %3641
        %3643 = vrot.lane.b32.xlu0 %v1716, 80
        %v3644 = vpop.permute.xlu0 %3643
        %3645 = vrot.lane.b32.xlu0 %v1717, 80
        %v3646 = vpop.permute.xlu0 %3645
        %3647 = vrot.lane.b32.xlu0 %v1718, 80
        %v3648 = vpop.permute.xlu0 %3647
        %3649 = vrot.lane.b32.xlu0 %v1719, 80
        %v3650 = vpop.permute.xlu0 %3649
        %v3652 = vsel %vm1484, %v3636, 0
        %v3655 = vsel %vm1484, %v3638, 0
        %v3658 = vsel %vm1484, %v3640, 0
        %v3661 = vsel %vm1484, %v3642, 0
        %v3664 = vsel %vm1484, %v3644, 0
        %v3667 = vsel %vm1484, %v3646, 0
        %v3670 = vsel %vm1484, %v3648, 0
        %v3673 = vsel %vm1484, %v3650, 0
        %3675 = vmatpush.bf16.xpose.msra.mxu0 0
        %3676 = vmatpush.bf16.xpose.msra.mxu0 0
        %3677 = vmatpush.bf16.xpose.msra.mxu0 0
        %3678 = vmatpush.bf16.xpose.msra.mxu0 0
        %3679 = vmatpush.bf16.xpose.msra.mxu0 %v3673
        %3680 = vmatpush.bf16.xpose.msra.mxu0 %v3670
        %3681 = vmatpush.bf16.xpose.msra.mxu0 %v3667
        %3682 = vmatpush.bf16.xpose.msra.mxu0 %v3664
        %3683 = vmatmul.bf16.gmra.mxu0 %v3652
        %v3684 = vpop.f32.mrf.mxu0
        %v3685 = vadd.f32 %v3420, %v3684
        %v3686 = vpop.f32.mrf.mxu0
        %v3687 = vadd.f32 %v3421, %v3686
        %3688 = vmatmul.bf16.gmra.mxu0 %v3655
        %v3689 = vpop.f32.mrf.mxu0
        %v3690 = vadd.f32 %v3422, %v3689
        %v3691 = vpop.f32.mrf.mxu0
        %v3692 = vadd.f32 %v3423, %v3691
        %3693 = vmatmul.bf16.gmra.mxu0 %v3658
        %v3694 = vpop.f32.mrf.mxu0
        %v3695 = vadd.f32 %v3424, %v3694
        %v3696 = vpop.f32.mrf.mxu0
        %v3697 = vadd.f32 %v3425, %v3696
        %3698 = vmatmul.bf16.gmra.mxu0 %v3661
        %v3699 = vpop.f32.mrf.mxu0
        %v3700 = vadd.f32 %v3426, %v3699
        %v3701 = vpop.f32.mrf.mxu0
        %v3702 = vadd.f32 %v3427, %v3701
        %3703 = vdwg.mxu0
        %v3704 = vsel %vm1781, %v3478, -inf
        %3705 = vmax.xlane.f32.xlu0 %v3704
        %v3706 = vpop.xlane.xlu0 %3705
        %v3707 = vsel %vm1781, %v3480, -inf
        %3708 = vmax.xlane.f32.xlu0 %v3707
        %v3709 = vpop.xlane.xlu0 %3708
        %v3710 = vsel %vm1781, %v3483, -inf
        %3711 = vmax.xlane.f32.xlu0 %v3710
        %v3712 = vpop.xlane.xlu0 %3711
        %v3713 = vsel %vm1781, %v3485, -inf
        %3714 = vmax.xlane.f32.xlu0 %v3713
        %v3715 = vpop.xlane.xlu0 %3714
        %v3716 = vsel %vm1781, %v3488, -inf
        %3717 = vmax.xlane.f32.xlu0 %v3716
        %v3718 = vpop.xlane.xlu0 %3717
        %v3719 = vsel %vm1781, %v3490, -inf
        %3720 = vmax.xlane.f32.xlu0 %v3719
        %v3721 = vpop.xlane.xlu0 %3720
        %v3722 = vsel %vm1781, %v3493, -inf
        %3723 = vmax.xlane.f32.xlu0 %v3722
        %v3724 = vpop.xlane.xlu0 %3723
        %v3725 = vsel %vm1781, %v3495, -inf
        %3726 = vmax.xlane.f32.xlu0 %v3725
        %v3727 = vpop.xlane.xlu0 %3726
        %v3728 = vsel %vm1781, %v3547, -inf
        %3729 = vmax.xlane.f32.xlu0 %v3728
        %v3730 = vpop.xlane.xlu0 %3729
        %v3731 = vsel %vm1781, %v3549, -inf
        %3732 = vmax.xlane.f32.xlu0 %v3731
        %v3733 = vpop.xlane.xlu0 %3732
        %v3734 = vsel %vm1781, %v3552, -inf
        %3735 = vmax.xlane.f32.xlu0 %v3734
        %v3736 = vpop.xlane.xlu0 %3735
        %v3737 = vsel %vm1781, %v3554, -inf
        %3738 = vmax.xlane.f32.xlu0 %v3737
        %v3739 = vpop.xlane.xlu0 %3738
        %v3740 = vsel %vm1781, %v3557, -inf
        %3741 = vmax.xlane.f32.xlu0 %v3740
        %v3742 = vpop.xlane.xlu0 %3741
        %v3743 = vsel %vm1781, %v3559, -inf
        %3744 = vmax.xlane.f32.xlu0 %v3743
        %v3745 = vpop.xlane.xlu0 %3744
        %v3746 = vsel %vm1781, %v3562, -inf
        %3747 = vmax.xlane.f32.xlu0 %v3746
        %v3748 = vpop.xlane.xlu0 %3747
        %v3749 = vsel %vm1781, %v3564, -inf
        %3750 = vmax.xlane.f32.xlu0 %v3749
        %v3751 = vpop.xlane.xlu0 %3750
        %v3752 = vsel %vm1781, %v3616, -inf
        %3753 = vmax.xlane.f32.xlu0 %v3752
        %v3754 = vpop.xlane.xlu0 %3753
        %v3755 = vsel %vm1781, %v3618, -inf
        %3756 = vmax.xlane.f32.xlu0 %v3755
        %v3757 = vpop.xlane.xlu0 %3756
        %v3758 = vsel %vm1781, %v3621, -inf
        %3759 = vmax.xlane.f32.xlu0 %v3758
        %v3760 = vpop.xlane.xlu0 %3759
        %v3761 = vsel %vm1781, %v3623, -inf
        %3762 = vmax.xlane.f32.xlu0 %v3761
        %v3763 = vpop.xlane.xlu0 %3762
        %v3764 = vsel %vm1781, %v3626, -inf
        %3765 = vmax.xlane.f32.xlu0 %v3764
        %v3766 = vpop.xlane.xlu0 %3765
        %v3767 = vsel %vm1781, %v3628, -inf
        %3768 = vmax.xlane.f32.xlu0 %v3767
        %v3769 = vpop.xlane.xlu0 %3768
        %v3770 = vsel %vm1781, %v3631, -inf
        %3771 = vmax.xlane.f32.xlu0 %v3770
        %v3772 = vpop.xlane.xlu0 %3771
        %v3773 = vsel %vm1781, %v3633, -inf
        %3774 = vmax.xlane.f32.xlu0 %v3773
        %v3775 = vpop.xlane.xlu0 %3774
        %v3776 = vsel %vm1781, %v3685, -inf
        %3777 = vmax.xlane.f32.xlu0 %v3776
        %v3778 = vpop.xlane.xlu0 %3777
        %v3779 = vsel %vm1781, %v3687, -inf
        %3780 = vmax.xlane.f32.xlu0 %v3779
        %v3781 = vpop.xlane.xlu0 %3780
        %v3782 = vsel %vm1781, %v3690, -inf
        %3783 = vmax.xlane.f32.xlu0 %v3782
        %v3784 = vpop.xlane.xlu0 %3783
        %v3785 = vsel %vm1781, %v3692, -inf
        %3786 = vmax.xlane.f32.xlu0 %v3785
        %v3787 = vpop.xlane.xlu0 %3786
        %v3788 = vsel %vm1781, %v3695, -inf
        %3789 = vmax.xlane.f32.xlu0 %v3788
        %v3790 = vpop.xlane.xlu0 %3789
        %v3791 = vsel %vm1781, %v3697, -inf
        %3792 = vmax.xlane.f32.xlu0 %v3791
        %v3793 = vpop.xlane.xlu0 %3792
        %v3794 = vsel %vm1781, %v3700, -inf
        %3795 = vmax.xlane.f32.xlu0 %v3794
        %v3796 = vpop.xlane.xlu0 %3795
        %v3797 = vsel %vm1781, %v3702, -inf
        %3798 = vmax.xlane.f32.xlu0 %v3797
        %v3799 = vpop.xlane.xlu0 %3798
        %v3800 = vsub.f32 %v3478, %v3706
        %v3801 = vsub.f32 %v3480, %v3709
        %v3802 = vsub.f32 %v3483, %v3712
        %v3803 = vsub.f32 %v3485, %v3715
        %v3804 = vsub.f32 %v3488, %v3718
        %v3805 = vsub.f32 %v3490, %v3721
        %v3806 = vsub.f32 %v3493, %v3724
        %v3807 = vsub.f32 %v3495, %v3727
        %v3808 = vsub.f32 %v3547, %v3730
        %v3809 = vsub.f32 %v3549, %v3733
        %v3810 = vsub.f32 %v3552, %v3736
        %v3811 = vsub.f32 %v3554, %v3739
        %v3812 = vsub.f32 %v3557, %v3742
        %v3813 = vsub.f32 %v3559, %v3745
        %v3814 = vsub.f32 %v3562, %v3748
        %v3815 = vsub.f32 %v3564, %v3751
        %v3816 = vsub.f32 %v3616, %v3754
        %v3817 = vsub.f32 %v3618, %v3757
        %v3818 = vsub.f32 %v3621, %v3760
        %v3819 = vsub.f32 %v3623, %v3763
        %v3820 = vsub.f32 %v3626, %v3766
        %v3821 = vsub.f32 %v3628, %v3769
        %v3822 = vsub.f32 %v3631, %v3772
        %v3823 = vsub.f32 %v3633, %v3775
        %v3824 = vsub.f32 %v3685, %v3778
        %v3825 = vsub.f32 %v3687, %v3781
        %v3826 = vsub.f32 %v3690, %v3784
        %v3827 = vsub.f32 %v3692, %v3787
        %v3828 = vsub.f32 %v3695, %v3790
        %v3829 = vsub.f32 %v3697, %v3793
        %v3830 = vsub.f32 %v3700, %v3796
        %v3831 = vsub.f32 %v3702, %v3799
        %v3832 = vmul.f32 %v3800, 1.442695
        %v3833 = vpow.pop %v3832
        %v3834 = vmul.f32 %v3801, 1.442695
        %v3835 = vpow.pop %v3834
        %v3836 = vmul.f32 %v3802, 1.442695
        %v3837 = vpow.pop %v3836
        %v3838 = vmul.f32 %v3803, 1.442695
        %v3839 = vpow.pop %v3838
        %v3840 = vmul.f32 %v3804, 1.442695
        %v3841 = vpow.pop %v3840
        %v3842 = vmul.f32 %v3805, 1.442695
        %v3843 = vpow.pop %v3842
        %v3844 = vmul.f32 %v3806, 1.442695
        %v3845 = vpow.pop %v3844
        %v3846 = vmul.f32 %v3807, 1.442695
        %v3847 = vpow.pop %v3846
        %v3848 = vmul.f32 %v3808, 1.442695
        %v3849 = vpow.pop %v3848
        %v3850 = vmul.f32 %v3809, 1.442695
        %v3851 = vpow.pop %v3850
        %v3852 = vmul.f32 %v3810, 1.442695
        %v3853 = vpow.pop %v3852
        %v3854 = vmul.f32 %v3811, 1.442695
        %v3855 = vpow.pop %v3854
        %v3856 = vmul.f32 %v3812, 1.442695
        %v3857 = vpow.pop %v3856
        %v3858 = vmul.f32 %v3813, 1.442695
        %v3859 = vpow.pop %v3858
        %v3860 = vmul.f32 %v3814, 1.442695
        %v3861 = vpow.pop %v3860
        %v3862 = vmul.f32 %v3815, 1.442695
        %v3863 = vpow.pop %v3862
        %v3864 = vmul.f32 %v3816, 1.442695
        %v3865 = vpow.pop %v3864
        %v3866 = vmul.f32 %v3817, 1.442695
        %v3867 = vpow.pop %v3866
        %v3868 = vmul.f32 %v3818, 1.442695
        %v3869 = vpow.pop %v3868
        %v3870 = vmul.f32 %v3819, 1.442695
        %v3871 = vpow.pop %v3870
        %v3872 = vmul.f32 %v3820, 1.442695
        %v3873 = vpow.pop %v3872
        %v3874 = vmul.f32 %v3821, 1.442695
        %v3875 = vpow.pop %v3874
        %v3876 = vmul.f32 %v3822, 1.442695
        %v3877 = vpow.pop %v3876
        %v3878 = vmul.f32 %v3823, 1.442695
        %v3879 = vpow.pop %v3878
        %v3880 = vmul.f32 %v3824, 1.442695
        %v3881 = vpow.pop %v3880
        %v3882 = vmul.f32 %v3825, 1.442695
        %v3883 = vpow.pop %v3882
        %v3884 = vmul.f32 %v3826, 1.442695
        %v3885 = vpow.pop %v3884
        %v3886 = vmul.f32 %v3827, 1.442695
        %v3887 = vpow.pop %v3886
        %v3888 = vmul.f32 %v3828, 1.442695
        %v3889 = vpow.pop %v3888
        %v3890 = vmul.f32 %v3829, 1.442695
        %v3891 = vpow.pop %v3890
        %v3892 = vmul.f32 %v3830, 1.442695
        %v3893 = vpow.pop %v3892
        %v3894 = vmul.f32 %v3831, 1.442695
        %v3895 = vpow.pop %v3894
        %v3896 = vsel %vm1781, %v3833, 0.0
        %3897 = vadd.xlane.f32.xlu0 %v3896
        %v3898 = vpop.xlane.xlu0 %3897
        %v3899 = vsel %vm1781, %v3835, 0.0
        %3900 = vadd.xlane.f32.xlu0 %v3899
        %v3901 = vpop.xlane.xlu0 %3900
        %v3902 = vsel %vm1781, %v3837, 0.0
        %3903 = vadd.xlane.f32.xlu0 %v3902
        %v3904 = vpop.xlane.xlu0 %3903
        %v3905 = vsel %vm1781, %v3839, 0.0
        %3906 = vadd.xlane.f32.xlu0 %v3905
        %v3907 = vpop.xlane.xlu0 %3906
        %v3908 = vsel %vm1781, %v3841, 0.0
        %3909 = vadd.xlane.f32.xlu0 %v3908
        %v3910 = vpop.xlane.xlu0 %3909
        %v3911 = vsel %vm1781, %v3843, 0.0
        %3912 = vadd.xlane.f32.xlu0 %v3911
        %v3913 = vpop.xlane.xlu0 %3912
        %v3914 = vsel %vm1781, %v3845, 0.0
        %3915 = vadd.xlane.f32.xlu0 %v3914
        %v3916 = vpop.xlane.xlu0 %3915
        %v3917 = vsel %vm1781, %v3847, 0.0
        %3918 = vadd.xlane.f32.xlu0 %v3917
        %v3919 = vpop.xlane.xlu0 %3918
        %v3920 = vsel %vm1781, %v3849, 0.0
        %3921 = vadd.xlane.f32.xlu0 %v3920
        %v3922 = vpop.xlane.xlu0 %3921
        %v3923 = vsel %vm1781, %v3851, 0.0
        %3924 = vadd.xlane.f32.xlu0 %v3923
        %v3925 = vpop.xlane.xlu0 %3924
        %v3926 = vsel %vm1781, %v3853, 0.0
        %3927 = vadd.xlane.f32.xlu0 %v3926
        %v3928 = vpop.xlane.xlu0 %3927
        %v3929 = vsel %vm1781, %v3855, 0.0
        %3930 = vadd.xlane.f32.xlu0 %v3929
        %v3931 = vpop.xlane.xlu0 %3930
        %v3932 = vsel %vm1781, %v3857, 0.0
        %3933 = vadd.xlane.f32.xlu0 %v3932
        %v3934 = vpop.xlane.xlu0 %3933
        %v3935 = vsel %vm1781, %v3859, 0.0
        %3936 = vadd.xlane.f32.xlu0 %v3935
        %v3937 = vpop.xlane.xlu0 %3936
        %v3938 = vsel %vm1781, %v3861, 0.0
        %3939 = vadd.xlane.f32.xlu0 %v3938
        %v3940 = vpop.xlane.xlu0 %3939
        %v3941 = vsel %vm1781, %v3863, 0.0
        %3942 = vadd.xlane.f32.xlu0 %v3941
        %v3943 = vpop.xlane.xlu0 %3942
        %v3944 = vsel %vm1781, %v3865, 0.0
        %3945 = vadd.xlane.f32.xlu0 %v3944
        %v3946 = vpop.xlane.xlu0 %3945
        %v3947 = vsel %vm1781, %v3867, 0.0
        %3948 = vadd.xlane.f32.xlu0 %v3947
        %v3949 = vpop.xlane.xlu0 %3948
        %v3950 = vsel %vm1781, %v3869, 0.0
        %3951 = vadd.xlane.f32.xlu0 %v3950
        %v3952 = vpop.xlane.xlu0 %3951
        %v3953 = vsel %vm1781, %v3871, 0.0
        %3954 = vadd.xlane.f32.xlu0 %v3953
        %v3955 = vpop.xlane.xlu0 %3954
        %v3956 = vsel %vm1781, %v3873, 0.0
        %3957 = vadd.xlane.f32.xlu0 %v3956
        %v3958 = vpop.xlane.xlu0 %3957
        %v3959 = vsel %vm1781, %v3875, 0.0
        %3960 = vadd.xlane.f32.xlu0 %v3959
        %v3961 = vpop.xlane.xlu0 %3960
        %v3962 = vsel %vm1781, %v3877, 0.0
        %3963 = vadd.xlane.f32.xlu0 %v3962
        %v3964 = vpop.xlane.xlu0 %3963
        %v3965 = vsel %vm1781, %v3879, 0.0
        %3966 = vadd.xlane.f32.xlu0 %v3965
        %v3967 = vpop.xlane.xlu0 %3966
        %v3968 = vsel %vm1781, %v3881, 0.0
        %3969 = vadd.xlane.f32.xlu0 %v3968
        %v3970 = vpop.xlane.xlu0 %3969
        %v3971 = vsel %vm1781, %v3883, 0.0
        %3972 = vadd.xlane.f32.xlu0 %v3971
        %v3973 = vpop.xlane.xlu0 %3972
        %v3974 = vsel %vm1781, %v3885, 0.0
        %3975 = vadd.xlane.f32.xlu0 %v3974
        %v3976 = vpop.xlane.xlu0 %3975
        %v3977 = vsel %vm1781, %v3887, 0.0
        %3978 = vadd.xlane.f32.xlu0 %v3977
        %v3979 = vpop.xlane.xlu0 %3978
        %v3980 = vsel %vm1781, %v3889, 0.0
        %3981 = vadd.xlane.f32.xlu0 %v3980
        %v3982 = vpop.xlane.xlu0 %3981
        %v3983 = vsel %vm1781, %v3891, 0.0
        %3984 = vadd.xlane.f32.xlu0 %v3983
        %v3985 = vpop.xlane.xlu0 %3984
        %v3986 = vsel %vm1781, %v3893, 0.0
        %3987 = vadd.xlane.f32.xlu0 %v3986
        %v3988 = vpop.xlane.xlu0 %3987
        %v3989 = vsel %vm1781, %v3895, 0.0
        %3990 = vadd.xlane.f32.xlu0 %v3989
        %v3991 = vpop.xlane.xlu0 %3990
        %v3992 = vrcp.pop %v3898
        %v3993 = vrcp.pop %v3901
        %v3994 = vrcp.pop %v3904
        %v3995 = vrcp.pop %v3907
        %v3996 = vrcp.pop %v3910
        %v3997 = vrcp.pop %v3913
        %v3998 = vrcp.pop %v3916
        %v3999 = vrcp.pop %v3919
        %v4000 = vrcp.pop %v3922
        %v4001 = vrcp.pop %v3925
        %v4002 = vrcp.pop %v3928
        %v4003 = vrcp.pop %v3931
        %v4004 = vrcp.pop %v3934
        %v4005 = vrcp.pop %v3937
        %v4006 = vrcp.pop %v3940
        %v4007 = vrcp.pop %v3943
        %v4008 = vrcp.pop %v3946
        %v4009 = vrcp.pop %v3949
        %v4010 = vrcp.pop %v3952
        %v4011 = vrcp.pop %v3955
        %v4012 = vrcp.pop %v3958
        %v4013 = vrcp.pop %v3961
        %v4014 = vrcp.pop %v3964
        %v4015 = vrcp.pop %v3967
        %v4016 = vrcp.pop %v3970
        %v4017 = vrcp.pop %v3973
        %v4018 = vrcp.pop %v3976
        %v4019 = vrcp.pop %v3979
        %v4020 = vrcp.pop %v3982
        %v4021 = vrcp.pop %v3985
        %v4022 = vrcp.pop %v3988
        %v4023 = vrcp.pop %v3991
        %v4024 = vmul.f32 %v3833, %v3992
        %v4025 = vmul.f32 %v3835, %v3993
        %v4026 = vmul.f32 %v3837, %v3994
        %v4027 = vmul.f32 %v3839, %v3995
        %v4028 = vmul.f32 %v3841, %v3996
        %v4029 = vmul.f32 %v3843, %v3997
        %v4030 = vmul.f32 %v3845, %v3998
        %v4031 = vmul.f32 %v3847, %v3999
        %v4032 = vmul.f32 %v3849, %v4000
        %v4033 = vmul.f32 %v3851, %v4001
        %v4034 = vmul.f32 %v3853, %v4002
        %v4035 = vmul.f32 %v3855, %v4003
        %v4036 = vmul.f32 %v3857, %v4004
        %v4037 = vmul.f32 %v3859, %v4005
        %v4038 = vmul.f32 %v3861, %v4006
        %v4039 = vmul.f32 %v3863, %v4007
        %v4040 = vmul.f32 %v3865, %v4008
        %v4041 = vmul.f32 %v3867, %v4009
        %v4042 = vmul.f32 %v3869, %v4010
        %v4043 = vmul.f32 %v3871, %v4011
        %v4044 = vmul.f32 %v3873, %v4012
        %v4045 = vmul.f32 %v3875, %v4013
        %v4046 = vmul.f32 %v3877, %v4014
        %v4047 = vmul.f32 %v3879, %v4015
        %v4048 = vmul.f32 %v3881, %v4016
        %v4049 = vmul.f32 %v3883, %v4017
        %v4050 = vmul.f32 %v3885, %v4018
        %v4051 = vmul.f32 %v3887, %v4019
        %v4052 = vmul.f32 %v3889, %v4020
        %v4053 = vmul.f32 %v3891, %v4021
        %v4054 = vmul.f32 %v3893, %v4022
        %v4055 = vmul.f32 %v3895, %v4023
        %v4056 = vpack.c.bf16 %v4024, %v4024
        %v4057 = vpack.c.bf16 %v4025, %v4025
        %v4058 = vpack.c.bf16 %v4026, %v4026
        %v4059 = vpack.c.bf16 %v4027, %v4027
        %v4060 = vpack.c.bf16 %v4028, %v4028
        %v4061 = vpack.c.bf16 %v4029, %v4029
        %v4062 = vpack.c.bf16 %v4030, %v4030
        %v4063 = vpack.c.bf16 %v4031, %v4031
        %v4064 = vpack.c.bf16 %v4032, %v4032
        %v4065 = vpack.c.bf16 %v4033, %v4033
        %v4066 = vpack.c.bf16 %v4034, %v4034
        %v4067 = vpack.c.bf16 %v4035, %v4035
        %v4068 = vpack.c.bf16 %v4036, %v4036
        %v4069 = vpack.c.bf16 %v4037, %v4037
        %v4070 = vpack.c.bf16 %v4038, %v4038
        %v4071 = vpack.c.bf16 %v4039, %v4039
        %v4072 = vpack.c.bf16 %v4040, %v4040
        %v4073 = vpack.c.bf16 %v4041, %v4041
        %v4074 = vpack.c.bf16 %v4042, %v4042
        %v4075 = vpack.c.bf16 %v4043, %v4043
        %v4076 = vpack.c.bf16 %v4044, %v4044
        %v4077 = vpack.c.bf16 %v4045, %v4045
        %v4078 = vpack.c.bf16 %v4046, %v4046
        %v4079 = vpack.c.bf16 %v4047, %v4047
        %v4080 = vpack.c.bf16 %v4048, %v4048
        %v4081 = vpack.c.bf16 %v4049, %v4049
        %v4082 = vpack.c.bf16 %v4050, %v4050
        %v4083 = vpack.c.bf16 %v4051, %v4051
        %v4084 = vpack.c.bf16 %v4052, %v4052
        %v4085 = vpack.c.bf16 %v4053, %v4053
        %v4086 = vpack.c.bf16 %v4054, %v4054
        %v4087 = vpack.c.bf16 %v4055, %v4055
        %v4096 = vunpack.c.l.b16 %v4056
        %v4097 = vunpack.c.l.b16 %v4057
        %v4098 = vunpack.c.l.b16 %v4058
        %v4099 = vunpack.c.l.b16 %v4059
        %v4100 = vunpack.c.l.b16 %v4060
        %v4101 = vunpack.c.l.b16 %v4061
        %v4102 = vunpack.c.l.b16 %v4062
        %v4103 = vunpack.c.l.b16 %v4063
        %v4104 = vpack.c.b16 %v4097, %v4096
        %v4105 = vpack.c.b16 %v4099, %v4098
        %v4106 = vpack.c.b16 %v4101, %v4100
        %v4107 = vpack.c.b16 %v4103, %v4102
        %4108 = vrot.lane.b32.xlu0 %v1472, 48
        %v4109 = vpop.permute.xlu0 %4108
        %4110 = vrot.lane.b32.xlu0 %v1473, 48
        %v4111 = vpop.permute.xlu0 %4110
        %4112 = vrot.lane.b32.xlu0 %v1474, 48
        %v4113 = vpop.permute.xlu0 %4112
        %4114 = vrot.lane.b32.xlu0 %v1475, 48
        %v4115 = vpop.permute.xlu0 %4114
        %v4121 = vsel %vm1781, %v4104, 0
        %v4124 = vsel %vm1781, %v4105, 0
        %v4127 = vsel %vm1781, %v4106, 0
        %v4130 = vsel %vm1781, %v4107, 0
        %4132 = vmatpush.bf16.msra.mxu0 0
        %4133 = vmatpush.bf16.msra.mxu0 0
        %4134 = vmatpush.bf16.msra.mxu0 0
        %4135 = vmatpush.bf16.msra.mxu0 0
        %4136 = vmatpush.bf16.msra.mxu0 %v4115
        %4137 = vmatpush.bf16.msra.mxu0 %v4113
        %4138 = vmatpush.bf16.msra.mxu0 %v4111
        %4139 = vmatpush.bf16.msra.mxu0 %v4109
        %4140 = vmatmul.bf16.gmra.mxu0 %v4121
        %v4141 = vpop.f32.mrf.mxu0
        %v4142 = vadd.f32 0.0, %v4141
        %v4143 = vpop.f32.mrf.mxu0
        %v4144 = vadd.f32 0.0, %v4143
        %4145 = vmatmul.bf16.gmra.mxu0 %v4124
        %v4146 = vpop.f32.mrf.mxu0
        %v4147 = vadd.f32 0.0, %v4146
        %v4148 = vpop.f32.mrf.mxu0
        %v4149 = vadd.f32 0.0, %v4148
        %4150 = vmatmul.bf16.gmra.mxu0 %v4127
        %v4151 = vpop.f32.mrf.mxu0
        %v4152 = vadd.f32 0.0, %v4151
        %v4153 = vpop.f32.mrf.mxu0
        %v4154 = vadd.f32 0.0, %v4153
        %4155 = vmatmul.bf16.gmra.mxu0 %v4130
        %v4156 = vpop.f32.mrf.mxu0
        %v4157 = vadd.f32 0.0, %v4156
        %v4158 = vpop.f32.mrf.mxu0
        %v4159 = vadd.f32 0.0, %v4158
        %4160 = vdwg.mxu0
        %v4169 = vunpack.c.l.b16 %v4064
        %v4170 = vunpack.c.l.b16 %v4065
        %v4171 = vunpack.c.l.b16 %v4066
        %v4172 = vunpack.c.l.b16 %v4067
        %v4173 = vunpack.c.l.b16 %v4068
        %v4174 = vunpack.c.l.b16 %v4069
        %v4175 = vunpack.c.l.b16 %v4070
        %v4176 = vunpack.c.l.b16 %v4071
        %v4177 = vpack.c.b16 %v4170, %v4169
        %v4178 = vpack.c.b16 %v4172, %v4171
        %v4179 = vpack.c.b16 %v4174, %v4173
        %v4180 = vpack.c.b16 %v4176, %v4175
        %4181 = vrot.lane.b32.xlu0 %v1554, 48
        %v4182 = vpop.permute.xlu0 %4181
        %4183 = vrot.lane.b32.xlu0 %v1555, 48
        %v4184 = vpop.permute.xlu0 %4183
        %4185 = vrot.lane.b32.xlu0 %v1556, 48
        %v4186 = vpop.permute.xlu0 %4185
        %4187 = vrot.lane.b32.xlu0 %v1557, 48
        %v4188 = vpop.permute.xlu0 %4187
        %v4194 = vsel %vm1781, %v4177, 0
        %v4197 = vsel %vm1781, %v4178, 0
        %v4200 = vsel %vm1781, %v4179, 0
        %v4203 = vsel %vm1781, %v4180, 0
        %4205 = vmatpush.bf16.msra.mxu0 0
        %4206 = vmatpush.bf16.msra.mxu0 0
        %4207 = vmatpush.bf16.msra.mxu0 0
        %4208 = vmatpush.bf16.msra.mxu0 0
        %4209 = vmatpush.bf16.msra.mxu0 %v4188
        %4210 = vmatpush.bf16.msra.mxu0 %v4186
        %4211 = vmatpush.bf16.msra.mxu0 %v4184
        %4212 = vmatpush.bf16.msra.mxu0 %v4182
        %4213 = vmatmul.bf16.gmra.mxu0 %v4194
        %v4214 = vpop.f32.mrf.mxu0
        %v4215 = vadd.f32 0.0, %v4214
        %v4216 = vpop.f32.mrf.mxu0
        %v4217 = vadd.f32 0.0, %v4216
        %4218 = vmatmul.bf16.gmra.mxu0 %v4197
        %v4219 = vpop.f32.mrf.mxu0
        %v4220 = vadd.f32 0.0, %v4219
        %v4221 = vpop.f32.mrf.mxu0
        %v4222 = vadd.f32 0.0, %v4221
        %4223 = vmatmul.bf16.gmra.mxu0 %v4200
        %v4224 = vpop.f32.mrf.mxu0
        %v4225 = vadd.f32 0.0, %v4224
        %v4226 = vpop.f32.mrf.mxu0
        %v4227 = vadd.f32 0.0, %v4226
        %4228 = vmatmul.bf16.gmra.mxu0 %v4203
        %v4229 = vpop.f32.mrf.mxu0
        %v4230 = vadd.f32 0.0, %v4229
        %v4231 = vpop.f32.mrf.mxu0
        %v4232 = vadd.f32 0.0, %v4231
        %4233 = vdwg.mxu0
        %v4242 = vunpack.c.l.b16 %v4072
        %v4243 = vunpack.c.l.b16 %v4073
        %v4244 = vunpack.c.l.b16 %v4074
        %v4245 = vunpack.c.l.b16 %v4075
        %v4246 = vunpack.c.l.b16 %v4076
        %v4247 = vunpack.c.l.b16 %v4077
        %v4248 = vunpack.c.l.b16 %v4078
        %v4249 = vunpack.c.l.b16 %v4079
        %v4250 = vpack.c.b16 %v4243, %v4242
        %v4251 = vpack.c.b16 %v4245, %v4244
        %v4252 = vpack.c.b16 %v4247, %v4246
        %v4253 = vpack.c.b16 %v4249, %v4248
        %4254 = vrot.lane.b32.xlu0 %v1635, 48
        %v4255 = vpop.permute.xlu0 %4254
        %4256 = vrot.lane.b32.xlu0 %v1636, 48
        %v4257 = vpop.permute.xlu0 %4256
        %4258 = vrot.lane.b32.xlu0 %v1637, 48
        %v4259 = vpop.permute.xlu0 %4258
        %4260 = vrot.lane.b32.xlu0 %v1638, 48
        %v4261 = vpop.permute.xlu0 %4260
        %v4267 = vsel %vm1781, %v4250, 0
        %v4270 = vsel %vm1781, %v4251, 0
        %v4273 = vsel %vm1781, %v4252, 0
        %v4276 = vsel %vm1781, %v4253, 0
        %4278 = vmatpush.bf16.msra.mxu0 0
        %4279 = vmatpush.bf16.msra.mxu0 0
        %4280 = vmatpush.bf16.msra.mxu0 0
        %4281 = vmatpush.bf16.msra.mxu0 0
        %4282 = vmatpush.bf16.msra.mxu0 %v4261
        %4283 = vmatpush.bf16.msra.mxu0 %v4259
        %4284 = vmatpush.bf16.msra.mxu0 %v4257
        %4285 = vmatpush.bf16.msra.mxu0 %v4255
        %4286 = vmatmul.bf16.gmra.mxu0 %v4267
        %v4287 = vpop.f32.mrf.mxu0
        %v4288 = vadd.f32 0.0, %v4287
        %v4289 = vpop.f32.mrf.mxu0
        %v4290 = vadd.f32 0.0, %v4289
        %4291 = vmatmul.bf16.gmra.mxu0 %v4270
        %v4292 = vpop.f32.mrf.mxu0
        %v4293 = vadd.f32 0.0, %v4292
        %v4294 = vpop.f32.mrf.mxu0
        %v4295 = vadd.f32 0.0, %v4294
        %4296 = vmatmul.bf16.gmra.mxu0 %v4273
        %v4297 = vpop.f32.mrf.mxu0
        %v4298 = vadd.f32 0.0, %v4297
        %v4299 = vpop.f32.mrf.mxu0
        %v4300 = vadd.f32 0.0, %v4299
        %4301 = vmatmul.bf16.gmra.mxu0 %v4276
        %v4302 = vpop.f32.mrf.mxu0
        %v4303 = vadd.f32 0.0, %v4302
        %v4304 = vpop.f32.mrf.mxu0
        %v4305 = vadd.f32 0.0, %v4304
        %4306 = vdwg.mxu0
        %v4315 = vunpack.c.l.b16 %v4080
        %v4316 = vunpack.c.l.b16 %v4081
        %v4317 = vunpack.c.l.b16 %v4082
        %v4318 = vunpack.c.l.b16 %v4083
        %v4319 = vunpack.c.l.b16 %v4084
        %v4320 = vunpack.c.l.b16 %v4085
        %v4321 = vunpack.c.l.b16 %v4086
        %v4322 = vunpack.c.l.b16 %v4087
        %v4323 = vpack.c.b16 %v4316, %v4315
        %v4324 = vpack.c.b16 %v4318, %v4317
        %v4325 = vpack.c.b16 %v4320, %v4319
        %v4326 = vpack.c.b16 %v4322, %v4321
        %4327 = vrot.lane.b32.xlu0 %v1716, 48
        %v4328 = vpop.permute.xlu0 %4327
        %4329 = vrot.lane.b32.xlu0 %v1717, 48
        %v4330 = vpop.permute.xlu0 %4329
        %4331 = vrot.lane.b32.xlu0 %v1718, 48
        %v4332 = vpop.permute.xlu0 %4331
        %4333 = vrot.lane.b32.xlu0 %v1719, 48
        %v4334 = vpop.permute.xlu0 %4333
        %v4340 = vsel %vm1781, %v4323, 0
        %v4343 = vsel %vm1781, %v4324, 0
        %v4346 = vsel %vm1781, %v4325, 0
        %v4349 = vsel %vm1781, %v4326, 0
        %4351 = vmatpush.bf16.msra.mxu0 0
        %4352 = vmatpush.bf16.msra.mxu0 0
        %4353 = vmatpush.bf16.msra.mxu0 0
        %4354 = vmatpush.bf16.msra.mxu0 0
        %4355 = vmatpush.bf16.msra.mxu0 %v4334
        %4356 = vmatpush.bf16.msra.mxu0 %v4332
        %4357 = vmatpush.bf16.msra.mxu0 %v4330
        %4358 = vmatpush.bf16.msra.mxu0 %v4328
        %4359 = vmatmul.bf16.gmra.mxu0 %v4340
        %v4360 = vpop.f32.mrf.mxu0
        %v4361 = vadd.f32 0.0, %v4360
        %v4362 = vpop.f32.mrf.mxu0
        %v4363 = vadd.f32 0.0, %v4362
        %4364 = vmatmul.bf16.gmra.mxu0 %v4343
        %v4365 = vpop.f32.mrf.mxu0
        %v4366 = vadd.f32 0.0, %v4365
        %v4367 = vpop.f32.mrf.mxu0
        %v4368 = vadd.f32 0.0, %v4367
        %4369 = vmatmul.bf16.gmra.mxu0 %v4346
        %v4370 = vpop.f32.mrf.mxu0
        %v4371 = vadd.f32 0.0, %v4370
        %v4372 = vpop.f32.mrf.mxu0
        %v4373 = vadd.f32 0.0, %v4372
        %4374 = vmatmul.bf16.gmra.mxu0 %v4349
        %v4375 = vpop.f32.mrf.mxu0
        %v4376 = vadd.f32 0.0, %v4375
        %v4377 = vpop.f32.mrf.mxu0
        %v4378 = vadd.f32 0.0, %v4377
        %4379 = vdwg.mxu0
        %s4380 = scalar_lea.vmem [#allocation8], 192
        %v4381 = vld [vmem:[%s4380] sm:$0xff]
        %v4382 = vld [vmem:[%s4380 + $0x8] sm:$0xff]
        %v4383 = vld [vmem:[%s4380 + $0x10] sm:$0xff]
        %v4384 = vld [vmem:[%s4380 + $0x18] sm:$0xff]
        %v4385 = vld [vmem:[%s4380 + $0x20] sm:$0xff]
        %v4386 = vld [vmem:[%s4380 + $0x28] sm:$0xff]
        %v4387 = vld [vmem:[%s4380 + $0x30] sm:$0xff]
        %v4388 = vld [vmem:[%s4380 + $0x38] sm:$0xff]
        %4389 = vrot.lane.b32.xlu0 %v1472, 104
        %v4390 = vpop.permute.xlu0 %4389
        %4391 = vrot.lane.b32.xlu0 %v1473, 104
        %v4392 = vpop.permute.xlu0 %4391
        %4393 = vrot.lane.b32.xlu0 %v1474, 104
        %v4394 = vpop.permute.xlu0 %4393
        %4395 = vrot.lane.b32.xlu0 %v1475, 104
        %v4396 = vpop.permute.xlu0 %4395
        %4397 = vrot.lane.b32.xlu0 %v1472, 72
        %v4398 = vpop.permute.xlu0 %4397
        %4399 = vrot.lane.b32.xlu0 %v1473, 72
        %v4400 = vpop.permute.xlu0 %4399
        %4401 = vrot.lane.b32.xlu0 %v1474, 72
        %v4402 = vpop.permute.xlu0 %4401
        %4403 = vrot.lane.b32.xlu0 %v1475, 72
        %v4404 = vpop.permute.xlu0 %4403
        %v4406 = vsel %vm1484, %v4390, 0
        %v4409 = vsel %vm1484, %v4392, 0
        %v4412 = vsel %vm1484, %v4394, 0
        %v4415 = vsel %vm1484, %v4396, 0
        %v4418 = vsel %vm1484, %v4398, 0
        %v4421 = vsel %vm1484, %v4400, 0
        %v4424 = vsel %vm1484, %v4402, 0
        %v4427 = vsel %vm1484, %v4404, 0
        %4429 = vmatpush.bf16.xpose.msra.mxu0 0
        %4430 = vmatpush.bf16.xpose.msra.mxu0 0
        %4431 = vmatpush.bf16.xpose.msra.mxu0 0
        %4432 = vmatpush.bf16.xpose.msra.mxu0 0
        %4433 = vmatpush.bf16.xpose.msra.mxu0 %v4427
        %4434 = vmatpush.bf16.xpose.msra.mxu0 %v4424
        %4435 = vmatpush.bf16.xpose.msra.mxu0 %v4421
        %4436 = vmatpush.bf16.xpose.msra.mxu0 %v4418
        %4437 = vmatmul.bf16.gmra.mxu0 %v4406
        %v4438 = vpop.f32.mrf.mxu0
        %v4439 = vadd.f32 %v4381, %v4438
        %v4440 = vpop.f32.mrf.mxu0
        %v4441 = vadd.f32 %v4382, %v4440
        %4442 = vmatmul.bf16.gmra.mxu0 %v4409
        %v4443 = vpop.f32.mrf.mxu0
        %v4444 = vadd.f32 %v4383, %v4443
        %v4445 = vpop.f32.mrf.mxu0
        %v4446 = vadd.f32 %v4384, %v4445
        %4447 = vmatmul.bf16.gmra.mxu0 %v4412
        %v4448 = vpop.f32.mrf.mxu0
        %v4449 = vadd.f32 %v4385, %v4448
        %v4450 = vpop.f32.mrf.mxu0
        %v4451 = vadd.f32 %v4386, %v4450
        %4452 = vmatmul.bf16.gmra.mxu0 %v4415
        %v4453 = vpop.f32.mrf.mxu0
        %v4454 = vadd.f32 %v4387, %v4453
        %v4455 = vpop.f32.mrf.mxu0
        %v4456 = vadd.f32 %v4388, %v4455
        %4457 = vdwg.mxu0
        %4458 = vrot.lane.b32.xlu0 %v1554, 104
        %v4459 = vpop.permute.xlu0 %4458
        %4460 = vrot.lane.b32.xlu0 %v1555, 104
        %v4461 = vpop.permute.xlu0 %4460
        %4462 = vrot.lane.b32.xlu0 %v1556, 104
        %v4463 = vpop.permute.xlu0 %4462
        %4464 = vrot.lane.b32.xlu0 %v1557, 104
        %v4465 = vpop.permute.xlu0 %4464
        %4466 = vrot.lane.b32.xlu0 %v1554, 72
        %v4467 = vpop.permute.xlu0 %4466
        %4468 = vrot.lane.b32.xlu0 %v1555, 72
        %v4469 = vpop.permute.xlu0 %4468
        %4470 = vrot.lane.b32.xlu0 %v1556, 72
        %v4471 = vpop.permute.xlu0 %4470
        %4472 = vrot.lane.b32.xlu0 %v1557, 72
        %v4473 = vpop.permute.xlu0 %4472
        %v4475 = vsel %vm1484, %v4459, 0
        %v4478 = vsel %vm1484, %v4461, 0
        %v4481 = vsel %vm1484, %v4463, 0
        %v4484 = vsel %vm1484, %v4465, 0
        %v4487 = vsel %vm1484, %v4467, 0
        %v4490 = vsel %vm1484, %v4469, 0
        %v4493 = vsel %vm1484, %v4471, 0
        %v4496 = vsel %vm1484, %v4473, 0
        %4498 = vmatpush.bf16.xpose.msra.mxu0 0
        %4499 = vmatpush.bf16.xpose.msra.mxu0 0
        %4500 = vmatpush.bf16.xpose.msra.mxu0 0
        %4501 = vmatpush.bf16.xpose.msra.mxu0 0
        %4502 = vmatpush.bf16.xpose.msra.mxu0 %v4496
        %4503 = vmatpush.bf16.xpose.msra.mxu0 %v4493
        %4504 = vmatpush.bf16.xpose.msra.mxu0 %v4490
        %4505 = vmatpush.bf16.xpose.msra.mxu0 %v4487
        %4506 = vmatmul.bf16.gmra.mxu0 %v4475
        %v4507 = vpop.f32.mrf.mxu0
        %v4508 = vadd.f32 %v4381, %v4507
        %v4509 = vpop.f32.mrf.mxu0
        %v4510 = vadd.f32 %v4382, %v4509
        %4511 = vmatmul.bf16.gmra.mxu0 %v4478
        %v4512 = vpop.f32.mrf.mxu0
        %v4513 = vadd.f32 %v4383, %v4512
        %v4514 = vpop.f32.mrf.mxu0
        %v4515 = vadd.f32 %v4384, %v4514
        %4516 = vmatmul.bf16.gmra.mxu0 %v4481
        %v4517 = vpop.f32.mrf.mxu0
        %v4518 = vadd.f32 %v4385, %v4517
        %v4519 = vpop.f32.mrf.mxu0
        %v4520 = vadd.f32 %v4386, %v4519
        %4521 = vmatmul.bf16.gmra.mxu0 %v4484
        %v4522 = vpop.f32.mrf.mxu0
        %v4523 = vadd.f32 %v4387, %v4522
        %v4524 = vpop.f32.mrf.mxu0
        %v4525 = vadd.f32 %v4388, %v4524
        %4526 = vdwg.mxu0
        %4527 = vrot.lane.b32.xlu0 %v1635, 104
        %v4528 = vpop.permute.xlu0 %4527
        %4529 = vrot.lane.b32.xlu0 %v1636, 104
        %v4530 = vpop.permute.xlu0 %4529
        %4531 = vrot.lane.b32.xlu0 %v1637, 104
        %v4532 = vpop.permute.xlu0 %4531
        %4533 = vrot.lane.b32.xlu0 %v1638, 104
        %v4534 = vpop.permute.xlu0 %4533
        %4535 = vrot.lane.b32.xlu0 %v1635, 72
        %v4536 = vpop.permute.xlu0 %4535
        %4537 = vrot.lane.b32.xlu0 %v1636, 72
        %v4538 = vpop.permute.xlu0 %4537
        %4539 = vrot.lane.b32.xlu0 %v1637, 72
        %v4540 = vpop.permute.xlu0 %4539
        %4541 = vrot.lane.b32.xlu0 %v1638, 72
        %v4542 = vpop.permute.xlu0 %4541
        %v4544 = vsel %vm1484, %v4528, 0
        %v4547 = vsel %vm1484, %v4530, 0
        %v4550 = vsel %vm1484, %v4532, 0
        %v4553 = vsel %vm1484, %v4534, 0
        %v4556 = vsel %vm1484, %v4536, 0
        %v4559 = vsel %vm1484, %v4538, 0
        %v4562 = vsel %vm1484, %v4540, 0
        %v4565 = vsel %vm1484, %v4542, 0
        %4567 = vmatpush.bf16.xpose.msra.mxu0 0
        %4568 = vmatpush.bf16.xpose.msra.mxu0 0
        %4569 = vmatpush.bf16.xpose.msra.mxu0 0
        %4570 = vmatpush.bf16.xpose.msra.mxu0 0
        %4571 = vmatpush.bf16.xpose.msra.mxu0 %v4565
        %4572 = vmatpush.bf16.xpose.msra.mxu0 %v4562
        %4573 = vmatpush.bf16.xpose.msra.mxu0 %v4559
        %4574 = vmatpush.bf16.xpose.msra.mxu0 %v4556
        %4575 = vmatmul.bf16.gmra.mxu0 %v4544
        %v4576 = vpop.f32.mrf.mxu0
        %v4577 = vadd.f32 %v4381, %v4576
        %v4578 = vpop.f32.mrf.mxu0
        %v4579 = vadd.f32 %v4382, %v4578
        %4580 = vmatmul.bf16.gmra.mxu0 %v4547
        %v4581 = vpop.f32.mrf.mxu0
        %v4582 = vadd.f32 %v4383, %v4581
        %v4583 = vpop.f32.mrf.mxu0
        %v4584 = vadd.f32 %v4384, %v4583
        %4585 = vmatmul.bf16.gmra.mxu0 %v4550
        %v4586 = vpop.f32.mrf.mxu0
        %v4587 = vadd.f32 %v4385, %v4586
        %v4588 = vpop.f32.mrf.mxu0
        %v4589 = vadd.f32 %v4386, %v4588
        %4590 = vmatmul.bf16.gmra.mxu0 %v4553
        %v4591 = vpop.f32.mrf.mxu0
        %v4592 = vadd.f32 %v4387, %v4591
        %v4593 = vpop.f32.mrf.mxu0
        %v4594 = vadd.f32 %v4388, %v4593
        %4595 = vdwg.mxu0
        %4596 = vrot.lane.b32.xlu0 %v1716, 104
        %v4597 = vpop.permute.xlu0 %4596
        %4598 = vrot.lane.b32.xlu0 %v1717, 104
        %v4599 = vpop.permute.xlu0 %4598
        %4600 = vrot.lane.b32.xlu0 %v1718, 104
        %v4601 = vpop.permute.xlu0 %4600
        %4602 = vrot.lane.b32.xlu0 %v1719, 104
        %v4603 = vpop.permute.xlu0 %4602
        %4604 = vrot.lane.b32.xlu0 %v1716, 72
        %v4605 = vpop.permute.xlu0 %4604
        %4606 = vrot.lane.b32.xlu0 %v1717, 72
        %v4607 = vpop.permute.xlu0 %4606
        %4608 = vrot.lane.b32.xlu0 %v1718, 72
        %v4609 = vpop.permute.xlu0 %4608
        %4610 = vrot.lane.b32.xlu0 %v1719, 72
        %v4611 = vpop.permute.xlu0 %4610
        %v4613 = vsel %vm1484, %v4597, 0
        %v4616 = vsel %vm1484, %v4599, 0
        %v4619 = vsel %vm1484, %v4601, 0
        %v4622 = vsel %vm1484, %v4603, 0
        %v4625 = vsel %vm1484, %v4605, 0
        %v4628 = vsel %vm1484, %v4607, 0
        %v4631 = vsel %vm1484, %v4609, 0
        %v4634 = vsel %vm1484, %v4611, 0
        %4636 = vmatpush.bf16.xpose.msra.mxu0 0
        %4637 = vmatpush.bf16.xpose.msra.mxu0 0
        %4638 = vmatpush.bf16.xpose.msra.mxu0 0
        %4639 = vmatpush.bf16.xpose.msra.mxu0 0
        %4640 = vmatpush.bf16.xpose.msra.mxu0 %v4634
        %4641 = vmatpush.bf16.xpose.msra.mxu0 %v4631
        %4642 = vmatpush.bf16.xpose.msra.mxu0 %v4628
        %4643 = vmatpush.bf16.xpose.msra.mxu0 %v4625
        %4644 = vmatmul.bf16.gmra.mxu0 %v4613
        %v4645 = vpop.f32.mrf.mxu0
        %v4646 = vadd.f32 %v4381, %v4645
        %v4647 = vpop.f32.mrf.mxu0
        %v4648 = vadd.f32 %v4382, %v4647
        %4649 = vmatmul.bf16.gmra.mxu0 %v4616
        %v4650 = vpop.f32.mrf.mxu0
        %v4651 = vadd.f32 %v4383, %v4650
        %v4652 = vpop.f32.mrf.mxu0
        %v4653 = vadd.f32 %v4384, %v4652
        %4654 = vmatmul.bf16.gmra.mxu0 %v4619
        %v4655 = vpop.f32.mrf.mxu0
        %v4656 = vadd.f32 %v4385, %v4655
        %v4657 = vpop.f32.mrf.mxu0
        %v4658 = vadd.f32 %v4386, %v4657
        %4659 = vmatmul.bf16.gmra.mxu0 %v4622
        %v4660 = vpop.f32.mrf.mxu0
        %v4661 = vadd.f32 %v4387, %v4660
        %v4662 = vpop.f32.mrf.mxu0
        %v4663 = vadd.f32 %v4388, %v4662
        %4664 = vdwg.mxu0
        %v4665 = vsel %vm1781, %v4439, -inf
        %4666 = vmax.xlane.f32.xlu0 %v4665
        %v4667 = vpop.xlane.xlu0 %4666
        %v4668 = vsel %vm1781, %v4441, -inf
        %4669 = vmax.xlane.f32.xlu0 %v4668
        %v4670 = vpop.xlane.xlu0 %4669
        %v4671 = vsel %vm1781, %v4444, -inf
        %4672 = vmax.xlane.f32.xlu0 %v4671
        %v4673 = vpop.xlane.xlu0 %4672
        %v4674 = vsel %vm1781, %v4446, -inf
        %4675 = vmax.xlane.f32.xlu0 %v4674
        %v4676 = vpop.xlane.xlu0 %4675
        %v4677 = vsel %vm1781, %v4449, -inf
        %4678 = vmax.xlane.f32.xlu0 %v4677
        %v4679 = vpop.xlane.xlu0 %4678
        %v4680 = vsel %vm1781, %v4451, -inf
        %4681 = vmax.xlane.f32.xlu0 %v4680
        %v4682 = vpop.xlane.xlu0 %4681
        %v4683 = vsel %vm1781, %v4454, -inf
        %4684 = vmax.xlane.f32.xlu0 %v4683
        %v4685 = vpop.xlane.xlu0 %4684
        %v4686 = vsel %vm1781, %v4456, -inf
        %4687 = vmax.xlane.f32.xlu0 %v4686
        %v4688 = vpop.xlane.xlu0 %4687
        %v4689 = vsel %vm1781, %v4508, -inf
        %4690 = vmax.xlane.f32.xlu0 %v4689
        %v4691 = vpop.xlane.xlu0 %4690
        %v4692 = vsel %vm1781, %v4510, -inf
        %4693 = vmax.xlane.f32.xlu0 %v4692
        %v4694 = vpop.xlane.xlu0 %4693
        %v4695 = vsel %vm1781, %v4513, -inf
        %4696 = vmax.xlane.f32.xlu0 %v4695
        %v4697 = vpop.xlane.xlu0 %4696
        %v4698 = vsel %vm1781, %v4515, -inf
        %4699 = vmax.xlane.f32.xlu0 %v4698
        %v4700 = vpop.xlane.xlu0 %4699
        %v4701 = vsel %vm1781, %v4518, -inf
        %4702 = vmax.xlane.f32.xlu0 %v4701
        %v4703 = vpop.xlane.xlu0 %4702
        %v4704 = vsel %vm1781, %v4520, -inf
        %4705 = vmax.xlane.f32.xlu0 %v4704
        %v4706 = vpop.xlane.xlu0 %4705
        %v4707 = vsel %vm1781, %v4523, -inf
        %4708 = vmax.xlane.f32.xlu0 %v4707
        %v4709 = vpop.xlane.xlu0 %4708
        %v4710 = vsel %vm1781, %v4525, -inf
        %4711 = vmax.xlane.f32.xlu0 %v4710
        %v4712 = vpop.xlane.xlu0 %4711
        %v4713 = vsel %vm1781, %v4577, -inf
        %4714 = vmax.xlane.f32.xlu0 %v4713
        %v4715 = vpop.xlane.xlu0 %4714
        %v4716 = vsel %vm1781, %v4579, -inf
        %4717 = vmax.xlane.f32.xlu0 %v4716
        %v4718 = vpop.xlane.xlu0 %4717
        %v4719 = vsel %vm1781, %v4582, -inf
        %4720 = vmax.xlane.f32.xlu0 %v4719
        %v4721 = vpop.xlane.xlu0 %4720
        %v4722 = vsel %vm1781, %v4584, -inf
        %4723 = vmax.xlane.f32.xlu0 %v4722
        %v4724 = vpop.xlane.xlu0 %4723
        %v4725 = vsel %vm1781, %v4587, -inf
        %4726 = vmax.xlane.f32.xlu0 %v4725
        %v4727 = vpop.xlane.xlu0 %4726
        %v4728 = vsel %vm1781, %v4589, -inf
        %4729 = vmax.xlane.f32.xlu0 %v4728
        %v4730 = vpop.xlane.xlu0 %4729
        %v4731 = vsel %vm1781, %v4592, -inf
        %4732 = vmax.xlane.f32.xlu0 %v4731
        %v4733 = vpop.xlane.xlu0 %4732
        %v4734 = vsel %vm1781, %v4594, -inf
        %4735 = vmax.xlane.f32.xlu0 %v4734
        %v4736 = vpop.xlane.xlu0 %4735
        %v4737 = vsel %vm1781, %v4646, -inf
        %4738 = vmax.xlane.f32.xlu0 %v4737
        %v4739 = vpop.xlane.xlu0 %4738
        %v4740 = vsel %vm1781, %v4648, -inf
        %4741 = vmax.xlane.f32.xlu0 %v4740
        %v4742 = vpop.xlane.xlu0 %4741
        %v4743 = vsel %vm1781, %v4651, -inf
        %4744 = vmax.xlane.f32.xlu0 %v4743
        %v4745 = vpop.xlane.xlu0 %4744
        %v4746 = vsel %vm1781, %v4653, -inf
        %4747 = vmax.xlane.f32.xlu0 %v4746
        %v4748 = vpop.xlane.xlu0 %4747
        %v4749 = vsel %vm1781, %v4656, -inf
        %4750 = vmax.xlane.f32.xlu0 %v4749
        %v4751 = vpop.xlane.xlu0 %4750
        %v4752 = vsel %vm1781, %v4658, -inf
        %4753 = vmax.xlane.f32.xlu0 %v4752
        %v4754 = vpop.xlane.xlu0 %4753
        %v4755 = vsel %vm1781, %v4661, -inf
        %4756 = vmax.xlane.f32.xlu0 %v4755
        %v4757 = vpop.xlane.xlu0 %4756
        %v4758 = vsel %vm1781, %v4663, -inf
        %4759 = vmax.xlane.f32.xlu0 %v4758
        %v4760 = vpop.xlane.xlu0 %4759
        %v4761 = vsub.f32 %v4439, %v4667
        %v4762 = vsub.f32 %v4441, %v4670
        %v4763 = vsub.f32 %v4444, %v4673
        %v4764 = vsub.f32 %v4446, %v4676
        %v4765 = vsub.f32 %v4449, %v4679
        %v4766 = vsub.f32 %v4451, %v4682
        %v4767 = vsub.f32 %v4454, %v4685
        %v4768 = vsub.f32 %v4456, %v4688
        %v4769 = vsub.f32 %v4508, %v4691
        %v4770 = vsub.f32 %v4510, %v4694
        %v4771 = vsub.f32 %v4513, %v4697
        %v4772 = vsub.f32 %v4515, %v4700
        %v4773 = vsub.f32 %v4518, %v4703
        %v4774 = vsub.f32 %v4520, %v4706
        %v4775 = vsub.f32 %v4523, %v4709
        %v4776 = vsub.f32 %v4525, %v4712
        %v4777 = vsub.f32 %v4577, %v4715
        %v4778 = vsub.f32 %v4579, %v4718
        %v4779 = vsub.f32 %v4582, %v4721
        %v4780 = vsub.f32 %v4584, %v4724
        %v4781 = vsub.f32 %v4587, %v4727
        %v4782 = vsub.f32 %v4589, %v4730
        %v4783 = vsub.f32 %v4592, %v4733
        %v4784 = vsub.f32 %v4594, %v4736
        %v4785 = vsub.f32 %v4646, %v4739
        %v4786 = vsub.f32 %v4648, %v4742
        %v4787 = vsub.f32 %v4651, %v4745
        %v4788 = vsub.f32 %v4653, %v4748
        %v4789 = vsub.f32 %v4656, %v4751
        %v4790 = vsub.f32 %v4658, %v4754
        %v4791 = vsub.f32 %v4661, %v4757
        %v4792 = vsub.f32 %v4663, %v4760
        %v4793 = vmul.f32 %v4761, 1.442695
        %v4794 = vpow.pop %v4793
        %v4795 = vmul.f32 %v4762, 1.442695
        %v4796 = vpow.pop %v4795
        %v4797 = vmul.f32 %v4763, 1.442695
        %v4798 = vpow.pop %v4797
        %v4799 = vmul.f32 %v4764, 1.442695
        %v4800 = vpow.pop %v4799
        %v4801 = vmul.f32 %v4765, 1.442695
        %v4802 = vpow.pop %v4801
        %v4803 = vmul.f32 %v4766, 1.442695
        %v4804 = vpow.pop %v4803
        %v4805 = vmul.f32 %v4767, 1.442695
        %v4806 = vpow.pop %v4805
        %v4807 = vmul.f32 %v4768, 1.442695
        %v4808 = vpow.pop %v4807
        %v4809 = vmul.f32 %v4769, 1.442695
        %v4810 = vpow.pop %v4809
        %v4811 = vmul.f32 %v4770, 1.442695
        %v4812 = vpow.pop %v4811
        %v4813 = vmul.f32 %v4771, 1.442695
        %v4814 = vpow.pop %v4813
        %v4815 = vmul.f32 %v4772, 1.442695
        %v4816 = vpow.pop %v4815
        %v4817 = vmul.f32 %v4773, 1.442695
        %v4818 = vpow.pop %v4817
        %v4819 = vmul.f32 %v4774, 1.442695
        %v4820 = vpow.pop %v4819
        %v4821 = vmul.f32 %v4775, 1.442695
        %v4822 = vpow.pop %v4821
        %v4823 = vmul.f32 %v4776, 1.442695
        %v4824 = vpow.pop %v4823
        %v4825 = vmul.f32 %v4777, 1.442695
        %v4826 = vpow.pop %v4825
        %v4827 = vmul.f32 %v4778, 1.442695
        %v4828 = vpow.pop %v4827
        %v4829 = vmul.f32 %v4779, 1.442695
        %v4830 = vpow.pop %v4829
        %v4831 = vmul.f32 %v4780, 1.442695
        %v4832 = vpow.pop %v4831
        %v4833 = vmul.f32 %v4781, 1.442695
        %v4834 = vpow.pop %v4833
        %v4835 = vmul.f32 %v4782, 1.442695
        %v4836 = vpow.pop %v4835
        %v4837 = vmul.f32 %v4783, 1.442695
        %v4838 = vpow.pop %v4837
        %v4839 = vmul.f32 %v4784, 1.442695
        %v4840 = vpow.pop %v4839
        %v4841 = vmul.f32 %v4785, 1.442695
        %v4842 = vpow.pop %v4841
        %v4843 = vmul.f32 %v4786, 1.442695
        %v4844 = vpow.pop %v4843
        %v4845 = vmul.f32 %v4787, 1.442695
        %v4846 = vpow.pop %v4845
        %v4847 = vmul.f32 %v4788, 1.442695
        %v4848 = vpow.pop %v4847
        %v4849 = vmul.f32 %v4789, 1.442695
        %v4850 = vpow.pop %v4849
        %v4851 = vmul.f32 %v4790, 1.442695
        %v4852 = vpow.pop %v4851
        %v4853 = vmul.f32 %v4791, 1.442695
        %v4854 = vpow.pop %v4853
        %v4855 = vmul.f32 %v4792, 1.442695
        %v4856 = vpow.pop %v4855
        %v4857 = vsel %vm1781, %v4794, 0.0
        %4858 = vadd.xlane.f32.xlu0 %v4857
        %v4859 = vpop.xlane.xlu0 %4858
        %v4860 = vsel %vm1781, %v4796, 0.0
        %4861 = vadd.xlane.f32.xlu0 %v4860
        %v4862 = vpop.xlane.xlu0 %4861
        %v4863 = vsel %vm1781, %v4798, 0.0
        %4864 = vadd.xlane.f32.xlu0 %v4863
        %v4865 = vpop.xlane.xlu0 %4864
        %v4866 = vsel %vm1781, %v4800, 0.0
        %4867 = vadd.xlane.f32.xlu0 %v4866
        %v4868 = vpop.xlane.xlu0 %4867
        %v4869 = vsel %vm1781, %v4802, 0.0
        %4870 = vadd.xlane.f32.xlu0 %v4869
        %v4871 = vpop.xlane.xlu0 %4870
        %v4872 = vsel %vm1781, %v4804, 0.0
        %4873 = vadd.xlane.f32.xlu0 %v4872
        %v4874 = vpop.xlane.xlu0 %4873
        %v4875 = vsel %vm1781, %v4806, 0.0
        %4876 = vadd.xlane.f32.xlu0 %v4875
        %v4877 = vpop.xlane.xlu0 %4876
        %v4878 = vsel %vm1781, %v4808, 0.0
        %4879 = vadd.xlane.f32.xlu0 %v4878
        %v4880 = vpop.xlane.xlu0 %4879
        %v4881 = vsel %vm1781, %v4810, 0.0
        %4882 = vadd.xlane.f32.xlu0 %v4881
        %v4883 = vpop.xlane.xlu0 %4882
        %v4884 = vsel %vm1781, %v4812, 0.0
        %4885 = vadd.xlane.f32.xlu0 %v4884
        %v4886 = vpop.xlane.xlu0 %4885
        %v4887 = vsel %vm1781, %v4814, 0.0
        %4888 = vadd.xlane.f32.xlu0 %v4887
        %v4889 = vpop.xlane.xlu0 %4888
        %v4890 = vsel %vm1781, %v4816, 0.0
        %4891 = vadd.xlane.f32.xlu0 %v4890
        %v4892 = vpop.xlane.xlu0 %4891
        %v4893 = vsel %vm1781, %v4818, 0.0
        %4894 = vadd.xlane.f32.xlu0 %v4893
        %v4895 = vpop.xlane.xlu0 %4894
        %v4896 = vsel %vm1781, %v4820, 0.0
        %4897 = vadd.xlane.f32.xlu0 %v4896
        %v4898 = vpop.xlane.xlu0 %4897
        %v4899 = vsel %vm1781, %v4822, 0.0
        %4900 = vadd.xlane.f32.xlu0 %v4899
        %v4901 = vpop.xlane.xlu0 %4900
        %v4902 = vsel %vm1781, %v4824, 0.0
        %4903 = vadd.xlane.f32.xlu0 %v4902
        %v4904 = vpop.xlane.xlu0 %4903
        %v4905 = vsel %vm1781, %v4826, 0.0
        %4906 = vadd.xlane.f32.xlu0 %v4905
        %v4907 = vpop.xlane.xlu0 %4906
        %v4908 = vsel %vm1781, %v4828, 0.0
        %4909 = vadd.xlane.f32.xlu0 %v4908
        %v4910 = vpop.xlane.xlu0 %4909
        %v4911 = vsel %vm1781, %v4830, 0.0
        %4912 = vadd.xlane.f32.xlu0 %v4911
        %v4913 = vpop.xlane.xlu0 %4912
        %v4914 = vsel %vm1781, %v4832, 0.0
        %4915 = vadd.xlane.f32.xlu0 %v4914
        %v4916 = vpop.xlane.xlu0 %4915
        %v4917 = vsel %vm1781, %v4834, 0.0
        %4918 = vadd.xlane.f32.xlu0 %v4917
        %v4919 = vpop.xlane.xlu0 %4918
        %v4920 = vsel %vm1781, %v4836, 0.0
        %4921 = vadd.xlane.f32.xlu0 %v4920
        %v4922 = vpop.xlane.xlu0 %4921
        %v4923 = vsel %vm1781, %v4838, 0.0
        %4924 = vadd.xlane.f32.xlu0 %v4923
        %v4925 = vpop.xlane.xlu0 %4924
        %v4926 = vsel %vm1781, %v4840, 0.0
        %4927 = vadd.xlane.f32.xlu0 %v4926
        %v4928 = vpop.xlane.xlu0 %4927
        %v4929 = vsel %vm1781, %v4842, 0.0
        %4930 = vadd.xlane.f32.xlu0 %v4929
        %v4931 = vpop.xlane.xlu0 %4930
        %v4932 = vsel %vm1781, %v4844, 0.0
        %4933 = vadd.xlane.f32.xlu0 %v4932
        %v4934 = vpop.xlane.xlu0 %4933
        %v4935 = vsel %vm1781, %v4846, 0.0
        %4936 = vadd.xlane.f32.xlu0 %v4935
        %v4937 = vpop.xlane.xlu0 %4936
        %v4938 = vsel %vm1781, %v4848, 0.0
        %4939 = vadd.xlane.f32.xlu0 %v4938
        %v4940 = vpop.xlane.xlu0 %4939
        %v4941 = vsel %vm1781, %v4850, 0.0
        %4942 = vadd.xlane.f32.xlu0 %v4941
        %v4943 = vpop.xlane.xlu0 %4942
        %v4944 = vsel %vm1781, %v4852, 0.0
        %4945 = vadd.xlane.f32.xlu0 %v4944
        %v4946 = vpop.xlane.xlu0 %4945
        %v4947 = vsel %vm1781, %v4854, 0.0
        %4948 = vadd.xlane.f32.xlu0 %v4947
        %v4949 = vpop.xlane.xlu0 %4948
        %v4950 = vsel %vm1781, %v4856, 0.0
        %4951 = vadd.xlane.f32.xlu0 %v4950
        %v4952 = vpop.xlane.xlu0 %4951
        %v4953 = vrcp.pop %v4859
        %v4954 = vrcp.pop %v4862
        %v4955 = vrcp.pop %v4865
        %v4956 = vrcp.pop %v4868
        %v4957 = vrcp.pop %v4871
        %v4958 = vrcp.pop %v4874
        %v4959 = vrcp.pop %v4877
        %v4960 = vrcp.pop %v4880
        %v4961 = vrcp.pop %v4883
        %v4962 = vrcp.pop %v4886
        %v4963 = vrcp.pop %v4889
        %v4964 = vrcp.pop %v4892
        %v4965 = vrcp.pop %v4895
        %v4966 = vrcp.pop %v4898
        %v4967 = vrcp.pop %v4901
        %v4968 = vrcp.pop %v4904
        %v4969 = vrcp.pop %v4907
        %v4970 = vrcp.pop %v4910
        %v4971 = vrcp.pop %v4913
        %v4972 = vrcp.pop %v4916
        %v4973 = vrcp.pop %v4919
        %v4974 = vrcp.pop %v4922
        %v4975 = vrcp.pop %v4925
        %v4976 = vrcp.pop %v4928
        %v4977 = vrcp.pop %v4931
        %v4978 = vrcp.pop %v4934
        %v4979 = vrcp.pop %v4937
        %v4980 = vrcp.pop %v4940
        %v4981 = vrcp.pop %v4943
        %v4982 = vrcp.pop %v4946
        %v4983 = vrcp.pop %v4949
        %v4984 = vrcp.pop %v4952
        %v4985 = vmul.f32 %v4794, %v4953
        %v4986 = vmul.f32 %v4796, %v4954
        %v4987 = vmul.f32 %v4798, %v4955
        %v4988 = vmul.f32 %v4800, %v4956
        %v4989 = vmul.f32 %v4802, %v4957
        %v4990 = vmul.f32 %v4804, %v4958
        %v4991 = vmul.f32 %v4806, %v4959
        %v4992 = vmul.f32 %v4808, %v4960
        %v4993 = vmul.f32 %v4810, %v4961
        %v4994 = vmul.f32 %v4812, %v4962
        %v4995 = vmul.f32 %v4814, %v4963
        %v4996 = vmul.f32 %v4816, %v4964
        %v4997 = vmul.f32 %v4818, %v4965
        %v4998 = vmul.f32 %v4820, %v4966
        %v4999 = vmul.f32 %v4822, %v4967
        %v5000 = vmul.f32 %v4824, %v4968
        %v5001 = vmul.f32 %v4826, %v4969
        %v5002 = vmul.f32 %v4828, %v4970
        %v5003 = vmul.f32 %v4830, %v4971
        %v5004 = vmul.f32 %v4832, %v4972
        %v5005 = vmul.f32 %v4834, %v4973
        %v5006 = vmul.f32 %v4836, %v4974
        %v5007 = vmul.f32 %v4838, %v4975
        %v5008 = vmul.f32 %v4840, %v4976
        %v5009 = vmul.f32 %v4842, %v4977
        %v5010 = vmul.f32 %v4844, %v4978
        %v5011 = vmul.f32 %v4846, %v4979
        %v5012 = vmul.f32 %v4848, %v4980
        %v5013 = vmul.f32 %v4850, %v4981
        %v5014 = vmul.f32 %v4852, %v4982
        %v5015 = vmul.f32 %v4854, %v4983
        %v5016 = vmul.f32 %v4856, %v4984
        %v5017 = vpack.c.bf16 %v4985, %v4985
        %v5018 = vpack.c.bf16 %v4986, %v4986
        %v5019 = vpack.c.bf16 %v4987, %v4987
        %v5020 = vpack.c.bf16 %v4988, %v4988
        %v5021 = vpack.c.bf16 %v4989, %v4989
        %v5022 = vpack.c.bf16 %v4990, %v4990
        %v5023 = vpack.c.bf16 %v4991, %v4991
        %v5024 = vpack.c.bf16 %v4992, %v4992
        %v5025 = vpack.c.bf16 %v4993, %v4993
        %v5026 = vpack.c.bf16 %v4994, %v4994
        %v5027 = vpack.c.bf16 %v4995, %v4995
        %v5028 = vpack.c.bf16 %v4996, %v4996
        %v5029 = vpack.c.bf16 %v4997, %v4997
        %v5030 = vpack.c.bf16 %v4998, %v4998
        %v5031 = vpack.c.bf16 %v4999, %v4999
        %v5032 = vpack.c.bf16 %v5000, %v5000
        %v5033 = vpack.c.bf16 %v5001, %v5001
        %v5034 = vpack.c.bf16 %v5002, %v5002
        %v5035 = vpack.c.bf16 %v5003, %v5003
        %v5036 = vpack.c.bf16 %v5004, %v5004
        %v5037 = vpack.c.bf16 %v5005, %v5005
        %v5038 = vpack.c.bf16 %v5006, %v5006
        %v5039 = vpack.c.bf16 %v5007, %v5007
        %v5040 = vpack.c.bf16 %v5008, %v5008
        %v5041 = vpack.c.bf16 %v5009, %v5009
        %v5042 = vpack.c.bf16 %v5010, %v5010
        %v5043 = vpack.c.bf16 %v5011, %v5011
        %v5044 = vpack.c.bf16 %v5012, %v5012
        %v5045 = vpack.c.bf16 %v5013, %v5013
        %v5046 = vpack.c.bf16 %v5014, %v5014
        %v5047 = vpack.c.bf16 %v5015, %v5015
        %v5048 = vpack.c.bf16 %v5016, %v5016
        %v5057 = vunpack.c.l.b16 %v5017
        %v5058 = vunpack.c.l.b16 %v5018
        %v5059 = vunpack.c.l.b16 %v5019
        %v5060 = vunpack.c.l.b16 %v5020
        %v5061 = vunpack.c.l.b16 %v5021
        %v5062 = vunpack.c.l.b16 %v5022
        %v5063 = vunpack.c.l.b16 %v5023
        %v5064 = vunpack.c.l.b16 %v5024
        %v5065 = vpack.c.b16 %v5058, %v5057
        %v5066 = vpack.c.b16 %v5060, %v5059
        %v5067 = vpack.c.b16 %v5062, %v5061
        %v5068 = vpack.c.b16 %v5064, %v5063
        %5069 = vrot.lane.b32.xlu0 %v1472, 40
        %v5070 = vpop.permute.xlu0 %5069
        %5071 = vrot.lane.b32.xlu0 %v1473, 40
        %v5072 = vpop.permute.xlu0 %5071
        %5073 = vrot.lane.b32.xlu0 %v1474, 40
        %v5074 = vpop.permute.xlu0 %5073
        %5075 = vrot.lane.b32.xlu0 %v1475, 40
        %v5076 = vpop.permute.xlu0 %5075
        %v5082 = vsel %vm1781, %v5065, 0
        %v5085 = vsel %vm1781, %v5066, 0
        %v5088 = vsel %vm1781, %v5067, 0
        %v5091 = vsel %vm1781, %v5068, 0
        %5093 = vmatpush.bf16.msra.mxu0 0
        %5094 = vmatpush.bf16.msra.mxu0 0
        %5095 = vmatpush.bf16.msra.mxu0 0
        %5096 = vmatpush.bf16.msra.mxu0 0
        %5097 = vmatpush.bf16.msra.mxu0 %v5076
        %5098 = vmatpush.bf16.msra.mxu0 %v5074
        %5099 = vmatpush.bf16.msra.mxu0 %v5072
        %5100 = vmatpush.bf16.msra.mxu0 %v5070
        %5101 = vmatmul.bf16.gmra.mxu0 %v5082
        %v5102 = vpop.f32.mrf.mxu0
        %v5103 = vadd.f32 0.0, %v5102
        %v5104 = vpop.f32.mrf.mxu0
        %v5105 = vadd.f32 0.0, %v5104
        %5106 = vmatmul.bf16.gmra.mxu0 %v5085
        %v5107 = vpop.f32.mrf.mxu0
        %v5108 = vadd.f32 0.0, %v5107
        %v5109 = vpop.f32.mrf.mxu0
        %v5110 = vadd.f32 0.0, %v5109
        %5111 = vmatmul.bf16.gmra.mxu0 %v5088
        %v5112 = vpop.f32.mrf.mxu0
        %v5113 = vadd.f32 0.0, %v5112
        %v5114 = vpop.f32.mrf.mxu0
        %v5115 = vadd.f32 0.0, %v5114
        %5116 = vmatmul.bf16.gmra.mxu0 %v5091
        %v5117 = vpop.f32.mrf.mxu0
        %v5118 = vadd.f32 0.0, %v5117
        %v5119 = vpop.f32.mrf.mxu0
        %v5120 = vadd.f32 0.0, %v5119
        %5121 = vdwg.mxu0
        %v5130 = vunpack.c.l.b16 %v5025
        %v5131 = vunpack.c.l.b16 %v5026
        %v5132 = vunpack.c.l.b16 %v5027
        %v5133 = vunpack.c.l.b16 %v5028
        %v5134 = vunpack.c.l.b16 %v5029
        %v5135 = vunpack.c.l.b16 %v5030
        %v5136 = vunpack.c.l.b16 %v5031
        %v5137 = vunpack.c.l.b16 %v5032
        %v5138 = vpack.c.b16 %v5131, %v5130
        %v5139 = vpack.c.b16 %v5133, %v5132
        %v5140 = vpack.c.b16 %v5135, %v5134
        %v5141 = vpack.c.b16 %v5137, %v5136
        %5142 = vrot.lane.b32.xlu0 %v1554, 40
        %v5143 = vpop.permute.xlu0 %5142
        %5144 = vrot.lane.b32.xlu0 %v1555, 40
        %v5145 = vpop.permute.xlu0 %5144
        %5146 = vrot.lane.b32.xlu0 %v1556, 40
        %v5147 = vpop.permute.xlu0 %5146
        %5148 = vrot.lane.b32.xlu0 %v1557, 40
        %v5149 = vpop.permute.xlu0 %5148
        %v5155 = vsel %vm1781, %v5138, 0
        %v5158 = vsel %vm1781, %v5139, 0
        %v5161 = vsel %vm1781, %v5140, 0
        %v5164 = vsel %vm1781, %v5141, 0
        %5166 = vmatpush.bf16.msra.mxu0 0
        %5167 = vmatpush.bf16.msra.mxu0 0
        %5168 = vmatpush.bf16.msra.mxu0 0
        %5169 = vmatpush.bf16.msra.mxu0 0
        %5170 = vmatpush.bf16.msra.mxu0 %v5149
        %5171 = vmatpush.bf16.msra.mxu0 %v5147
        %5172 = vmatpush.bf16.msra.mxu0 %v5145
        %5173 = vmatpush.bf16.msra.mxu0 %v5143
        %5174 = vmatmul.bf16.gmra.mxu0 %v5155
        %v5175 = vpop.f32.mrf.mxu0
        %v5176 = vadd.f32 0.0, %v5175
        %v5177 = vpop.f32.mrf.mxu0
        %v5178 = vadd.f32 0.0, %v5177
        %5179 = vmatmul.bf16.gmra.mxu0 %v5158
        %v5180 = vpop.f32.mrf.mxu0
        %v5181 = vadd.f32 0.0, %v5180
        %v5182 = vpop.f32.mrf.mxu0
        %v5183 = vadd.f32 0.0, %v5182
        %5184 = vmatmul.bf16.gmra.mxu0 %v5161
        %v5185 = vpop.f32.mrf.mxu0
        %v5186 = vadd.f32 0.0, %v5185
        %v5187 = vpop.f32.mrf.mxu0
        %v5188 = vadd.f32 0.0, %v5187
        %5189 = vmatmul.bf16.gmra.mxu0 %v5164
        %v5190 = vpop.f32.mrf.mxu0
        %v5191 = vadd.f32 0.0, %v5190
        %v5192 = vpop.f32.mrf.mxu0
        %v5193 = vadd.f32 0.0, %v5192
        %5194 = vdwg.mxu0
        %v5203 = vunpack.c.l.b16 %v5033
        %v5204 = vunpack.c.l.b16 %v5034
        %v5205 = vunpack.c.l.b16 %v5035
        %v5206 = vunpack.c.l.b16 %v5036
        %v5207 = vunpack.c.l.b16 %v5037
        %v5208 = vunpack.c.l.b16 %v5038
        %v5209 = vunpack.c.l.b16 %v5039
        %v5210 = vunpack.c.l.b16 %v5040
        %v5211 = vpack.c.b16 %v5204, %v5203
        %v5212 = vpack.c.b16 %v5206, %v5205
        %v5213 = vpack.c.b16 %v5208, %v5207
        %v5214 = vpack.c.b16 %v5210, %v5209
        %5215 = vrot.lane.b32.xlu0 %v1635, 40
        %v5216 = vpop.permute.xlu0 %5215
        %5217 = vrot.lane.b32.xlu0 %v1636, 40
        %v5218 = vpop.permute.xlu0 %5217
        %5219 = vrot.lane.b32.xlu0 %v1637, 40
        %v5220 = vpop.permute.xlu0 %5219
        %5221 = vrot.lane.b32.xlu0 %v1638, 40
        %v5222 = vpop.permute.xlu0 %5221
        %v5228 = vsel %vm1781, %v5211, 0
        %v5231 = vsel %vm1781, %v5212, 0
        %v5234 = vsel %vm1781, %v5213, 0
        %v5237 = vsel %vm1781, %v5214, 0
        %5239 = vmatpush.bf16.msra.mxu0 0
        %5240 = vmatpush.bf16.msra.mxu0 0
        %5241 = vmatpush.bf16.msra.mxu0 0
        %5242 = vmatpush.bf16.msra.mxu0 0
        %5243 = vmatpush.bf16.msra.mxu0 %v5222
        %5244 = vmatpush.bf16.msra.mxu0 %v5220
        %5245 = vmatpush.bf16.msra.mxu0 %v5218
        %5246 = vmatpush.bf16.msra.mxu0 %v5216
        %5247 = vmatmul.bf16.gmra.mxu0 %v5228
        %v5248 = vpop.f32.mrf.mxu0
        %v5249 = vadd.f32 0.0, %v5248
        %v5250 = vpop.f32.mrf.mxu0
        %v5251 = vadd.f32 0.0, %v5250
        %5252 = vmatmul.bf16.gmra.mxu0 %v5231
        %v5253 = vpop.f32.mrf.mxu0
        %v5254 = vadd.f32 0.0, %v5253
        %v5255 = vpop.f32.mrf.mxu0
        %v5256 = vadd.f32 0.0, %v5255
        %5257 = vmatmul.bf16.gmra.mxu0 %v5234
        %v5258 = vpop.f32.mrf.mxu0
        %v5259 = vadd.f32 0.0, %v5258
        %v5260 = vpop.f32.mrf.mxu0
        %v5261 = vadd.f32 0.0, %v5260
        %5262 = vmatmul.bf16.gmra.mxu0 %v5237
        %v5263 = vpop.f32.mrf.mxu0
        %v5264 = vadd.f32 0.0, %v5263
        %v5265 = vpop.f32.mrf.mxu0
        %v5266 = vadd.f32 0.0, %v5265
        %5267 = vdwg.mxu0
        %v5276 = vunpack.c.l.b16 %v5041
        %v5277 = vunpack.c.l.b16 %v5042
        %v5278 = vunpack.c.l.b16 %v5043
        %v5279 = vunpack.c.l.b16 %v5044
        %v5280 = vunpack.c.l.b16 %v5045
        %v5281 = vunpack.c.l.b16 %v5046
        %v5282 = vunpack.c.l.b16 %v5047
        %v5283 = vunpack.c.l.b16 %v5048
        %v5284 = vpack.c.b16 %v5277, %v5276
        %v5285 = vpack.c.b16 %v5279, %v5278
        %v5286 = vpack.c.b16 %v5281, %v5280
        %v5287 = vpack.c.b16 %v5283, %v5282
        %5288 = vrot.lane.b32.xlu0 %v1716, 40
        %v5289 = vpop.permute.xlu0 %5288
        %5290 = vrot.lane.b32.xlu0 %v1717, 40
        %v5291 = vpop.permute.xlu0 %5290
        %5292 = vrot.lane.b32.xlu0 %v1718, 40
        %v5293 = vpop.permute.xlu0 %5292
        %5294 = vrot.lane.b32.xlu0 %v1719, 40
        %v5295 = vpop.permute.xlu0 %5294
        %v5301 = vsel %vm1781, %v5284, 0
        %v5304 = vsel %vm1781, %v5285, 0
        %v5307 = vsel %vm1781, %v5286, 0
        %v5310 = vsel %vm1781, %v5287, 0
        %5312 = vmatpush.bf16.msra.mxu0 0
        %5313 = vmatpush.bf16.msra.mxu0 0
        %5314 = vmatpush.bf16.msra.mxu0 0
        %5315 = vmatpush.bf16.msra.mxu0 0
        %5316 = vmatpush.bf16.msra.mxu0 %v5295
        %5317 = vmatpush.bf16.msra.mxu0 %v5293
        %5318 = vmatpush.bf16.msra.mxu0 %v5291
        %5319 = vmatpush.bf16.msra.mxu0 %v5289
        %5320 = vmatmul.bf16.gmra.mxu0 %v5301
        %v5321 = vpop.f32.mrf.mxu0
        %v5322 = vadd.f32 0.0, %v5321
        %v5323 = vpop.f32.mrf.mxu0
        %v5324 = vadd.f32 0.0, %v5323
        %5325 = vmatmul.bf16.gmra.mxu0 %v5304
        %v5326 = vpop.f32.mrf.mxu0
        %v5327 = vadd.f32 0.0, %v5326
        %v5328 = vpop.f32.mrf.mxu0
        %v5329 = vadd.f32 0.0, %v5328
        %5330 = vmatmul.bf16.gmra.mxu0 %v5307
        %v5331 = vpop.f32.mrf.mxu0
        %v5332 = vadd.f32 0.0, %v5331
        %v5333 = vpop.f32.mrf.mxu0
        %v5334 = vadd.f32 0.0, %v5333
        %5335 = vmatmul.bf16.gmra.mxu0 %v5310
        %v5336 = vpop.f32.mrf.mxu0
        %v5337 = vadd.f32 0.0, %v5336
        %v5338 = vpop.f32.mrf.mxu0
        %v5339 = vadd.f32 0.0, %v5338
        %5340 = vdwg.mxu0
        %5373 = vrot.lane.b32.xlu0 %v3181, 8
        %v5374 = vpop.permute.xlu0 %5373
        %5375 = vrot.lane.b32.xlu0 %v3183, 8
        %v5376 = vpop.permute.xlu0 %5375
        %5377 = vrot.lane.b32.xlu0 %v3186, 8
        %v5378 = vpop.permute.xlu0 %5377
        %5379 = vrot.lane.b32.xlu0 %v3188, 8
        %v5380 = vpop.permute.xlu0 %5379
        %5381 = vrot.lane.b32.xlu0 %v3191, 8
        %v5382 = vpop.permute.xlu0 %5381
        %5383 = vrot.lane.b32.xlu0 %v3193, 8
        %v5384 = vpop.permute.xlu0 %5383
        %5385 = vrot.lane.b32.xlu0 %v3196, 8
        %v5386 = vpop.permute.xlu0 %5385
        %5387 = vrot.lane.b32.xlu0 %v3198, 8
        %v5388 = vpop.permute.xlu0 %5387
        %5389 = vrot.lane.b32.xlu0 %v3254, 8
        %v5390 = vpop.permute.xlu0 %5389
        %5391 = vrot.lane.b32.xlu0 %v3256, 8
        %v5392 = vpop.permute.xlu0 %5391
        %5393 = vrot.lane.b32.xlu0 %v3259, 8
        %v5394 = vpop.permute.xlu0 %5393
        %5395 = vrot.lane.b32.xlu0 %v3261, 8
        %v5396 = vpop.permute.xlu0 %5395
        %5397 = vrot.lane.b32.xlu0 %v3264, 8
        %v5398 = vpop.permute.xlu0 %5397
        %5399 = vrot.lane.b32.xlu0 %v3266, 8
        %v5400 = vpop.permute.xlu0 %5399
        %5401 = vrot.lane.b32.xlu0 %v3269, 8
        %v5402 = vpop.permute.xlu0 %5401
        %5403 = vrot.lane.b32.xlu0 %v3271, 8
        %v5404 = vpop.permute.xlu0 %5403
        %5405 = vrot.lane.b32.xlu0 %v3327, 8
        %v5406 = vpop.permute.xlu0 %5405
        %5407 = vrot.lane.b32.xlu0 %v3329, 8
        %v5408 = vpop.permute.xlu0 %5407
        %5409 = vrot.lane.b32.xlu0 %v3332, 8
        %v5410 = vpop.permute.xlu0 %5409
        %5411 = vrot.lane.b32.xlu0 %v3334, 8
        %v5412 = vpop.permute.xlu0 %5411
        %5413 = vrot.lane.b32.xlu0 %v3337, 8
        %v5414 = vpop.permute.xlu0 %5413
        %5415 = vrot.lane.b32.xlu0 %v3339, 8
        %v5416 = vpop.permute.xlu0 %5415
        %5417 = vrot.lane.b32.xlu0 %v3342, 8
        %v5418 = vpop.permute.xlu0 %5417
        %5419 = vrot.lane.b32.xlu0 %v3344, 8
        %v5420 = vpop.permute.xlu0 %5419
        %5421 = vrot.lane.b32.xlu0 %v3400, 8
        %v5422 = vpop.permute.xlu0 %5421
        %5423 = vrot.lane.b32.xlu0 %v3402, 8
        %v5424 = vpop.permute.xlu0 %5423
        %5425 = vrot.lane.b32.xlu0 %v3405, 8
        %v5426 = vpop.permute.xlu0 %5425
        %5427 = vrot.lane.b32.xlu0 %v3407, 8
        %v5428 = vpop.permute.xlu0 %5427
        %5429 = vrot.lane.b32.xlu0 %v3410, 8
        %v5430 = vpop.permute.xlu0 %5429
        %5431 = vrot.lane.b32.xlu0 %v3412, 8
        %v5432 = vpop.permute.xlu0 %5431
        %5433 = vrot.lane.b32.xlu0 %v3415, 8
        %v5434 = vpop.permute.xlu0 %5433
        %5435 = vrot.lane.b32.xlu0 %v3417, 8
        %v5436 = vpop.permute.xlu0 %5435
        %5501 = vrot.lane.b32.xlu0 %v4142, 16
        %v5502 = vpop.permute.xlu0 %5501
        %5503 = vrot.lane.b32.xlu0 %v4144, 16
        %v5504 = vpop.permute.xlu0 %5503
        %5505 = vrot.lane.b32.xlu0 %v4147, 16
        %v5506 = vpop.permute.xlu0 %5505
        %5507 = vrot.lane.b32.xlu0 %v4149, 16
        %v5508 = vpop.permute.xlu0 %5507
        %5509 = vrot.lane.b32.xlu0 %v4152, 16
        %v5510 = vpop.permute.xlu0 %5509
        %5511 = vrot.lane.b32.xlu0 %v4154, 16
        %v5512 = vpop.permute.xlu0 %5511
        %5513 = vrot.lane.b32.xlu0 %v4157, 16
        %v5514 = vpop.permute.xlu0 %5513
        %5515 = vrot.lane.b32.xlu0 %v4159, 16
        %v5516 = vpop.permute.xlu0 %5515
        %5517 = vrot.lane.b32.xlu0 %v4215, 16
        %v5518 = vpop.permute.xlu0 %5517
        %5519 = vrot.lane.b32.xlu0 %v4217, 16
        %v5520 = vpop.permute.xlu0 %5519
        %5521 = vrot.lane.b32.xlu0 %v4220, 16
        %v5522 = vpop.permute.xlu0 %5521
        %5523 = vrot.lane.b32.xlu0 %v4222, 16
        %v5524 = vpop.permute.xlu0 %5523
        %5525 = vrot.lane.b32.xlu0 %v4225, 16
        %v5526 = vpop.permute.xlu0 %5525
        %5527 = vrot.lane.b32.xlu0 %v4227, 16
        %v5528 = vpop.permute.xlu0 %5527
        %5529 = vrot.lane.b32.xlu0 %v4230, 16
        %v5530 = vpop.permute.xlu0 %5529
        %5531 = vrot.lane.b32.xlu0 %v4232, 16
        %v5532 = vpop.permute.xlu0 %5531
        %5533 = vrot.lane.b32.xlu0 %v4288, 16
        %v5534 = vpop.permute.xlu0 %5533
        %5535 = vrot.lane.b32.xlu0 %v4290, 16
        %v5536 = vpop.permute.xlu0 %5535
        %5537 = vrot.lane.b32.xlu0 %v4293, 16
        %v5538 = vpop.permute.xlu0 %5537
        %5539 = vrot.lane.b32.xlu0 %v4295, 16
        %v5540 = vpop.permute.xlu0 %5539
        %5541 = vrot.lane.b32.xlu0 %v4298, 16
        %v5542 = vpop.permute.xlu0 %5541
        %5543 = vrot.lane.b32.xlu0 %v4300, 16
        %v5544 = vpop.permute.xlu0 %5543
        %5545 = vrot.lane.b32.xlu0 %v4303, 16
        %v5546 = vpop.permute.xlu0 %5545
        %5547 = vrot.lane.b32.xlu0 %v4305, 16
        %v5548 = vpop.permute.xlu0 %5547
        %5549 = vrot.lane.b32.xlu0 %v4361, 16
        %v5550 = vpop.permute.xlu0 %5549
        %5551 = vrot.lane.b32.xlu0 %v4363, 16
        %v5552 = vpop.permute.xlu0 %5551
        %5553 = vrot.lane.b32.xlu0 %v4366, 16
        %v5554 = vpop.permute.xlu0 %5553
        %5555 = vrot.lane.b32.xlu0 %v4368, 16
        %v5556 = vpop.permute.xlu0 %5555
        %5557 = vrot.lane.b32.xlu0 %v4371, 16
        %v5558 = vpop.permute.xlu0 %5557
        %5559 = vrot.lane.b32.xlu0 %v4373, 16
        %v5560 = vpop.permute.xlu0 %5559
        %5561 = vrot.lane.b32.xlu0 %v4376, 16
        %v5562 = vpop.permute.xlu0 %5561
        %5563 = vrot.lane.b32.xlu0 %v4378, 16
        %v5564 = vpop.permute.xlu0 %5563
        %5629 = vrot.lane.b32.xlu0 %v5103, 24
        %v5630 = vpop.permute.xlu0 %5629
        %5631 = vrot.lane.b32.xlu0 %v5105, 24
        %v5632 = vpop.permute.xlu0 %5631
        %5633 = vrot.lane.b32.xlu0 %v5108, 24
        %v5634 = vpop.permute.xlu0 %5633
        %5635 = vrot.lane.b32.xlu0 %v5110, 24
        %v5636 = vpop.permute.xlu0 %5635
        %5637 = vrot.lane.b32.xlu0 %v5113, 24
        %v5638 = vpop.permute.xlu0 %5637
        %5639 = vrot.lane.b32.xlu0 %v5115, 24
        %v5640 = vpop.permute.xlu0 %5639
        %5641 = vrot.lane.b32.xlu0 %v5118, 24
        %v5642 = vpop.permute.xlu0 %5641
        %5643 = vrot.lane.b32.xlu0 %v5120, 24
        %v5644 = vpop.permute.xlu0 %5643
        %5645 = vrot.lane.b32.xlu0 %v5176, 24
        %v5646 = vpop.permute.xlu0 %5645
        %5647 = vrot.lane.b32.xlu0 %v5178, 24
        %v5648 = vpop.permute.xlu0 %5647
        %5649 = vrot.lane.b32.xlu0 %v5181, 24
        %v5650 = vpop.permute.xlu0 %5649
        %5651 = vrot.lane.b32.xlu0 %v5183, 24
        %v5652 = vpop.permute.xlu0 %5651
        %5653 = vrot.lane.b32.xlu0 %v5186, 24
        %v5654 = vpop.permute.xlu0 %5653
        %5655 = vrot.lane.b32.xlu0 %v5188, 24
        %v5656 = vpop.permute.xlu0 %5655
        %5657 = vrot.lane.b32.xlu0 %v5191, 24
        %v5658 = vpop.permute.xlu0 %5657
        %5659 = vrot.lane.b32.xlu0 %v5193, 24
        %v5660 = vpop.permute.xlu0 %5659
        %5661 = vrot.lane.b32.xlu0 %v5249, 24
        %v5662 = vpop.permute.xlu0 %5661
        %5663 = vrot.lane.b32.xlu0 %v5251, 24
        %v5664 = vpop.permute.xlu0 %5663
        %5665 = vrot.lane.b32.xlu0 %v5254, 24
        %v5666 = vpop.permute.xlu0 %5665
        %5667 = vrot.lane.b32.xlu0 %v5256, 24
        %v5668 = vpop.permute.xlu0 %5667
        %5669 = vrot.lane.b32.xlu0 %v5259, 24
        %v5670 = vpop.permute.xlu0 %5669
        %5671 = vrot.lane.b32.xlu0 %v5261, 24
        %v5672 = vpop.permute.xlu0 %5671
        %5673 = vrot.lane.b32.xlu0 %v5264, 24
        %v5674 = vpop.permute.xlu0 %5673
        %5675 = vrot.lane.b32.xlu0 %v5266, 24
        %v5676 = vpop.permute.xlu0 %5675
        %5677 = vrot.lane.b32.xlu0 %v5322, 24
        %v5678 = vpop.permute.xlu0 %5677
        %5679 = vrot.lane.b32.xlu0 %v5324, 24
        %v5680 = vpop.permute.xlu0 %5679
        %5681 = vrot.lane.b32.xlu0 %v5327, 24
        %v5682 = vpop.permute.xlu0 %5681
        %5683 = vrot.lane.b32.xlu0 %v5329, 24
        %v5684 = vpop.permute.xlu0 %5683
        %5685 = vrot.lane.b32.xlu0 %v5332, 24
        %v5686 = vpop.permute.xlu0 %5685
        %5687 = vrot.lane.b32.xlu0 %v5334, 24
        %v5688 = vpop.permute.xlu0 %5687
        %5689 = vrot.lane.b32.xlu0 %v5337, 24
        %v5690 = vpop.permute.xlu0 %5689
        %5691 = vrot.lane.b32.xlu0 %v5339, 24
        %v5692 = vpop.permute.xlu0 %5691
        %v5725 = vsel %vm1484, %v2220, %v5374
        %v5726 = vsel %vm1484, %v2222, %v5376
        %v5727 = vsel %vm1484, %v2225, %v5378
        %v5728 = vsel %vm1484, %v2227, %v5380
        %v5729 = vsel %vm1484, %v2230, %v5382
        %v5730 = vsel %vm1484, %v2232, %v5384
        %v5731 = vsel %vm1484, %v2235, %v5386
        %v5732 = vsel %vm1484, %v2237, %v5388
        %v5733 = vsel %vm1484, %v2293, %v5390
        %v5734 = vsel %vm1484, %v2295, %v5392
        %v5735 = vsel %vm1484, %v2298, %v5394
        %v5736 = vsel %vm1484, %v2300, %v5396
        %v5737 = vsel %vm1484, %v2303, %v5398
        %v5738 = vsel %vm1484, %v2305, %v5400
        %v5739 = vsel %vm1484, %v2308, %v5402
        %v5740 = vsel %vm1484, %v2310, %v5404
        %v5741 = vsel %vm1484, %v2366, %v5406
        %v5742 = vsel %vm1484, %v2368, %v5408
        %v5743 = vsel %vm1484, %v2371, %v5410
        %v5744 = vsel %vm1484, %v2373, %v5412
        %v5745 = vsel %vm1484, %v2376, %v5414
        %v5746 = vsel %vm1484, %v2378, %v5416
        %v5747 = vsel %vm1484, %v2381, %v5418
        %v5748 = vsel %vm1484, %v2383, %v5420
        %v5749 = vsel %vm1484, %v2439, %v5422
        %v5750 = vsel %vm1484, %v2441, %v5424
        %v5751 = vsel %vm1484, %v2444, %v5426
        %v5752 = vsel %vm1484, %v2446, %v5428
        %v5753 = vsel %vm1484, %v2449, %v5430
        %v5754 = vsel %vm1484, %v2451, %v5432
        %v5755 = vsel %vm1484, %v2454, %v5434
        %v5756 = vsel %vm1484, %v2456, %v5436
        %vm5757 = vcmask 130048
        %v5758 = vsel %vm5757, %v5725, %v5502
        %v5759 = vsel %vm5757, %v5726, %v5504
        %v5760 = vsel %vm5757, %v5727, %v5506
        %v5761 = vsel %vm5757, %v5728, %v5508
        %v5762 = vsel %vm5757, %v5729, %v5510
        %v5763 = vsel %vm5757, %v5730, %v5512
        %v5764 = vsel %vm5757, %v5731, %v5514
        %v5765 = vsel %vm5757, %v5732, %v5516
        %v5766 = vsel %vm5757, %v5733, %v5518
        %v5767 = vsel %vm5757, %v5734, %v5520
        %v5768 = vsel %vm5757, %v5735, %v5522
        %v5769 = vsel %vm5757, %v5736, %v5524
        %v5770 = vsel %vm5757, %v5737, %v5526
        %v5771 = vsel %vm5757, %v5738, %v5528
        %v5772 = vsel %vm5757, %v5739, %v5530
        %v5773 = vsel %vm5757, %v5740, %v5532
        %v5774 = vsel %vm5757, %v5741, %v5534
        %v5775 = vsel %vm5757, %v5742, %v5536
        %v5776 = vsel %vm5757, %v5743, %v5538
        %v5777 = vsel %vm5757, %v5744, %v5540
        %v5778 = vsel %vm5757, %v5745, %v5542
        %v5779 = vsel %vm5757, %v5746, %v5544
        %v5780 = vsel %vm5757, %v5747, %v5546
        %v5781 = vsel %vm5757, %v5748, %v5548
        %v5782 = vsel %vm5757, %v5749, %v5550
        %v5783 = vsel %vm5757, %v5750, %v5552
        %v5784 = vsel %vm5757, %v5751, %v5554
        %v5785 = vsel %vm5757, %v5752, %v5556
        %v5786 = vsel %vm5757, %v5753, %v5558
        %v5787 = vsel %vm5757, %v5754, %v5560
        %v5788 = vsel %vm5757, %v5755, %v5562
        %v5789 = vsel %vm5757, %v5756, %v5564
        %vm5790 = vcmask 195584
        %v5791 = vsel %vm5790, %v5758, %v5630
        %v5792 = vsel %vm5790, %v5759, %v5632
        %v5793 = vsel %vm5790, %v5760, %v5634
        %v5794 = vsel %vm5790, %v5761, %v5636
        %v5795 = vsel %vm5790, %v5762, %v5638
        %v5796 = vsel %vm5790, %v5763, %v5640
        %v5797 = vsel %vm5790, %v5764, %v5642
        %v5798 = vsel %vm5790, %v5765, %v5644
        %v5799 = vsel %vm5790, %v5766, %v5646
        %v5800 = vsel %vm5790, %v5767, %v5648
        %v5801 = vsel %vm5790, %v5768, %v5650
        %v5802 = vsel %vm5790, %v5769, %v5652
        %v5803 = vsel %vm5790, %v5770, %v5654
        %v5804 = vsel %vm5790, %v5771, %v5656
        %v5805 = vsel %vm5790, %v5772, %v5658
        %v5806 = vsel %vm5790, %v5773, %v5660
        %v5807 = vsel %vm5790, %v5774, %v5662
        %v5808 = vsel %vm5790, %v5775, %v5664
        %v5809 = vsel %vm5790, %v5776, %v5666
        %v5810 = vsel %vm5790, %v5777, %v5668
        %v5811 = vsel %vm5790, %v5778, %v5670
        %v5812 = vsel %vm5790, %v5779, %v5672
        %v5813 = vsel %vm5790, %v5780, %v5674
        %v5814 = vsel %vm5790, %v5781, %v5676
        %v5815 = vsel %vm5790, %v5782, %v5678
        %v5816 = vsel %vm5790, %v5783, %v5680
        %v5817 = vsel %vm5790, %v5784, %v5682
        %v5818 = vsel %vm5790, %v5785, %v5684
        %v5819 = vsel %vm5790, %v5786, %v5686
        %v5820 = vsel %vm5790, %v5787, %v5688
        %v5821 = vsel %vm5790, %v5788, %v5690
        %v5822 = vsel %vm5790, %v5789, %v5692
        %v5823 = vpack.c.bf16 %v5792, %v5791
        %v5824 = vpack.c.bf16 %v5794, %v5793
        %v5825 = vpack.c.bf16 %v5796, %v5795
        %v5826 = vpack.c.bf16 %v5798, %v5797
        %v5827 = vpack.c.bf16 %v5800, %v5799
        %v5828 = vpack.c.bf16 %v5802, %v5801
        %v5829 = vpack.c.bf16 %v5804, %v5803
        %v5830 = vpack.c.bf16 %v5806, %v5805
        %v5831 = vpack.c.bf16 %v5808, %v5807
        %v5832 = vpack.c.bf16 %v5810, %v5809
        %v5833 = vpack.c.bf16 %v5812, %v5811
        %v5834 = vpack.c.bf16 %v5814, %v5813
        %v5835 = vpack.c.bf16 %v5816, %v5815
        %v5836 = vpack.c.bf16 %v5818, %v5817
        %v5837 = vpack.c.bf16 %v5820, %v5819
        %v5838 = vpack.c.bf16 %v5822, %v5821
        %v5839 = vld [vmem:[#allocation10] sm:$0xf]
        %v5840 = vld [vmem:[#allocation10 + $0x4] sm:$0xf]
        %v5841 = vld [vmem:[#allocation10 + $0x8] sm:$0xf]
        %v5842 = vld [vmem:[#allocation10 + $0xc] sm:$0xf]
        %v5843 = vld [vmem:[%s7] sm:$0x1]
        %v5845 = vperm.slane %v5843, 0
        %v5851 = vunpack.c.l.b16 %v5839
        %v5852 = vunpack.c.l.b16 %v5840
        %v5853 = vunpack.c.l.b16 %v5841
        %v5854 = vunpack.c.l.b16 %v5842
        %v5855 = vpack.c.b16 %v5852, %v5851
        %v5856 = vpack.c.b16 %v5854, %v5853
        %v5860 = vsel %vm459, %v5823, 0
        %v5863 = vsel %vm459, %v5824, 0
        %v5866 = vsel %vm459, %v5825, 0
        %v5869 = vsel %vm459, %v5826, 0
        %v5872 = vsel %vm459, %v5827, 0
        %v5875 = vsel %vm459, %v5828, 0
        %v5878 = vsel %vm459, %v5829, 0
        %v5881 = vsel %vm459, %v5830, 0
        %v5884 = vsel %vm459, %v5831, 0
        %v5887 = vsel %vm459, %v5832, 0
        %v5890 = vsel %vm459, %v5833, 0
        %v5893 = vsel %vm459, %v5834, 0
        %v5896 = vsel %vm459, %v5835, 0
        %v5899 = vsel %vm459, %v5836, 0
        %v5902 = vsel %vm459, %v5837, 0
        %v5905 = vsel %vm459, %v5838, 0
        %5907 = vmatpush.bf16.msra.mxu0 0
        %5908 = vmatpush.bf16.msra.mxu0 0
        %5909 = vmatpush.bf16.msra.mxu0 0
        %5910 = vmatpush.bf16.msra.mxu0 0
        %5911 = vmatpush.bf16.msra.mxu0 0
        %5912 = vmatpush.bf16.msra.mxu0 0
        %5913 = vmatpush.bf16.msra.mxu0 %v5856
        %5914 = vmatpush.bf16.msra.mxu0 %v5855
        %5915 = vmatmul.bf16.gmra.mxu0 %v5860
        %v5916 = vpop.f32.mrf.mxu0
        %v5917 = vadd.f32 %v5845, %v5916
        %v5918 = vpop.f32.mrf.mxu0
        %v5919 = vadd.f32 %v5845, %v5918
        %5920 = vmatmul.bf16.gmra.mxu0 %v5863
        %v5921 = vpop.f32.mrf.mxu0
        %v5922 = vadd.f32 %v5845, %v5921
        %v5923 = vpop.f32.mrf.mxu0
        %v5924 = vadd.f32 %v5845, %v5923
        %5925 = vmatmul.bf16.gmra.mxu0 %v5866
        %v5926 = vpop.f32.mrf.mxu0
        %v5927 = vadd.f32 %v5845, %v5926
        %v5928 = vpop.f32.mrf.mxu0
        %v5929 = vadd.f32 %v5845, %v5928
        %5930 = vmatmul.bf16.gmra.mxu0 %v5869
        %v5931 = vpop.f32.mrf.mxu0
        %v5932 = vadd.f32 %v5845, %v5931
        %v5933 = vpop.f32.mrf.mxu0
        %v5934 = vadd.f32 %v5845, %v5933
        %5935 = vmatmul.bf16.gmra.mxu0 %v5872
        %v5936 = vpop.f32.mrf.mxu0
        %v5937 = vadd.f32 %v5845, %v5936
        %v5938 = vpop.f32.mrf.mxu0
        %v5939 = vadd.f32 %v5845, %v5938
        %5940 = vmatmul.bf16.gmra.mxu0 %v5875
        %v5941 = vpop.f32.mrf.mxu0
        %v5942 = vadd.f32 %v5845, %v5941
        %v5943 = vpop.f32.mrf.mxu0
        %v5944 = vadd.f32 %v5845, %v5943
        %5945 = vmatmul.bf16.gmra.mxu0 %v5878
        %v5946 = vpop.f32.mrf.mxu0
        %v5947 = vadd.f32 %v5845, %v5946
        %v5948 = vpop.f32.mrf.mxu0
        %v5949 = vadd.f32 %v5845, %v5948
        %5950 = vmatmul.bf16.gmra.mxu0 %v5881
        %v5951 = vpop.f32.mrf.mxu0
        %v5952 = vadd.f32 %v5845, %v5951
        %v5953 = vpop.f32.mrf.mxu0
        %v5954 = vadd.f32 %v5845, %v5953
        %5955 = vmatmul.bf16.gmra.mxu0 %v5884
        %v5956 = vpop.f32.mrf.mxu0
        %v5957 = vadd.f32 %v5845, %v5956
        %v5958 = vpop.f32.mrf.mxu0
        %v5959 = vadd.f32 %v5845, %v5958
        %5960 = vmatmul.bf16.gmra.mxu0 %v5887
        %v5961 = vpop.f32.mrf.mxu0
        %v5962 = vadd.f32 %v5845, %v5961
        %v5963 = vpop.f32.mrf.mxu0
        %v5964 = vadd.f32 %v5845, %v5963
        %5965 = vmatmul.bf16.gmra.mxu0 %v5890
        %v5966 = vpop.f32.mrf.mxu0
        %v5967 = vadd.f32 %v5845, %v5966
        %v5968 = vpop.f32.mrf.mxu0
        %v5969 = vadd.f32 %v5845, %v5968
        %5970 = vmatmul.bf16.gmra.mxu0 %v5893
        %v5971 = vpop.f32.mrf.mxu0
        %v5972 = vadd.f32 %v5845, %v5971
        %v5973 = vpop.f32.mrf.mxu0
        %v5974 = vadd.f32 %v5845, %v5973
        %5975 = vmatmul.bf16.gmra.mxu0 %v5896
        %v5976 = vpop.f32.mrf.mxu0
        %v5977 = vadd.f32 %v5845, %v5976
        %v5978 = vpop.f32.mrf.mxu0
        %v5979 = vadd.f32 %v5845, %v5978
        %5980 = vmatmul.bf16.gmra.mxu0 %v5899
        %v5981 = vpop.f32.mrf.mxu0
        %v5982 = vadd.f32 %v5845, %v5981
        %v5983 = vpop.f32.mrf.mxu0
        %v5984 = vadd.f32 %v5845, %v5983
        %5985 = vmatmul.bf16.gmra.mxu0 %v5902
        %v5986 = vpop.f32.mrf.mxu0
        %v5987 = vadd.f32 %v5845, %v5986
        %v5988 = vpop.f32.mrf.mxu0
        %v5989 = vadd.f32 %v5845, %v5988
        %5990 = vmatmul.bf16.gmra.mxu0 %v5905
        %v5991 = vpop.f32.mrf.mxu0
        %v5992 = vadd.f32 %v5845, %v5991
        %v5993 = vpop.f32.mrf.mxu0
        %v5994 = vadd.f32 %v5845, %v5993
        %5995 = vdwg.mxu0
        %5996 = vst.msk [vmem:[%s421] sm:$0xff] %vm459, %v5917
        %5997 = vst.msk [vmem:[%s421 + $0x8] sm:$0xff] %vm459, %v5919
        %5998 = vst.msk [vmem:[%s421 + $0x10] sm:$0xff] %vm459, %v5922
        %5999 = vst.msk [vmem:[%s421 + $0x18] sm:$0xff] %vm459, %v5924
        %6000 = vst.msk [vmem:[%s421 + $0x20] sm:$0xff] %vm459, %v5927
        %6001 = vst.msk [vmem:[%s421 + $0x28] sm:$0xff] %vm459, %v5929
        %6002 = vst.msk [vmem:[%s421 + $0x30] sm:$0xff] %vm459, %v5932
        %6003 = vst.msk [vmem:[%s421 + $0x38] sm:$0xff] %vm459, %v5934
        %6004 = vst.msk [vmem:[%s421 + $0x40] sm:$0xff] %vm459, %v5937
        %6005 = vst.msk [vmem:[%s421 + $0x48] sm:$0xff] %vm459, %v5939
        %6006 = vst.msk [vmem:[%s421 + $0x50] sm:$0xff] %vm459, %v5942
        %6007 = vst.msk [vmem:[%s421 + $0x58] sm:$0xff] %vm459, %v5944
        %6008 = vst.msk [vmem:[%s421 + $0x60] sm:$0xff] %vm459, %v5947
        %6009 = vst.msk [vmem:[%s421 + $0x68] sm:$0xff] %vm459, %v5949
        %6010 = vst.msk [vmem:[%s421 + $0x70] sm:$0xff] %vm459, %v5952
        %6011 = vst.msk [vmem:[%s421 + $0x78] sm:$0xff] %vm459, %v5954
        %6012 = vst.msk [vmem:[%s421 + $0x80] sm:$0xff] %vm459, %v5957
        %6013 = vst.msk [vmem:[%s421 + $0x88] sm:$0xff] %vm459, %v5959
        %6014 = vst.msk [vmem:[%s421 + $0x90] sm:$0xff] %vm459, %v5962
        %6015 = vst.msk [vmem:[%s421 + $0x98] sm:$0xff] %vm459, %v5964
        %6016 = vst.msk [vmem:[%s421 + $0xa0] sm:$0xff] %vm459, %v5967
        %6017 = vst.msk [vmem:[%s421 + $0xa8] sm:$0xff] %vm459, %v5969
        %6018 = vst.msk [vmem:[%s421 + $0xb0] sm:$0xff] %vm459, %v5972
        %6019 = vst.msk [vmem:[%s421 + $0xb8] sm:$0xff] %vm459, %v5974
        %6020 = vst.msk [vmem:[%s421 + $0xc0] sm:$0xff] %vm459, %v5977
        %6021 = vst.msk [vmem:[%s421 + $0xc8] sm:$0xff] %vm459, %v5979
        %6022 = vst.msk [vmem:[%s421 + $0xd0] sm:$0xff] %vm459, %v5982
        %6023 = vst.msk [vmem:[%s421 + $0xd8] sm:$0xff] %vm459, %v5984
        %6024 = vst.msk [vmem:[%s421 + $0xe0] sm:$0xff] %vm459, %v5987
        %6025 = vst.msk [vmem:[%s421 + $0xe8] sm:$0xff] %vm459, %v5989
        %6026 = vst.msk [vmem:[%s421 + $0xf0] sm:$0xff] %vm459, %v5992
        %6027 = vst.msk [vmem:[%s421 + $0xf8] sm:$0xff] %vm459, %v5994
        %s6028 = sand.u32 %s235, 1
        %s6029 = scalar_lea.sflag [#allocation4], %s6028
        %s6030 = sand.u32 %s235, 1
        %s6031 = smul.addr %s6030, 256
        %s6032 = scalar_lea.vmem [#allocation11], %s6031
        // Predicated region
        $region73: #{tpu_custom_call.1} parent=51 // pred_check
          %p6033 = pneg %p245
        $region74: #{tpu_custom_call.1} parent=51 // pred_check_branch
          %6035 = sbr.rel (%p6033) target = $region76
        $region75: #{tpu_custom_call.1} parent=51 // pred_region
          %s6036 = smul.u32 2, %s32
          %s6037 = smul.u32 16, %s33
          %6039 = vsyncadd %s6029, 0
          %s6040 = smul.addr %s6037, 2
          %s6041 = sadd.s32 %s34, %s6040
          %s6042 = smul.addr %s6036, 32
          %s6043 = sadd.s32 %s6041, %s6042
          %s6044 = smul.addr %s6043, 8
          %s6045 = scalar_lea.hbm %s8, %s6044
          %s6046 = sshll.u32 %s6032, 4
          %s6047 = int_to_ptr.vmem [resolvable:$true] %s6046
          %s6048 = sshll.u32 %s6045, 4
          %s6049 = int_to_ptr.hbm [resolvable:$true] %s6048
          %6054 = dma.vmem_to_hbm [thread:$0]  %s6047, 4096, %s6049, %s6029, 128, 256, 8
        $region76: #{tpu_custom_call.1} parent=51 // pred_fallthru
          _
      $region52: #{tpu_custom_call.1} parent=5 // pred_fallthru
        _
      %p6055 = scmp.le.s32.totalorder 2, %s22
      // Predicated region
      $region77: #{tpu_custom_call.1} parent=5 // pred_check
        %p6056 = pneg %p6055
      $region78: #{tpu_custom_call.1} parent=5 // pred_check_branch
        %6058 = sbr.rel (%p6056) target = $region80
      $region79: #{tpu_custom_call.1} parent=5 // pred_region
        %s6059 = ssub.s32 %s22, 2
        // Predicated region
        $region81: #{tpu_custom_call.1} parent=79 // pred_check
          %p6060 = pneg %p251
        $region82: #{tpu_custom_call.1} parent=79 // pred_check_branch
          %6062 = sbr.rel (%p6060) target = $region84
        $region83: #{tpu_custom_call.1} parent=79 // pred_region
          %s6063 = sand.u32 %s236, 1
          %s6064 = scalar_lea.sflag [#allocation4], %s6063
          %s6065 = sand.u32 %s236, 1
          %s6066 = smul.addr %s6065, 256
          %s6067 = scalar_lea.vmem [#allocation11], %s6066
          %6069 = dma.done %s6064, 4096
        $region84: #{tpu_custom_call.1} parent=79 // pred_fallthru
          _
      $region80: #{tpu_custom_call.1} parent=5 // pred_fallthru
        _
    $region6: #{tpu_custom_call.1} parent=1 // loop_footer
      %s26 = sadd.s32 1, %s22
    $region7: #{tpu_custom_call.1} parent=1 // loop_footer_branch
      %21 = sbr.rel target = $region3
    $region8: #{tpu_custom_call.1} parent=1 // loop_exit
      _
    %6070 = vsyncpa [#allocation3], 1
    %s6071 = scalar_lea.sflag [#allocation3], 1
    %6072 = vsyncpa %s6071, 1
    %6073 = vsyncpa [#allocation6], 1
    %6074 = vsyncpa [#allocation9], 1
    %6075 = vsyncpa [#allocation4], 1
    %s6076 = scalar_lea.sflag [#allocation4], 1
    %6077 = vsyncpa %s6076, 1

</llo_original>
